<compile_context>
chip_gen: v7x
topology: tpu7x:2x2x1
jax: 0.10.0
libtpu: 0.0.40
codegen_flags: <defaults>
</compile_context>

<pallas_src>
import functools

import jax
import jax.numpy as jnp
from jax.experimental import pallas as pl
from jax.experimental.pallas import tpu as pltpu


def _convlstm_cell_kernel(ap_ref, w_ref, b_ref, c_ref, peep_ref, ht_ref, ct_ref,
                          *, K, TH, W, Ch):
    """One (batch, row-block) grid step.

    ap_ref:   (H+2P, W+2P, Cp) bf16  zero-padded [x | h] activations (full image)
    w_ref:    (K*K, Cp, 4*Ch)  bf16  per-tap fused conv weights (g cols pre-scaled x2)
    b_ref:    (1, 4*Ch)        f32   bias (g cols pre-scaled x2)
    c_ref:    (TM, Ch)         f32   previous cell state rows for this block
    peep_ref: (TM, 3*Ch)       bf16  [Wic | Wfc | Woc] peephole rows
    ht_ref:   (TM, Ch)               output h_t (x.dtype)
    ct_ref:   (TM, Ch)         f32   output c_t (kept f32: recurrent state)
    """
    TM = TH * W
    y0 = pl.program_id(1) * TH            # top output row of this row block

    # ---- fused "same" conv (x-path + h-path, 4 gates): accumulate K*K
    #      shifted-view MXU matmuls; no im2col materialized anywhere. ----
    acc = jnp.zeros((TM, 4 * Ch), jnp.float32)
    for t in range(K * K):
        dy, dx = divmod(t, K)
        a_tap = ap_ref[pl.ds(y0 + dy, TH), pl.ds(dx, W), :].reshape(TM, -1)
        acc = acc + jnp.dot(a_tap, w_ref[t], preferred_element_type=jnp.float32)
    s = acc + b_ref[...]                  # (TM, 4*Ch), gate order [i | f | g | o]

    c = c_ref[...]                                   # (TM, Ch)   f32
    peep = peep_ref[...].astype(jnp.float32)         # (TM, 3*Ch) [Wic|Wfc|Woc]

    # Peephole addend only for the i/f columns; g columns were pre-scaled by 2
    # so one tanh pass gives sigmoid(i), sigmoid(f) and tanh(g).
    cc = jnp.concatenate([c, c], axis=-1)                         # (TM, 2*Ch)
    pre = jnp.concatenate([s[:, :2 * Ch] + cc * peep[:, :2 * Ch],
                           s[:, 2 * Ch:3 * Ch]], axis=-1)         # (TM, 3*Ch)
    t3 = jnp.tanh(0.5 * pre)
    it = 0.5 * t3[:, 0 * Ch:1 * Ch] + 0.5
    ft = 0.5 * t3[:, 1 * Ch:2 * Ch] + 0.5
    gt = t3[:, 2 * Ch:3 * Ch]
    ct = ft * c + it * gt

    ot = 0.5 * jnp.tanh(0.5 * (s[:, 3 * Ch:] + ct * peep[:, 2 * Ch:])) + 0.5
    ht = ot * jnp.tanh(ct)

    # Direct stores (no concat temp).  Note: Ch < 128 lanes => masked stores;
    # output bytes are a small fraction here so we keep the simple layout.
    ht_ref[...] = ht.astype(ht_ref.dtype)
    ct_ref[...] = ct


def conv_lstm_cell(x, h, c, wx, wh, bx, wic, wfc, woc, *, kernel_size,
                   block_h=None):
    """Pallas ConvLSTMCell forward.  Returns (ht, ct): ht in x.dtype, ct f32,
    both [B, H, W, Ch].

    wx: [K*K, Cin, 4*Ch], wh: [K*K, Ch, 4*Ch], bx: [1, 4*Ch] (gate order i,f,g,o)
    wic/wfc/woc: [H, W, Ch] peephole weights (broadcast over batch).
    """
    B, H, W, Cin = x.shape
    Ch = c.shape[-1]
    K = kernel_size
    P = (K - 1) // 2
    HW = H * W
    C = Cin + Ch
    Cp = ((C + 7) // 8) * 8               # contraction dim, 8-aligned

    if block_h is None:
        block_h = H                       # whole image per grid step at small sizes
    assert H % block_h == 0, "block_h must divide H"
    GH = H // block_h
    TM = block_h * W
    assert TM % 16 == 0, "row tile (block_h*W) must be a multiple of 16 (bf16 sublanes)"

    # ---------------- wrapper-side prep (cheap, un-expanded) ----------------
    # [x | h] along channels, spatial zero-pad for the "same" conv, channel pad
    # to Cp, bf16 MXU operands.
    a = jnp.concatenate([x, h.astype(x.dtype)], axis=-1)              # (B,H,W,C)
    ap = jnp.pad(a, ((0, 0), (P, P), (P, P), (0, Cp - C))).astype(jnp.bfloat16)

    # Per-tap fused weights (x rows stacked over h rows); g columns x2.
    w = jnp.concatenate([wx, wh], axis=1).astype(jnp.float32)         # (K*K,C,4Ch)
    gscale = jnp.concatenate([jnp.ones((2 * Ch,), jnp.float32),
                              jnp.full((Ch,), 2.0, jnp.float32),
                              jnp.ones((Ch,), jnp.float32)])
    w = (w * gscale[None, None, :]).astype(jnp.bfloat16)
    w = jnp.pad(w, ((0, 0), (0, Cp - C), (0, 0)))                     # (K*K,Cp,4Ch)
    bias = bx.reshape(1, 4 * Ch).astype(jnp.float32) * gscale[None, :]

    # Peephole slab [Wic | Wfc | Woc]: (H*W, 3*Ch) bf16, batch-broadcast in
    # the index_map (no tiling / f32 duplication in HBM).
    peep = jnp.concatenate([wic.reshape(HW, Ch), wfc.reshape(HW, Ch),
                            woc.reshape(HW, Ch)], axis=-1).astype(jnp.bfloat16)

    c2d = c.reshape(B, HW, Ch).astype(jnp.float32)

    kernel = functools.partial(_convlstm_cell_kernel, K=K, TH=block_h, W=W, Ch=Ch)
    ht, ct = pl.pallas_call(
        kernel,
        out_shape=(jax.ShapeDtypeStruct((B, HW, Ch), x.dtype),        # h_t
                   jax.ShapeDtypeStruct((B, HW, Ch), jnp.float32)),   # c_t (f32)
        grid=(B, GH),
        in_specs=[
            # Full padded image per batch; block index ignores the row-block
            # axis -> DMA'd once per batch, revisited across row blocks.
            pl.BlockSpec((None, H + 2 * P, W + 2 * P, Cp),
                         lambda b, r: (b, 0, 0, 0)),
            pl.BlockSpec((K * K, Cp, 4 * Ch), lambda b, r: (0, 0, 0)),
            pl.BlockSpec((1, 4 * Ch), lambda b, r: (0, 0)),
            pl.BlockSpec((None, TM, Ch), lambda b, r: (b, r, 0)),     # c_{t-1}
            pl.BlockSpec((TM, 3 * Ch), lambda b, r: (r, 0)),          # peep (bcast B)
        ],
        out_specs=(pl.BlockSpec((None, TM, Ch), lambda b, r: (b, r, 0)),
                   pl.BlockSpec((None, TM, Ch), lambda b, r: (b, r, 0))),
        compiler_params=pltpu.CompilerParams(
            dimension_semantics=("parallel", "parallel"),
            vmem_limit_bytes=32 * 1024 * 1024),
    )(ap, w, bias, c2d, peep)

    return ht.reshape(B, H, W, Ch), ct.reshape(B, H, W, Ch)


# ------------------------ pure-JAX reference (for checking) ------------------
def _conv2d_same(x, w, b=None):
    y = jax.lax.conv_general_dilated(
        x, w, window_strides=(1, 1), padding="SAME",
        dimension_numbers=("NHWC", "HWIO", "NHWC"))
    if b is not None:
        y = y + b
    return y


def reference_forward(x, h, c, p):
    it = jax.nn.sigmoid(_conv2d_same(x, p["wii"], p["bii"])
                        + _conv2d_same(h, p["wih"]) + c * p["wic"])
    ft = jax.nn.sigmoid(_conv2d_same(x, p["wfi"], p["bfi"])
                        + _conv2d_same(h, p["wfh"]) + c * p["wfc"])
    ct = ft * c + it * jnp.tanh(_conv2d_same(x, p["wci"], p["bci"])
                                + _conv2d_same(h, p["wch"]))
    ot = jax.nn.sigmoid(_conv2d_same(x, p["woi"], p["boi"])
                        + _conv2d_same(h, p["woh"]) + ct * p["woc"])
    ht = ot * jnp.tanh(ct)
    return ht, ct


if __name__ == "__main__":
    B, Cin, Ch, H, W, K = 2, 4, 32, 16, 16, 3
    key = jax.random.PRNGKey(0)
    ks = jax.random.split(key, 20)
    f32 = jnp.float32
    scale = 0.1

    # Inputs (NHWC).
    x = jax.random.normal(ks[0], (B, H, W, Cin), f32)
    h = jax.random.normal(ks[1], (B, H, W, Ch), f32)
    c = jax.random.normal(ks[2], (B, H, W, Ch), f32)

    # Deterministic parameter init (PyTorch peepholes init to zeros — use small
    # random values so the peephole path is exercised; semantics identical).
    p = {}
    names_x = ["wii", "wfi", "wci", "woi"]
    names_h = ["wih", "wfh", "wch", "woh"]
    names_b = ["bii", "bfi", "bci", "boi"]
    for i, (nx, nh, nb) in enumerate(zip(names_x, names_h, names_b)):
        p[nx] = scale * jax.random.normal(ks[3 + i], (K, K, Cin, Ch), f32)
        p[nh] = scale * jax.random.normal(ks[7 + i], (K, K, Ch, Ch), f32)
        p[nb] = scale * jax.random.normal(ks[11 + i], (Ch,), f32)
    p["wic"] = scale * jax.random.normal(ks[15], (H, W, Ch), f32)
    p["wfc"] = scale * jax.random.normal(ks[16], (H, W, Ch), f32)
    p["woc"] = scale * jax.random.normal(ks[17], (H, W, Ch), f32)

    # Stack the 4 gates: [K*K, Cin, 4*Ch], [K*K, Ch, 4*Ch], [1, 4*Ch].
    wx = jnp.concatenate([p[n] for n in names_x], axis=-1).reshape(K * K, Cin, 4 * Ch)
    wh = jnp.concatenate([p[n] for n in names_h], axis=-1).reshape(K * K, Ch, 4 * Ch)
    bx = jnp.concatenate([p[n] for n in names_b], axis=-1).reshape(1, 4 * Ch)

    ht, ct = conv_lstm_cell(x, h, c, wx, wh, bx,
                            p["wic"], p["wfc"], p["woc"], kernel_size=K)
    jax.block_until_ready((ht, ct))

    ht_ref, ct_ref = reference_forward(x, h, c, p)
    # bf16 MXU operands (f32 accumulation) -> tolerance relaxed vs pure-f32 run.
    assert jnp.allclose(ht, ht_ref, atol=5e-2, rtol=5e-2), "ht mismatch"
    assert jnp.allclose(ct, ct_ref, atol=5e-2, rtol=5e-2), "ct mismatch"

    print("KERNEL_OK")
</pallas_src>

<mosaic_0001>
module attributes {stable_mosaic.version = 11 : i64} {
  func.func @_convlstm_cell_kernel(%arg0: i32, %arg1: i32, %arg2: memref<1x18x18x40xbf16, #tpu.memory_space<vmem>>, %arg3: memref<9x40x128xbf16, #tpu.memory_space<vmem>>, %arg4: memref<1x128xf32, #tpu.memory_space<vmem>>, %arg5: memref<1x256x32xf32, #tpu.memory_space<vmem>>, %arg6: memref<256x96xbf16, #tpu.memory_space<vmem>>, %arg7: memref<1x256x32xf32, #tpu.memory_space<vmem>>, %arg8: memref<1x256x32xf32, #tpu.memory_space<vmem>>) attributes {dimension_semantics = [#tpu.dimension_semantics<parallel>, #tpu.dimension_semantics<parallel>], iteration_bounds = array<i64: 2, 1>, scalar_prefetch = 0 : i64, scratch_operands = 0 : i64, tpu.core_type = #tpu.core_type<tc>, window_params = [{transform_indices = @transform_0, window_bounds = array<i64: 1, 18, 18, 40>}, {pipeline_mode = #tpu.pipeline_mode<synchronous>, transform_indices = @transform_1, window_bounds = array<i64: 9, 40, 128>}, {pipeline_mode = #tpu.pipeline_mode<synchronous>, transform_indices = @transform_2, window_bounds = array<i64: 1, 128>}, {transform_indices = @transform_3, window_bounds = array<i64: 1, 256, 32>}, {transform_indices = @transform_4, window_bounds = array<i64: 256, 96>}, {transform_indices = @transform_5, window_bounds = array<i64: 1, 256, 32>}, {transform_indices = @transform_6, window_bounds = array<i64: 1, 256, 32>}]} {
    %c16_i32 = arith.constant 16 : i32
    %0 = arith.muli %arg1, %c16_i32 : i32
    %cst = arith.constant 0.000000e+00 : f32
    %1 = vector.broadcast %cst : f32 to vector<256x128xf32>
    %c0_i32 = arith.constant 0 : i32
    %2 = arith.addi %0, %c0_i32 : i32
    %c0 = arith.constant 0 : index
    %3 = arith.index_cast %2 : i32 to index
    %c0_0 = arith.constant 0 : index
    %c0_1 = arith.constant 0 : index
    %4 = vector.load %arg2[%c0, %3, %c0_0, %c0_1] : memref<1x18x18x40xbf16, #tpu.memory_space<vmem>>, vector<1x16x16x40xbf16>
    %5 = vector.shape_cast %4 : vector<1x16x16x40xbf16> to vector<16x16x40xbf16>
    %6 = vector.shape_cast %5 : vector<16x16x40xbf16> to vector<256x40xbf16>
    %c0_2 = arith.constant 0 : index
    %c0_3 = arith.constant 0 : index
    %c0_4 = arith.constant 0 : index
    %7 = vector.load %arg3[%c0_2, %c0_3, %c0_4] : memref<9x40x128xbf16, #tpu.memory_space<vmem>>, vector<1x40x128xbf16>
    %8 = vector.shape_cast %7 : vector<1x40x128xbf16> to vector<40x128xbf16>
    %cst_5 = arith.constant dense<0.000000e+00> : vector<256x128xf32>
    %9 = tpu.matmul %6, %8, %cst_5 {dimension_numbers = #tpu.dot_dimension_numbers<[1], [0], [0], [1], [0, 0, 1, 1], [], []>} : vector<256x40xbf16>, vector<40x128xbf16>, vector<256x128xf32> -> vector<256x128xf32>
    %10 = arith.addf %1, %9 : vector<256x128xf32>
    %c0_i32_6 = arith.constant 0 : i32
    %11 = arith.addi %0, %c0_i32_6 : i32
    %c0_7 = arith.constant 0 : index
    %12 = arith.index_cast %11 : i32 to index
    %c1 = arith.constant 1 : index
    %c0_8 = arith.constant 0 : index
    %13 = vector.load %arg2[%c0_7, %12, %c1, %c0_8] : memref<1x18x18x40xbf16, #tpu.memory_space<vmem>>, vector<1x16x16x40xbf16>
    %14 = vector.shape_cast %13 : vector<1x16x16x40xbf16> to vector<16x16x40xbf16>
    %15 = vector.shape_cast %14 : vector<16x16x40xbf16> to vector<256x40xbf16>
    %c1_9 = arith.constant 1 : index
    %c0_10 = arith.constant 0 : index
    %c0_11 = arith.constant 0 : index
    %16 = vector.load %arg3[%c1_9, %c0_10, %c0_11] : memref<9x40x128xbf16, #tpu.memory_space<vmem>>, vector<1x40x128xbf16>
    %17 = vector.shape_cast %16 : vector<1x40x128xbf16> to vector<40x128xbf16>
    %cst_12 = arith.constant dense<0.000000e+00> : vector<256x128xf32>
    %18 = tpu.matmul %15, %17, %cst_12 {dimension_numbers = #tpu.dot_dimension_numbers<[1], [0], [0], [1], [0, 0, 1, 1], [], []>} : vector<256x40xbf16>, vector<40x128xbf16>, vector<256x128xf32> -> vector<256x128xf32>
    %19 = arith.addf %10, %18 : vector<256x128xf32>
    %c0_i32_13 = arith.constant 0 : i32
    %20 = arith.addi %0, %c0_i32_13 : i32
    %c0_14 = arith.constant 0 : index
    %21 = arith.index_cast %20 : i32 to index
    %c2 = arith.constant 2 : index
    %c0_15 = arith.constant 0 : index
    %22 = vector.load %arg2[%c0_14, %21, %c2, %c0_15] : memref<1x18x18x40xbf16, #tpu.memory_space<vmem>>, vector<1x16x16x40xbf16>
    %23 = vector.shape_cast %22 : vector<1x16x16x40xbf16> to vector<16x16x40xbf16>
    %24 = vector.shape_cast %23 : vector<16x16x40xbf16> to vector<256x40xbf16>
    %c2_16 = arith.constant 2 : index
    %c0_17 = arith.constant 0 : index
    %c0_18 = arith.constant 0 : index
    %25 = vector.load %arg3[%c2_16, %c0_17, %c0_18] : memref<9x40x128xbf16, #tpu.memory_space<vmem>>, vector<1x40x128xbf16>
    %26 = vector.shape_cast %25 : vector<1x40x128xbf16> to vector<40x128xbf16>
    %cst_19 = arith.constant dense<0.000000e+00> : vector<256x128xf32>
    %27 = tpu.matmul %24, %26, %cst_19 {dimension_numbers = #tpu.dot_dimension_numbers<[1], [0], [0], [1], [0, 0, 1, 1], [], []>} : vector<256x40xbf16>, vector<40x128xbf16>, vector<256x128xf32> -> vector<256x128xf32>
    %28 = arith.addf %19, %27 : vector<256x128xf32>
    %c1_i32 = arith.constant 1 : i32
    %29 = arith.addi %0, %c1_i32 : i32
    %c0_20 = arith.constant 0 : index
    %30 = arith.index_cast %29 : i32 to index
    %c0_21 = arith.constant 0 : index
    %c0_22 = arith.constant 0 : index
    %31 = vector.load %arg2[%c0_20, %30, %c0_21, %c0_22] : memref<1x18x18x40xbf16, #tpu.memory_space<vmem>>, vector<1x16x16x40xbf16>
    %32 = vector.shape_cast %31 : vector<1x16x16x40xbf16> to vector<16x16x40xbf16>
    %33 = vector.shape_cast %32 : vector<16x16x40xbf16> to vector<256x40xbf16>
    %c3 = arith.constant 3 : index
    %c0_23 = arith.constant 0 : index
    %c0_24 = arith.constant 0 : index
    %34 = vector.load %arg3[%c3, %c0_23, %c0_24] : memref<9x40x128xbf16, #tpu.memory_space<vmem>>, vector<1x40x128xbf16>
    %35 = vector.shape_cast %34 : vector<1x40x128xbf16> to vector<40x128xbf16>
    %cst_25 = arith.constant dense<0.000000e+00> : vector<256x128xf32>
    %36 = tpu.matmul %33, %35, %cst_25 {dimension_numbers = #tpu.dot_dimension_numbers<[1], [0], [0], [1], [0, 0, 1, 1], [], []>} : vector<256x40xbf16>, vector<40x128xbf16>, vector<256x128xf32> -> vector<256x128xf32>
    %37 = arith.addf %28, %36 : vector<256x128xf32>
    %c1_i32_26 = arith.constant 1 : i32
    %38 = arith.addi %0, %c1_i32_26 : i32
    %c0_27 = arith.constant 0 : index
    %39 = arith.index_cast %38 : i32 to index
    %c1_28 = arith.constant 1 : index
    %c0_29 = arith.constant 0 : index
    %40 = vector.load %arg2[%c0_27, %39, %c1_28, %c0_29] : memref<1x18x18x40xbf16, #tpu.memory_space<vmem>>, vector<1x16x16x40xbf16>
    %41 = vector.shape_cast %40 : vector<1x16x16x40xbf16> to vector<16x16x40xbf16>
    %42 = vector.shape_cast %41 : vector<16x16x40xbf16> to vector<256x40xbf16>
    %c4 = arith.constant 4 : index
    %c0_30 = arith.constant 0 : index
    %c0_31 = arith.constant 0 : index
    %43 = vector.load %arg3[%c4, %c0_30, %c0_31] : memref<9x40x128xbf16, #tpu.memory_space<vmem>>, vector<1x40x128xbf16>
    %44 = vector.shape_cast %43 : vector<1x40x128xbf16> to vector<40x128xbf16>
    %cst_32 = arith.constant dense<0.000000e+00> : vector<256x128xf32>
    %45 = tpu.matmul %42, %44, %cst_32 {dimension_numbers = #tpu.dot_dimension_numbers<[1], [0], [0], [1], [0, 0, 1, 1], [], []>} : vector<256x40xbf16>, vector<40x128xbf16>, vector<256x128xf32> -> vector<256x128xf32>
    %46 = arith.addf %37, %45 : vector<256x128xf32>
    %c1_i32_33 = arith.constant 1 : i32
    %47 = arith.addi %0, %c1_i32_33 : i32
    %c0_34 = arith.constant 0 : index
    %48 = arith.index_cast %47 : i32 to index
    %c2_35 = arith.constant 2 : index
    %c0_36 = arith.constant 0 : index
    %49 = vector.load %arg2[%c0_34, %48, %c2_35, %c0_36] : memref<1x18x18x40xbf16, #tpu.memory_space<vmem>>, vector<1x16x16x40xbf16>
    %50 = vector.shape_cast %49 : vector<1x16x16x40xbf16> to vector<16x16x40xbf16>
    %51 = vector.shape_cast %50 : vector<16x16x40xbf16> to vector<256x40xbf16>
    %c5 = arith.constant 5 : index
    %c0_37 = arith.constant 0 : index
    %c0_38 = arith.constant 0 : index
    %52 = vector.load %arg3[%c5, %c0_37, %c0_38] : memref<9x40x128xbf16, #tpu.memory_space<vmem>>, vector<1x40x128xbf16>
    %53 = vector.shape_cast %52 : vector<1x40x128xbf16> to vector<40x128xbf16>
    %cst_39 = arith.constant dense<0.000000e+00> : vector<256x128xf32>
    %54 = tpu.matmul %51, %53, %cst_39 {dimension_numbers = #tpu.dot_dimension_numbers<[1], [0], [0], [1], [0, 0, 1, 1], [], []>} : vector<256x40xbf16>, vector<40x128xbf16>, vector<256x128xf32> -> vector<256x128xf32>
    %55 = arith.addf %46, %54 : vector<256x128xf32>
    %c2_i32 = arith.constant 2 : i32
    %56 = arith.addi %0, %c2_i32 : i32
    %c0_40 = arith.constant 0 : index
    %57 = arith.index_cast %56 : i32 to index
    %c0_41 = arith.constant 0 : index
    %c0_42 = arith.constant 0 : index
    %58 = vector.load %arg2[%c0_40, %57, %c0_41, %c0_42] : memref<1x18x18x40xbf16, #tpu.memory_space<vmem>>, vector<1x16x16x40xbf16>
    %59 = vector.shape_cast %58 : vector<1x16x16x40xbf16> to vector<16x16x40xbf16>
    %60 = vector.shape_cast %59 : vector<16x16x40xbf16> to vector<256x40xbf16>
    %c6 = arith.constant 6 : index
    %c0_43 = arith.constant 0 : index
    %c0_44 = arith.constant 0 : index
    %61 = vector.load %arg3[%c6, %c0_43, %c0_44] : memref<9x40x128xbf16, #tpu.memory_space<vmem>>, vector<1x40x128xbf16>
    %62 = vector.shape_cast %61 : vector<1x40x128xbf16> to vector<40x128xbf16>
    %cst_45 = arith.constant dense<0.000000e+00> : vector<256x128xf32>
    %63 = tpu.matmul %60, %62, %cst_45 {dimension_numbers = #tpu.dot_dimension_numbers<[1], [0], [0], [1], [0, 0, 1, 1], [], []>} : vector<256x40xbf16>, vector<40x128xbf16>, vector<256x128xf32> -> vector<256x128xf32>
    %64 = arith.addf %55, %63 : vector<256x128xf32>
    %c2_i32_46 = arith.constant 2 : i32
    %65 = arith.addi %0, %c2_i32_46 : i32
    %c0_47 = arith.constant 0 : index
    %66 = arith.index_cast %65 : i32 to index
    %c1_48 = arith.constant 1 : index
    %c0_49 = arith.constant 0 : index
    %67 = vector.load %arg2[%c0_47, %66, %c1_48, %c0_49] : memref<1x18x18x40xbf16, #tpu.memory_space<vmem>>, vector<1x16x16x40xbf16>
    %68 = vector.shape_cast %67 : vector<1x16x16x40xbf16> to vector<16x16x40xbf16>
    %69 = vector.shape_cast %68 : vector<16x16x40xbf16> to vector<256x40xbf16>
    %c7 = arith.constant 7 : index
    %c0_50 = arith.constant 0 : index
    %c0_51 = arith.constant 0 : index
    %70 = vector.load %arg3[%c7, %c0_50, %c0_51] : memref<9x40x128xbf16, #tpu.memory_space<vmem>>, vector<1x40x128xbf16>
    %71 = vector.shape_cast %70 : vector<1x40x128xbf16> to vector<40x128xbf16>
    %cst_52 = arith.constant dense<0.000000e+00> : vector<256x128xf32>
    %72 = tpu.matmul %69, %71, %cst_52 {dimension_numbers = #tpu.dot_dimension_numbers<[1], [0], [0], [1], [0, 0, 1, 1], [], []>} : vector<256x40xbf16>, vector<40x128xbf16>, vector<256x128xf32> -> vector<256x128xf32>
    %73 = arith.addf %64, %72 : vector<256x128xf32>
    %c2_i32_53 = arith.constant 2 : i32
    %74 = arith.addi %0, %c2_i32_53 : i32
    %c0_54 = arith.constant 0 : index
    %75 = arith.index_cast %74 : i32 to index
    %c2_55 = arith.constant 2 : index
    %c0_56 = arith.constant 0 : index
    %76 = vector.load %arg2[%c0_54, %75, %c2_55, %c0_56] : memref<1x18x18x40xbf16, #tpu.memory_space<vmem>>, vector<1x16x16x40xbf16>
    %77 = vector.shape_cast %76 : vector<1x16x16x40xbf16> to vector<16x16x40xbf16>
    %78 = vector.shape_cast %77 : vector<16x16x40xbf16> to vector<256x40xbf16>
    %c8 = arith.constant 8 : index
    %c0_57 = arith.constant 0 : index
    %c0_58 = arith.constant 0 : index
    %79 = vector.load %arg3[%c8, %c0_57, %c0_58] : memref<9x40x128xbf16, #tpu.memory_space<vmem>>, vector<1x40x128xbf16>
    %80 = vector.shape_cast %79 : vector<1x40x128xbf16> to vector<40x128xbf16>
    %cst_59 = arith.constant dense<0.000000e+00> : vector<256x128xf32>
    %81 = tpu.matmul %78, %80, %cst_59 {dimension_numbers = #tpu.dot_dimension_numbers<[1], [0], [0], [1], [0, 0, 1, 1], [], []>} : vector<256x40xbf16>, vector<40x128xbf16>, vector<256x128xf32> -> vector<256x128xf32>
    %82 = arith.addf %73, %81 : vector<256x128xf32>
    %c0_60 = arith.constant 0 : index
    %c0_61 = arith.constant 0 : index
    %83 = vector.load %arg4[%c0_60, %c0_61] : memref<1x128xf32, #tpu.memory_space<vmem>>, vector<1x128xf32>
    %84 = vector.broadcast %83 : vector<1x128xf32> to vector<256x128xf32>
    %85 = arith.addf %82, %84 : vector<256x128xf32>
    %c0_62 = arith.constant 0 : index
    %c0_63 = arith.constant 0 : index
    %c0_64 = arith.constant 0 : index
    %86 = vector.load %arg5[%c0_62, %c0_63, %c0_64] : memref<1x256x32xf32, #tpu.memory_space<vmem>>, vector<1x256x32xf32>
    %87 = vector.shape_cast %86 : vector<1x256x32xf32> to vector<256x32xf32>
    %c0_65 = arith.constant 0 : index
    %c0_66 = arith.constant 0 : index
    %88 = vector.load %arg6[%c0_65, %c0_66] : memref<256x96xbf16, #tpu.memory_space<vmem>>, vector<256x96xbf16>
    %89 = arith.extf %88 : vector<256x96xbf16> to vector<256x96xf32>
    %90 = tpu.concatenate %87, %87 in 1 : vector<256x32xf32>, vector<256x32xf32> -> vector<256x64xf32>
    %91 = vector.extract_strided_slice %85 {offsets = [0, 0], sizes = [256, 64], strides = [1, 1]} : vector<256x128xf32> to vector<256x64xf32>
    %92 = vector.extract_strided_slice %89 {offsets = [0, 0], sizes = [256, 64], strides = [1, 1]} : vector<256x96xf32> to vector<256x64xf32>
    %93 = arith.mulf %90, %92 : vector<256x64xf32>
    %94 = arith.addf %91, %93 : vector<256x64xf32>
    %95 = vector.extract_strided_slice %85 {offsets = [0, 64], sizes = [256, 32], strides = [1, 1]} : vector<256x128xf32> to vector<256x32xf32>
    %96 = tpu.concatenate %94, %95 in 1 : vector<256x64xf32>, vector<256x32xf32> -> vector<256x96xf32>
    %cst_67 = arith.constant 5.000000e-01 : f32
    %97 = vector.broadcast %cst_67 : f32 to vector<256x96xf32>
    %98 = arith.mulf %97, %96 : vector<256x96xf32>
    %99 = math.tanh %98 : vector<256x96xf32>
    %100 = vector.extract_strided_slice %99 {offsets = [0, 0], sizes = [256, 32], strides = [1, 1]} : vector<256x96xf32> to vector<256x32xf32>
    %cst_68 = arith.constant 5.000000e-01 : f32
    %101 = vector.broadcast %cst_68 : f32 to vector<256x32xf32>
    %102 = arith.mulf %101, %100 : vector<256x32xf32>
    %cst_69 = arith.constant 5.000000e-01 : f32
    %103 = vector.broadcast %cst_69 : f32 to vector<256x32xf32>
    %104 = arith.addf %102, %103 : vector<256x32xf32>
    %105 = vector.extract_strided_slice %99 {offsets = [0, 32], sizes = [256, 32], strides = [1, 1]} : vector<256x96xf32> to vector<256x32xf32>
    %cst_70 = arith.constant 5.000000e-01 : f32
    %106 = vector.broadcast %cst_70 : f32 to vector<256x32xf32>
    %107 = arith.mulf %106, %105 : vector<256x32xf32>
    %cst_71 = arith.constant 5.000000e-01 : f32
    %108 = vector.broadcast %cst_71 : f32 to vector<256x32xf32>
    %109 = arith.addf %107, %108 : vector<256x32xf32>
    %110 = vector.extract_strided_slice %99 {offsets = [0, 64], sizes = [256, 32], strides = [1, 1]} : vector<256x96xf32> to vector<256x32xf32>
    %111 = arith.mulf %109, %87 : vector<256x32xf32>
    %112 = arith.mulf %104, %110 : vector<256x32xf32>
    %113 = arith.addf %111, %112 : vector<256x32xf32>
    %114 = vector.extract_strided_slice %85 {offsets = [0, 96], sizes = [256, 32], strides = [1, 1]} : vector<256x128xf32> to vector<256x32xf32>
    %115 = vector.extract_strided_slice %89 {offsets = [0, 64], sizes = [256, 32], strides = [1, 1]} : vector<256x96xf32> to vector<256x32xf32>
    %116 = arith.mulf %113, %115 : vector<256x32xf32>
    %117 = arith.addf %114, %116 : vector<256x32xf32>
    %cst_72 = arith.constant 5.000000e-01 : f32
    %118 = vector.broadcast %cst_72 : f32 to vector<256x32xf32>
    %119 = arith.mulf %118, %117 : vector<256x32xf32>
    %120 = math.tanh %119 : vector<256x32xf32>
    %cst_73 = arith.constant 5.000000e-01 : f32
    %121 = vector.broadcast %cst_73 : f32 to vector<256x32xf32>
    %122 = arith.mulf %121, %120 : vector<256x32xf32>
    %cst_74 = arith.constant 5.000000e-01 : f32
    %123 = vector.broadcast %cst_74 : f32 to vector<256x32xf32>
    %124 = arith.addf %122, %123 : vector<256x32xf32>
    %125 = math.tanh %113 : vector<256x32xf32>
    %126 = arith.mulf %124, %125 : vector<256x32xf32>
    %c0_75 = arith.constant 0 : index
    %c0_76 = arith.constant 0 : index
    %c0_77 = arith.constant 0 : index
    %127 = vector.load %arg7[%c0_75, %c0_76, %c0_77] : memref<1x256x32xf32, #tpu.memory_space<vmem>>, vector<1x256x32xf32>
    %128 = vector.shape_cast %127 : vector<1x256x32xf32> to vector<256x32xf32>
    %129 = vector.shape_cast %126 : vector<256x32xf32> to vector<1x256x32xf32>
    tpu.vector_store %arg7[%c0_75, %c0_76, %c0_77], %129 {strides = array<i32>} : memref<1x256x32xf32, #tpu.memory_space<vmem>>, vector<1x256x32xf32>,
    %c0_78 = arith.constant 0 : index
    %c0_79 = arith.constant 0 : index
    %c0_80 = arith.constant 0 : index
    %130 = vector.load %arg8[%c0_78, %c0_79, %c0_80] : memref<1x256x32xf32, #tpu.memory_space<vmem>>, vector<1x256x32xf32>
    %131 = vector.shape_cast %130 : vector<1x256x32xf32> to vector<256x32xf32>
    %132 = vector.shape_cast %113 : vector<256x32xf32> to vector<1x256x32xf32>
    tpu.vector_store %arg8[%c0_78, %c0_79, %c0_80], %132 {strides = array<i32>} : memref<1x256x32xf32, #tpu.memory_space<vmem>>, vector<1x256x32xf32>,
    return
  }
  func.func @transform_0(%arg0: i32, %arg1: i32) -> (i32, i32, i32, i32) {
    %c0_i32 = arith.constant 0 : i32
    %c0_i32_0 = arith.constant 0 : i32
    %c0_i32_1 = arith.constant 0 : i32
    %c0_i32_2 = arith.constant 0 : i32
    return %arg0, %c0_i32, %c0_i32_0, %c0_i32_1 : i32, i32, i32, i32
  }
  func.func @transform_1(%arg0: i32, %arg1: i32) -> (i32, i32, i32) {
    %c0_i32 = arith.constant 0 : i32
    %c0_i32_0 = arith.constant 0 : i32
    %c0_i32_1 = arith.constant 0 : i32
    %c0_i32_2 = arith.constant 0 : i32
    return %c0_i32, %c0_i32_0, %c0_i32_1 : i32, i32, i32
  }
  func.func @transform_2(%arg0: i32, %arg1: i32) -> (i32, i32) {
    %c0_i32 = arith.constant 0 : i32
    %c0_i32_0 = arith.constant 0 : i32
    %c0_i32_1 = arith.constant 0 : i32
    return %c0_i32, %c0_i32_0 : i32, i32
  }
  func.func @transform_3(%arg0: i32, %arg1: i32) -> (i32, i32, i32) {
    %c0_i32 = arith.constant 0 : i32
    %c0_i32_0 = arith.constant 0 : i32
    return %arg0, %arg1, %c0_i32 : i32, i32, i32
  }
  func.func @transform_4(%arg0: i32, %arg1: i32) -> (i32, i32) {
    %c0_i32 = arith.constant 0 : i32
    %c0_i32_0 = arith.constant 0 : i32
    return %arg1, %c0_i32 : i32, i32
  }
  func.func @transform_5(%arg0: i32, %arg1: i32) -> (i32, i32, i32) {
    %c0_i32 = arith.constant 0 : i32
    %c0_i32_0 = arith.constant 0 : i32
    return %arg0, %arg1, %c0_i32 : i32, i32, i32
  }
  func.func @transform_6(%arg0: i32, %arg1: i32) -> (i32, i32, i32) {
    %c0_i32 = arith.constant 0 : i32
    %c0_i32_0 = arith.constant 0 : i32
    return %arg0, %arg1, %c0_i32 : i32, i32, i32
  }
}

</mosaic_0001>

<llo_original>
// kernel: tpu_custom_call.1
$region0: #{tpu_custom_call.1}
  #allocation0 [shape = 'u32[]', space=smem, size = 0x4, offset = 0x4, fixed_abs, tag = 'smem constant byte address 0x4 - core index']
  #allocation1 [shape = 'u32[144,128]{1,0:T(1,128)}', space=vmem, size = 0x12000, scoped, tag = 'internal scratch']
  %s0 = inlined_call_operand.vmem [shape: bf16[2,18,18,40], index: 0, kind: input, shape index: {}]
  %s1 = inlined_call_operand.vmem [shape: bf16[9,40,128], index: 1, kind: input, shape index: {}]
  %s2 = inlined_call_operand.vmem [shape: f32[1,128], index: 2, kind: input, shape index: {}]
  %s3 = inlined_call_operand.vmem [shape: f32[2,256,32], index: 3, kind: input, shape index: {}]
  %s4 = inlined_call_operand.vmem [shape: bf16[256,96], index: 4, kind: input, shape index: {}]
  %s5 = inlined_call_operand.vmem [shape: f32[2,256,32], index: 5, kind: output, shape index: {0}]
  %s6 = inlined_call_operand.vmem [shape: f32[2,256,32], index: 6, kind: output, shape index: {1}]
  %7 = xla_tuple %s5, %s6
  %s8 = sld [smem:[#allocation0]]
  $region61: #{tpu_custom_call.1} parent=0
    _
  %s10 = ssub.s32 1, %s8
  %s11 = scalar_select 0, %s10, %s8
  loop: start=0, step=1, limit=4
  $region2: #{tpu_custom_call.1} parent=0 // loop_pre_header
    _
  $region3: #{tpu_custom_call.1} parent=0 // loop_header
    %s13 = sphi 0, %s17
    %p14 = scmp.ge.s32.totalorder %s13, 4
    %s20 = sphi 0, %s32
    %s21 = sphi 0, %s28
    %s22 = sphi 0, %s20
    %s23 = sphi 0, %s21
    %s24 = sphi 0, %s22
    %s25 = sphi 0, %s23
    %s35 = sphi 0, %s37
    %s38 = sphi 0, %s35
    %s39 = sphi 0, %s38
    %s55 = sphi 0, %s39
    %s59 = sphi 0, %s59
    %s61 = sphi 0, %s59
    %s62 = sphi 0, %s61
    %s76 = sphi 0, %s62
    %s80 = sphi 0, %s80
    %s82 = sphi 0, %s80
    %s83 = sphi 0, %s82
    %s97 = sphi 0, %s83
    %s105 = sphi 0, %s107
    %s108 = sphi 0, %s105
    %s109 = sphi 0, %s108
    %s125 = sphi 0, %s109
    %s131 = sphi 0, %s133
    %s134 = sphi 0, %s131
    %s135 = sphi 0, %s134
    %s151 = sphi 0, %s135
    %s159 = sphi 0, %s161
    %s162 = sphi 0, %s159
    %s163 = sphi 0, %s162
    %s179 = sphi 0, %s163
    %s187 = sphi 0, %s189
    %s190 = sphi 0, %s187
    %s191 = sphi 0, %s190
    %s207 = sphi 0, %s191
  $region4: #{tpu_custom_call.1} parent=0 // loop_header_branch
    %16 = sbr.rel (%p14) target = $region8
  $region5: #{tpu_custom_call.1} parent=0 // loop_body
    %s18 = ssub.s32 %s13, 1
    %s19 = ssub.s32 %s13, 2
    %s26 = sadd.s32 1, %s21
    %p27 = scmp.ge.s32.totalorder %s26, 1
    %s28 = scalar_select %p27, 0, %s26
    %s29 = sadd.s32 1, %s20
    %s30 = scalar_select %p27, %s29, %s20
    %p31 = scmp.ge.s32.totalorder %s30, 2
    %s32 = scalar_select %p31, 0, %s30
    %s33 = ssub.s32 %s20, %s32
    %p34 = scmp.eq.s32.totalorder %s33, 0
    %s36 = sadd.s32 %s35, 1
    %s37 = scalar_select %p34, %s35, %s36
    %p40 = pneg %p34
    %p41 = scmp.eq.s32.totalorder %s13, 1
    %p42 = por %p40, %p41
    %p43 = scmp.ne.s32.totalorder %s35, %s38
    %p44 = scmp.eq.s32.totalorder %s13, 0
    %p45 = por %p43, %p44
    %p46 = scmp.ne.s32.totalorder %s35, %s38
    %p47 = scmp.eq.s32.totalorder %s18, 1
    %p48 = por %p46, %p47
    %p49 = scmp.ne.s32.totalorder %s38, %s39
    %p50 = scmp.eq.s32.totalorder %s18, 0
    %p51 = por %p49, %p50
    %p52 = scmp.ne.s32.totalorder %s38, %s39
    %p53 = scmp.eq.s32.totalorder %s19, 1
    %p54 = por %p52, %p53
    %p56 = scmp.ne.s32.totalorder %s39, %s55
    %p57 = scmp.eq.s32.totalorder %s19, 0
    %p58 = por %p56, %p57
    %s60 = sadd.s32 %s59, 1
    %p63 = scmp.eq.s32.totalorder %s13, 1
    %p64 = scmp.ne.s32.totalorder %s59, %s61
    %p65 = scmp.eq.s32.totalorder %s13, 0
    %p66 = por %p64, %p65
    %p67 = scmp.ne.s32.totalorder %s59, %s61
    %p68 = scmp.eq.s32.totalorder %s18, 1
    %p69 = por %p67, %p68
    %p70 = scmp.ne.s32.totalorder %s61, %s62
    %p71 = scmp.eq.s32.totalorder %s18, 0
    %p72 = por %p70, %p71
    %p73 = scmp.ne.s32.totalorder %s61, %s62
    %p74 = scmp.eq.s32.totalorder %s19, 1
    %p75 = por %p73, %p74
    %p77 = scmp.ne.s32.totalorder %s62, %s76
    %p78 = scmp.eq.s32.totalorder %s19, 0
    %p79 = por %p77, %p78
    %s81 = sadd.s32 %s80, 1
    %p84 = scmp.eq.s32.totalorder %s13, 1
    %p85 = scmp.ne.s32.totalorder %s80, %s82
    %p86 = scmp.eq.s32.totalorder %s13, 0
    %p87 = por %p85, %p86
    %p88 = scmp.ne.s32.totalorder %s80, %s82
    %p89 = scmp.eq.s32.totalorder %s18, 1
    %p90 = por %p88, %p89
    %p91 = scmp.ne.s32.totalorder %s82, %s83
    %p92 = scmp.eq.s32.totalorder %s18, 0
    %p93 = por %p91, %p92
    %p94 = scmp.ne.s32.totalorder %s82, %s83
    %p95 = scmp.eq.s32.totalorder %s19, 1
    %p96 = por %p94, %p95
    %p98 = scmp.ne.s32.totalorder %s83, %s97
    %p99 = scmp.eq.s32.totalorder %s19, 0
    %p100 = por %p98, %p99
    %s101 = ssub.s32 %s20, %s32
    %s102 = ssub.s32 %s21, %s28
    %s103 = sor.u32 %s101, %s102
    %p104 = scmp.eq.s32.totalorder %s103, 0
    %s106 = sadd.s32 %s105, 1
    %s107 = scalar_select %p104, %s105, %s106
    %p110 = pneg %p104
    %p111 = scmp.eq.s32.totalorder %s13, 1
    %p112 = por %p110, %p111
    %p113 = scmp.ne.s32.totalorder %s105, %s108
    %p114 = scmp.eq.s32.totalorder %s13, 0
    %p115 = por %p113, %p114
    %p116 = scmp.ne.s32.totalorder %s105, %s108
    %p117 = scmp.eq.s32.totalorder %s18, 1
    %p118 = por %p116, %p117
    %p119 = scmp.ne.s32.totalorder %s108, %s109
    %p120 = scmp.eq.s32.totalorder %s18, 0
    %p121 = por %p119, %p120
    %p122 = scmp.ne.s32.totalorder %s108, %s109
    %p123 = scmp.eq.s32.totalorder %s19, 1
    %p124 = por %p122, %p123
    %p126 = scmp.ne.s32.totalorder %s109, %s125
    %p127 = scmp.eq.s32.totalorder %s19, 0
    %p128 = por %p126, %p127
    %s129 = ssub.s32 %s21, %s28
    %p130 = scmp.eq.s32.totalorder %s129, 0
    %s132 = sadd.s32 %s131, 1
    %s133 = scalar_select %p130, %s131, %s132
    %p136 = pneg %p130
    %p137 = scmp.eq.s32.totalorder %s13, 1
    %p138 = por %p136, %p137
    %p139 = scmp.ne.s32.totalorder %s131, %s134
    %p140 = scmp.eq.s32.totalorder %s13, 0
    %p141 = por %p139, %p140
    %p142 = scmp.ne.s32.totalorder %s131, %s134
    %p143 = scmp.eq.s32.totalorder %s18, 1
    %p144 = por %p142, %p143
    %p145 = scmp.ne.s32.totalorder %s134, %s135
    %p146 = scmp.eq.s32.totalorder %s18, 0
    %p147 = por %p145, %p146
    %p148 = scmp.ne.s32.totalorder %s134, %s135
    %p149 = scmp.eq.s32.totalorder %s19, 1
    %p150 = por %p148, %p149
    %p152 = scmp.ne.s32.totalorder %s135, %s151
    %p153 = scmp.eq.s32.totalorder %s19, 0
    %p154 = por %p152, %p153
    %s155 = ssub.s32 %s20, %s32
    %s156 = ssub.s32 %s21, %s28
    %s157 = sor.u32 %s155, %s156
    %p158 = scmp.eq.s32.totalorder %s157, 0
    %s160 = sadd.s32 %s159, 1
    %s161 = scalar_select %p158, %s159, %s160
    %p164 = pneg %p158
    %p165 = scmp.eq.s32.totalorder %s13, 1
    %p166 = por %p164, %p165
    %p167 = scmp.ne.s32.totalorder %s159, %s162
    %p168 = scmp.eq.s32.totalorder %s13, 0
    %p169 = por %p167, %p168
    %p170 = scmp.ne.s32.totalorder %s159, %s162
    %p171 = scmp.eq.s32.totalorder %s18, 1
    %p172 = por %p170, %p171
    %p173 = scmp.ne.s32.totalorder %s162, %s163
    %p174 = scmp.eq.s32.totalorder %s18, 0
    %p175 = por %p173, %p174
    %p176 = scmp.ne.s32.totalorder %s162, %s163
    %p177 = scmp.eq.s32.totalorder %s19, 1
    %p178 = por %p176, %p177
    %p180 = scmp.ne.s32.totalorder %s163, %s179
    %p181 = scmp.eq.s32.totalorder %s19, 0
    %p182 = por %p180, %p181
    %s183 = ssub.s32 %s20, %s32
    %s184 = ssub.s32 %s21, %s28
    %s185 = sor.u32 %s183, %s184
    %p186 = scmp.eq.s32.totalorder %s185, 0
    %s188 = sadd.s32 %s187, 1
    %s189 = scalar_select %p186, %s187, %s188
    %p192 = pneg %p186
    %p193 = scmp.eq.s32.totalorder %s13, 1
    %p194 = por %p192, %p193
    %p195 = scmp.ne.s32.totalorder %s187, %s190
    %p196 = scmp.eq.s32.totalorder %s13, 0
    %p197 = por %p195, %p196
    %p198 = scmp.ne.s32.totalorder %s187, %s190
    %p199 = scmp.eq.s32.totalorder %s18, 1
    %p200 = por %p198, %p199
    %p201 = scmp.ne.s32.totalorder %s190, %s191
    %p202 = scmp.eq.s32.totalorder %s18, 0
    %p203 = por %p201, %p202
    %p204 = scmp.ne.s32.totalorder %s190, %s191
    %p205 = scmp.eq.s32.totalorder %s19, 1
    %p206 = por %p204, %p205
    %p208 = scmp.ne.s32.totalorder %s191, %s207
    %p209 = scmp.eq.s32.totalorder %s19, 0
    %p210 = por %p208, %p209
    %p211 = scmp.le.s32.totalorder 1, %s13
    %p212 = scmp.lt.s32.totalorder %s13, 3
    %p213 = pnand %p211, %p212
    %p214 = pneg %p213
    // Predicated region
    $region9: #{tpu_custom_call.1} parent=5 // pred_check
      _
    $region10: #{tpu_custom_call.1} parent=5 // pred_check_branch
      %216 = sbr.rel (%p213) target = $region12
    $region11: #{tpu_custom_call.1} parent=5 // pred_region
      %s217 = ssub.s32 %s13, 1
      // Predicated region
      $region13: #{tpu_custom_call.1} parent=11 // pred_check
        %p218 = pneg %p72
      $region14: #{tpu_custom_call.1} parent=11 // pred_check_branch
        %220 = sbr.rel (%p218) target = $region16
      $region15: #{tpu_custom_call.1} parent=11 // pred_region
        _
      $region16: #{tpu_custom_call.1} parent=11 // pred_fallthru
        _
      // Predicated region
      $region17: #{tpu_custom_call.1} parent=11 // pred_check
        %p221 = pneg %p93
      $region18: #{tpu_custom_call.1} parent=11 // pred_check_branch
        %223 = sbr.rel (%p221) target = $region20
      $region19: #{tpu_custom_call.1} parent=11 // pred_region
        _
      $region20: #{tpu_custom_call.1} parent=11 // pred_fallthru
        _
      // Predicated region
      $region21: #{tpu_custom_call.1} parent=11 // pred_check
        %p224 = pneg %p147
      $region22: #{tpu_custom_call.1} parent=11 // pred_check_branch
        %226 = sbr.rel (%p224) target = $region24
      $region23: #{tpu_custom_call.1} parent=11 // pred_region
        %s227 = smul.u32 32, %s23
        %p228 = scmp.lt.s32.totalorder %s227, 31
        %s229 = scalar_select %p228, %s227, 31
        %s230 = smul.addr %s229, 4
        %s231 = scalar_lea.vmem %s4, %s230
        %s232 = smul.u32 32, %s23
      $region24: #{tpu_custom_call.1} parent=11 // pred_fallthru
        _
    $region12: #{tpu_custom_call.1} parent=5 // pred_fallthru
      _
    %p233 = scmp.lt.s32.totalorder %s13, 2
    // Predicated region
    $region25: #{tpu_custom_call.1} parent=5 // pred_check
      %p234 = pneg %p233
    $region26: #{tpu_custom_call.1} parent=5 // pred_check_branch
      %236 = sbr.rel (%p234) target = $region28
    $region27: #{tpu_custom_call.1} parent=5 // pred_region
      // Predicated region
      $region29: #{tpu_custom_call.1} parent=27 // pred_check
        %p237 = pneg %p45
      $region30: #{tpu_custom_call.1} parent=27 // pred_check_branch
        %239 = sbr.rel (%p237) target = $region32
      $region31: #{tpu_custom_call.1} parent=27 // pred_region
        %p240 = scmp.lt.s32.totalorder %s20, 1
        %s241 = scalar_select %p240, %s20, 1
        %s242 = smul.addr %s241, 54
        %s243 = smul.addr %s242, 4
        %s244 = scalar_lea.vmem %s0, %s243
      $region32: #{tpu_custom_call.1} parent=27 // pred_fallthru
        _
      // Predicated region
      $region33: #{tpu_custom_call.1} parent=27 // pred_check
        %p245 = pneg %p115
      $region34: #{tpu_custom_call.1} parent=27 // pred_check_branch
        %247 = sbr.rel (%p245) target = $region36
      $region35: #{tpu_custom_call.1} parent=27 // pred_region
        %s248 = smul.u32 32, %s21
        %p249 = scmp.lt.s32.totalorder %s20, 1
        %s250 = scalar_select %p249, %s20, 1
        %p251 = scmp.lt.s32.totalorder %s248, 31
        %s252 = scalar_select %p251, %s248, 31
        %s253 = smul.addr %s250, 32
        %s254 = sadd.s32 %s252, %s253
        %s255 = smul.addr %s254, 8
        %s256 = scalar_lea.vmem %s3, %s255
        %s257 = smul.u32 32, %s21
      $region36: #{tpu_custom_call.1} parent=27 // pred_fallthru
        _
    $region28: #{tpu_custom_call.1} parent=5 // pred_fallthru
      _
    %p258 = scmp.le.s32.totalorder 1, %s13
    %p259 = scmp.lt.s32.totalorder %s13, 3
    %p260 = pnand %p258, %p259
    %p261 = pneg %p260
    // Predicated region
    $region37: #{tpu_custom_call.1} parent=5 // pred_check
      _
    $region38: #{tpu_custom_call.1} parent=5 // pred_check_branch
      %263 = sbr.rel (%p260) target = $region40
    $region39: #{tpu_custom_call.1} parent=5 // pred_region
      %s264 = ssub.s32 %s13, 1
      %p265 = scmp.lt.s32.totalorder %s22, 1
      %s266 = scalar_select %p265, %s22, 1
      %s267 = smul.addr %s266, 54
      %s268 = smul.addr %s267, 4
      %s269 = scalar_lea.vmem %s0, %s268
      %p270 = pneg %p51
      %p271 = pneg %p48
      %p272 = pneg %p72
      %p273 = pneg %p69
      %p274 = pneg %p93
      %p275 = pneg %p90
      %s276 = smul.u32 32, %s23
      %p277 = scmp.lt.s32.totalorder %s22, 1
      %s278 = scalar_select %p277, %s22, 1
      %p279 = scmp.lt.s32.totalorder %s276, 31
      %s280 = scalar_select %p279, %s276, 31
      %s281 = smul.addr %s278, 32
      %s282 = sadd.s32 %s280, %s281
      %s283 = smul.addr %s282, 8
      %s284 = scalar_lea.vmem %s3, %s283
      %p285 = pneg %p121
      %p286 = pneg %p118
      %s287 = smul.u32 32, %s23
      %p288 = scmp.lt.s32.totalorder %s287, 31
      %s289 = scalar_select %p288, %s287, 31
      %s290 = smul.addr %s289, 4
      %s291 = scalar_lea.vmem %s4, %s290
      %p292 = pneg %p147
      %p293 = pneg %p144
      %p294 = pneg %p175
      %p295 = pneg %p172
      %s296 = smul.u32 32, %s23
      %p297 = scmp.lt.s32.totalorder %s22, 1
      %s298 = scalar_select %p297, %s22, 1
      %p299 = scmp.lt.s32.totalorder %s296, 31
      %s300 = scalar_select %p299, %s296, 31
      %s301 = smul.addr %s298, 32
      %s302 = sadd.s32 %s300, %s301
      %s303 = smul.addr %s302, 8
      %s304 = scalar_lea.vmem %s5, %s303
      %p305 = pneg %p203
      %p306 = pneg %p200
      %s307 = smul.u32 32, %s23
      %p308 = scmp.lt.s32.totalorder %s22, 1
      %s309 = scalar_select %p308, %s22, 1
      %p310 = scmp.lt.s32.totalorder %s307, 31
      %s311 = scalar_select %p310, %s307, 31
      %s312 = smul.addr %s309, 32
      %s313 = sadd.s32 %s311, %s312
      %s314 = smul.addr %s313, 8
      %s315 = scalar_lea.vmem %s6, %s314
      %p316 = scmp.lt.s32.totalorder %s22, 1
      %s317 = scalar_select %p316, %s22, 1
      %s318 = smul.addr %s317, 54
      %s319 = smul.addr %s318, 4
      %s320 = scalar_lea.vmem %s0, %s319
      %s321 = smul.u32 32, %s23
      %p322 = scmp.lt.s32.totalorder %s22, 1
      %s323 = scalar_select %p322, %s22, 1
      %p324 = scmp.lt.s32.totalorder %s321, 31
      %s325 = scalar_select %p324, %s321, 31
      %s326 = smul.addr %s323, 32
      %s327 = sadd.s32 %s325, %s326
      %s328 = smul.addr %s327, 8
      %s329 = scalar_lea.vmem %s3, %s328
      %s330 = smul.u32 32, %s23
      %s331 = smul.u32 32, %s23
      %p332 = scmp.lt.s32.totalorder %s331, 31
      %s333 = scalar_select %p332, %s331, 31
      %s334 = smul.addr %s333, 4
      %s335 = scalar_lea.vmem %s4, %s334
      %s336 = smul.u32 32, %s23
      %s337 = smul.u32 32, %s23
      %p338 = scmp.lt.s32.totalorder %s22, 1
      %s339 = scalar_select %p338, %s22, 1
      %p340 = scmp.lt.s32.totalorder %s337, 31
      %s341 = scalar_select %p340, %s337, 31
      %s342 = smul.addr %s339, 32
      %s343 = sadd.s32 %s341, %s342
      %s344 = smul.addr %s343, 8
      %s345 = scalar_lea.vmem %s5, %s344
      %s346 = smul.u32 32, %s23
      %s347 = smul.u32 32, %s23
      %p348 = scmp.lt.s32.totalorder %s22, 1
      %s349 = scalar_select %p348, %s22, 1
      %p350 = scmp.lt.s32.totalorder %s347, 31
      %s351 = scalar_select %p350, %s347, 31
      %s352 = smul.addr %s349, 32
      %s353 = sadd.s32 %s351, %s352
      %s354 = smul.addr %s353, 8
      %s355 = scalar_lea.vmem %s6, %s354
      %s356 = smul.u32 32, %s23
      %s358 = smul.u32 %s23, 16
      %s359 = smul.u32 %s358, 3
      %s360 = smul.addr %s359, 4
      %s361 = scalar_lea.vmem %s320, %s360
      %v362 = vld [vmem:[%s361] sm:$0xf]
      %v363 = vld [vmem:[%s361 + $0x4] sm:$0xf]
      %v364 = vld [vmem:[%s361 + $0xc] sm:$0xf]
      %v365 = vld [vmem:[%s361 + $0x10] sm:$0xf]
      %v366 = vld [vmem:[%s361 + $0x18] sm:$0xf]
      %v367 = vld [vmem:[%s361 + $0x1c] sm:$0xf]
      %v368 = vld [vmem:[%s361 + $0x24] sm:$0xf]
      %v369 = vld [vmem:[%s361 + $0x28] sm:$0xf]
      %v370 = vld [vmem:[%s361 + $0x30] sm:$0xf]
      %v371 = vld [vmem:[%s361 + $0x34] sm:$0xf]
      %v372 = vld [vmem:[%s361 + $0x3c] sm:$0xf]
      %v373 = vld [vmem:[%s361 + $0x40] sm:$0xf]
      %v374 = vld [vmem:[%s361 + $0x48] sm:$0xf]
      %v375 = vld [vmem:[%s361 + $0x4c] sm:$0xf]
      %v376 = vld [vmem:[%s361 + $0x54] sm:$0xf]
      %v377 = vld [vmem:[%s361 + $0x58] sm:$0xf]
      %v378 = vld [vmem:[%s361 + $0x60] sm:$0xf]
      %v379 = vld [vmem:[%s361 + $0x64] sm:$0xf]
      %v380 = vld [vmem:[%s361 + $0x6c] sm:$0xf]
      %v381 = vld [vmem:[%s361 + $0x70] sm:$0xf]
      %v382 = vld [vmem:[%s361 + $0x78] sm:$0xf]
      %v383 = vld [vmem:[%s361 + $0x7c] sm:$0xf]
      %v384 = vld [vmem:[%s361 + $0x84] sm:$0xf]
      %v385 = vld [vmem:[%s361 + $0x88] sm:$0xf]
      %v386 = vld [vmem:[%s361 + $0x90] sm:$0xf]
      %v387 = vld [vmem:[%s361 + $0x94] sm:$0xf]
      %v388 = vld [vmem:[%s361 + $0x9c] sm:$0xf]
      %v389 = vld [vmem:[%s361 + $0xa0] sm:$0xf]
      %v390 = vld [vmem:[%s361 + $0xa8] sm:$0xf]
      %v391 = vld [vmem:[%s361 + $0xac] sm:$0xf]
      %v392 = vld [vmem:[%s361 + $0xb4] sm:$0xf]
      %v393 = vld [vmem:[%s361 + $0xb8] sm:$0xf]
      %v394 = vld [vmem:[%s1] sm:$0xf]
      %v395 = vld [vmem:[%s1 + $0x4] sm:$0xf]
      %v396 = vld [vmem:[%s1 + $0x8] sm:$0xf]
      %v397 = vld [vmem:[%s1 + $0xc] sm:$0xf]
      %v398 = vld [vmem:[%s1 + $0x10] sm:$0xf]
      %v399 = vld [vmem:[%s361 + $0x8] sm:$0x1]
      %v400 = vld [vmem:[%s361 + $0x14] sm:$0x1]
      %v401 = vld [vmem:[%s361 + $0x20] sm:$0x1]
      %v402 = vld [vmem:[%s361 + $0x2c] sm:$0x1]
      %v403 = vld [vmem:[%s361 + $0x38] sm:$0x1]
      %v404 = vld [vmem:[%s361 + $0x44] sm:$0x1]
      %v405 = vld [vmem:[%s361 + $0x50] sm:$0x1]
      %v406 = vld [vmem:[%s361 + $0x5c] sm:$0x1]
      %v407 = vld [vmem:[%s361 + $0x68] sm:$0x1]
      %v408 = vld [vmem:[%s361 + $0x74] sm:$0x1]
      %v409 = vld [vmem:[%s361 + $0x80] sm:$0x1]
      %v410 = vld [vmem:[%s361 + $0x8c] sm:$0x1]
      %v411 = vld [vmem:[%s361 + $0x98] sm:$0x1]
      %v412 = vld [vmem:[%s361 + $0xa4] sm:$0x1]
      %v413 = vld [vmem:[%s361 + $0xb0] sm:$0x1]
      %v414 = vld [vmem:[%s361 + $0xbc] sm:$0x1]
      %vm415 = vsmask.f32 3328
      %vm416 = vsmask.f32 7440
      %vm417 = vmor %vm415, %vm416
      %v419 = vshrl.u32 %v362, 16
      %v421 = vrot.slane %v419, 4
      %v422 = vshll.u32 %v362, 16
      %v424 = vrot.slane %v422, 5
      %v425 = vor.u32 %v421, %v424
      %v426 = vrot.slane %v425, 4
      %v428 = vshll.u32 %v363, 16
      %v430 = vrot.slane %v428, 5
      %v431 = vsel %vm417, %v426, %v430
      %v432 = vshrl.u32 %v363, 16
      %v434 = vrot.slane %v432, 4
      %v435 = vor.u32 %v434, %v430
      %v436 = vrot.slane %v435, 4
      %v438 = vshll.u32 %v399, 16
      %v440 = vrot.slane %v438, 5
      %v441 = vsel %vm417, %v436, %v440
      %v443 = vshrl.u32 %v364, 16
      %v445 = vrot.slane %v443, 4
      %v446 = vshll.u32 %v364, 16
      %v448 = vrot.slane %v446, 5
      %v449 = vor.u32 %v445, %v448
      %v450 = vrot.slane %v449, 4
      %v452 = vshll.u32 %v365, 16
      %v454 = vrot.slane %v452, 5
      %v455 = vsel %vm417, %v450, %v454
      %v456 = vshrl.u32 %v365, 16
      %v458 = vrot.slane %v456, 4
      %v459 = vor.u32 %v458, %v454
      %v460 = vrot.slane %v459, 4
      %v462 = vshll.u32 %v400, 16
      %v464 = vrot.slane %v462, 5
      %v465 = vsel %vm417, %v460, %v464
      %v467 = vshrl.u32 %v366, 16
      %v469 = vrot.slane %v467, 4
      %v470 = vshll.u32 %v366, 16
      %v472 = vrot.slane %v470, 5
      %v473 = vor.u32 %v469, %v472
      %v474 = vrot.slane %v473, 4
      %v476 = vshll.u32 %v367, 16
      %v478 = vrot.slane %v476, 5
      %v479 = vsel %vm417, %v474, %v478
      %v480 = vshrl.u32 %v367, 16
      %v482 = vrot.slane %v480, 4
      %v483 = vor.u32 %v482, %v478
      %v484 = vrot.slane %v483, 4
      %v486 = vshll.u32 %v401, 16
      %v488 = vrot.slane %v486, 5
      %v489 = vsel %vm417, %v484, %v488
      %v491 = vshrl.u32 %v368, 16
      %v493 = vrot.slane %v491, 4
      %v494 = vshll.u32 %v368, 16
      %v496 = vrot.slane %v494, 5
      %v497 = vor.u32 %v493, %v496
      %v498 = vrot.slane %v497, 4
      %v500 = vshll.u32 %v369, 16
      %v502 = vrot.slane %v500, 5
      %v503 = vsel %vm417, %v498, %v502
      %v504 = vshrl.u32 %v369, 16
      %v506 = vrot.slane %v504, 4
      %v507 = vor.u32 %v506, %v502
      %v508 = vrot.slane %v507, 4
      %v510 = vshll.u32 %v402, 16
      %v512 = vrot.slane %v510, 5
      %v513 = vsel %vm417, %v508, %v512
      %v515 = vshrl.u32 %v370, 16
      %v517 = vrot.slane %v515, 4
      %v518 = vshll.u32 %v370, 16
      %v520 = vrot.slane %v518, 5
      %v521 = vor.u32 %v517, %v520
      %v522 = vrot.slane %v521, 4
      %v524 = vshll.u32 %v371, 16
      %v526 = vrot.slane %v524, 5
      %v527 = vsel %vm417, %v522, %v526
      %v528 = vshrl.u32 %v371, 16
      %v530 = vrot.slane %v528, 4
      %v531 = vor.u32 %v530, %v526
      %v532 = vrot.slane %v531, 4
      %v534 = vshll.u32 %v403, 16
      %v536 = vrot.slane %v534, 5
      %v537 = vsel %vm417, %v532, %v536
      %v539 = vshrl.u32 %v372, 16
      %v541 = vrot.slane %v539, 4
      %v542 = vshll.u32 %v372, 16
      %v544 = vrot.slane %v542, 5
      %v545 = vor.u32 %v541, %v544
      %v546 = vrot.slane %v545, 4
      %v548 = vshll.u32 %v373, 16
      %v550 = vrot.slane %v548, 5
      %v551 = vsel %vm417, %v546, %v550
      %v552 = vshrl.u32 %v373, 16
      %v554 = vrot.slane %v552, 4
      %v555 = vor.u32 %v554, %v550
      %v556 = vrot.slane %v555, 4
      %v558 = vshll.u32 %v404, 16
      %v560 = vrot.slane %v558, 5
      %v561 = vsel %vm417, %v556, %v560
      %v563 = vshrl.u32 %v374, 16
      %v565 = vrot.slane %v563, 4
      %v566 = vshll.u32 %v374, 16
      %v568 = vrot.slane %v566, 5
      %v569 = vor.u32 %v565, %v568
      %v570 = vrot.slane %v569, 4
      %v572 = vshll.u32 %v375, 16
      %v574 = vrot.slane %v572, 5
      %v575 = vsel %vm417, %v570, %v574
      %v576 = vshrl.u32 %v375, 16
      %v578 = vrot.slane %v576, 4
      %v579 = vor.u32 %v578, %v574
      %v580 = vrot.slane %v579, 4
      %v582 = vshll.u32 %v405, 16
      %v584 = vrot.slane %v582, 5
      %v585 = vsel %vm417, %v580, %v584
      %v587 = vshrl.u32 %v376, 16
      %v589 = vrot.slane %v587, 4
      %v590 = vshll.u32 %v376, 16
      %v592 = vrot.slane %v590, 5
      %v593 = vor.u32 %v589, %v592
      %v594 = vrot.slane %v593, 4
      %v596 = vshll.u32 %v377, 16
      %v598 = vrot.slane %v596, 5
      %v599 = vsel %vm417, %v594, %v598
      %v600 = vshrl.u32 %v377, 16
      %v602 = vrot.slane %v600, 4
      %v603 = vor.u32 %v602, %v598
      %v604 = vrot.slane %v603, 4
      %v606 = vshll.u32 %v406, 16
      %v608 = vrot.slane %v606, 5
      %v609 = vsel %vm417, %v604, %v608
      %v611 = vshrl.u32 %v378, 16
      %v613 = vrot.slane %v611, 4
      %v614 = vshll.u32 %v378, 16
      %v616 = vrot.slane %v614, 5
      %v617 = vor.u32 %v613, %v616
      %v618 = vrot.slane %v617, 4
      %v620 = vshll.u32 %v379, 16
      %v622 = vrot.slane %v620, 5
      %v623 = vsel %vm417, %v618, %v622
      %v624 = vshrl.u32 %v379, 16
      %v626 = vrot.slane %v624, 4
      %v627 = vor.u32 %v626, %v622
      %v628 = vrot.slane %v627, 4
      %v630 = vshll.u32 %v407, 16
      %v632 = vrot.slane %v630, 5
      %v633 = vsel %vm417, %v628, %v632
      %v635 = vshrl.u32 %v380, 16
      %v637 = vrot.slane %v635, 4
      %v638 = vshll.u32 %v380, 16
      %v640 = vrot.slane %v638, 5
      %v641 = vor.u32 %v637, %v640
      %v642 = vrot.slane %v641, 4
      %v644 = vshll.u32 %v381, 16
      %v646 = vrot.slane %v644, 5
      %v647 = vsel %vm417, %v642, %v646
      %v648 = vshrl.u32 %v381, 16
      %v650 = vrot.slane %v648, 4
      %v651 = vor.u32 %v650, %v646
      %v652 = vrot.slane %v651, 4
      %v654 = vshll.u32 %v408, 16
      %v656 = vrot.slane %v654, 5
      %v657 = vsel %vm417, %v652, %v656
      %v659 = vshrl.u32 %v382, 16
      %v661 = vrot.slane %v659, 4
      %v662 = vshll.u32 %v382, 16
      %v664 = vrot.slane %v662, 5
      %v665 = vor.u32 %v661, %v664
      %v666 = vrot.slane %v665, 4
      %v668 = vshll.u32 %v383, 16
      %v670 = vrot.slane %v668, 5
      %v671 = vsel %vm417, %v666, %v670
      %v672 = vshrl.u32 %v383, 16
      %v674 = vrot.slane %v672, 4
      %v675 = vor.u32 %v674, %v670
      %v676 = vrot.slane %v675, 4
      %v678 = vshll.u32 %v409, 16
      %v680 = vrot.slane %v678, 5
      %v681 = vsel %vm417, %v676, %v680
      %v683 = vshrl.u32 %v384, 16
      %v685 = vrot.slane %v683, 4
      %v686 = vshll.u32 %v384, 16
      %v688 = vrot.slane %v686, 5
      %v689 = vor.u32 %v685, %v688
      %v690 = vrot.slane %v689, 4
      %v692 = vshll.u32 %v385, 16
      %v694 = vrot.slane %v692, 5
      %v695 = vsel %vm417, %v690, %v694
      %v696 = vshrl.u32 %v385, 16
      %v698 = vrot.slane %v696, 4
      %v699 = vor.u32 %v698, %v694
      %v700 = vrot.slane %v699, 4
      %v702 = vshll.u32 %v410, 16
      %v704 = vrot.slane %v702, 5
      %v705 = vsel %vm417, %v700, %v704
      %v707 = vshrl.u32 %v386, 16
      %v709 = vrot.slane %v707, 4
      %v710 = vshll.u32 %v386, 16
      %v712 = vrot.slane %v710, 5
      %v713 = vor.u32 %v709, %v712
      %v714 = vrot.slane %v713, 4
      %v716 = vshll.u32 %v387, 16
      %v718 = vrot.slane %v716, 5
      %v719 = vsel %vm417, %v714, %v718
      %v720 = vshrl.u32 %v387, 16
      %v722 = vrot.slane %v720, 4
      %v723 = vor.u32 %v722, %v718
      %v724 = vrot.slane %v723, 4
      %v726 = vshll.u32 %v411, 16
      %v728 = vrot.slane %v726, 5
      %v729 = vsel %vm417, %v724, %v728
      %v731 = vshrl.u32 %v388, 16
      %v733 = vrot.slane %v731, 4
      %v734 = vshll.u32 %v388, 16
      %v736 = vrot.slane %v734, 5
      %v737 = vor.u32 %v733, %v736
      %v738 = vrot.slane %v737, 4
      %v740 = vshll.u32 %v389, 16
      %v742 = vrot.slane %v740, 5
      %v743 = vsel %vm417, %v738, %v742
      %v744 = vshrl.u32 %v389, 16
      %v746 = vrot.slane %v744, 4
      %v747 = vor.u32 %v746, %v742
      %v748 = vrot.slane %v747, 4
      %v750 = vshll.u32 %v412, 16
      %v752 = vrot.slane %v750, 5
      %v753 = vsel %vm417, %v748, %v752
      %v755 = vshrl.u32 %v390, 16
      %v757 = vrot.slane %v755, 4
      %v758 = vshll.u32 %v390, 16
      %v760 = vrot.slane %v758, 5
      %v761 = vor.u32 %v757, %v760
      %v762 = vrot.slane %v761, 4
      %v764 = vshll.u32 %v391, 16
      %v766 = vrot.slane %v764, 5
      %v767 = vsel %vm417, %v762, %v766
      %v768 = vshrl.u32 %v391, 16
      %v770 = vrot.slane %v768, 4
      %v771 = vor.u32 %v770, %v766
      %v772 = vrot.slane %v771, 4
      %v774 = vshll.u32 %v413, 16
      %v776 = vrot.slane %v774, 5
      %v777 = vsel %vm417, %v772, %v776
      %v779 = vshrl.u32 %v392, 16
      %v781 = vrot.slane %v779, 4
      %v782 = vshll.u32 %v392, 16
      %v784 = vrot.slane %v782, 5
      %v785 = vor.u32 %v781, %v784
      %v786 = vrot.slane %v785, 4
      %v788 = vshll.u32 %v393, 16
      %v790 = vrot.slane %v788, 5
      %v791 = vsel %vm417, %v786, %v790
      %v792 = vshrl.u32 %v393, 16
      %v794 = vrot.slane %v792, 4
      %v795 = vor.u32 %v794, %v790
      %v796 = vrot.slane %v795, 4
      %v798 = vshll.u32 %v414, 16
      %v800 = vrot.slane %v798, 5
      %v801 = vsel %vm417, %v796, %v800
      %s802 = scalar_lea.vmem %s1, 20
      %v803 = vld [vmem:[%s802] sm:$0xf]
      %v804 = vld [vmem:[%s802 + $0x4] sm:$0xf]
      %v805 = vld [vmem:[%s802 + $0x8] sm:$0xf]
      %v806 = vld [vmem:[%s802 + $0xc] sm:$0xf]
      %v807 = vld [vmem:[%s802 + $0x10] sm:$0xf]
      %v808 = vunpack.c.l.b16 %v431
      %v809 = vunpack.c.l.b16 %v441
      %v810 = vunpack.c.l.b16 %v455
      %v811 = vunpack.c.l.b16 %v465
      %v812 = vunpack.c.l.b16 %v479
      %v813 = vunpack.c.l.b16 %v489
      %v814 = vunpack.c.l.b16 %v503
      %v815 = vunpack.c.l.b16 %v513
      %v816 = vunpack.c.l.b16 %v527
      %v817 = vunpack.c.l.b16 %v537
      %v818 = vunpack.c.l.b16 %v551
      %v819 = vunpack.c.l.b16 %v561
      %v820 = vunpack.c.l.b16 %v575
      %v821 = vunpack.c.l.b16 %v585
      %v822 = vunpack.c.l.b16 %v599
      %v823 = vunpack.c.l.b16 %v609
      %v824 = vunpack.c.l.b16 %v623
      %v825 = vunpack.c.l.b16 %v633
      %v826 = vunpack.c.l.b16 %v647
      %v827 = vunpack.c.l.b16 %v657
      %v828 = vunpack.c.l.b16 %v671
      %v829 = vunpack.c.l.b16 %v681
      %v830 = vunpack.c.l.b16 %v695
      %v831 = vunpack.c.l.b16 %v705
      %v832 = vunpack.c.l.b16 %v719
      %v833 = vunpack.c.l.b16 %v729
      %v834 = vunpack.c.l.b16 %v743
      %v835 = vunpack.c.l.b16 %v753
      %v836 = vunpack.c.l.b16 %v767
      %v837 = vunpack.c.l.b16 %v777
      %v838 = vunpack.c.l.b16 %v791
      %v839 = vunpack.c.l.b16 %v801
      %v840 = vpack.c.b16 %v809, %v808
      %v841 = vpack.c.b16 %v811, %v810
      %v842 = vpack.c.b16 %v813, %v812
      %v843 = vpack.c.b16 %v815, %v814
      %v844 = vpack.c.b16 %v817, %v816
      %v845 = vpack.c.b16 %v819, %v818
      %v846 = vpack.c.b16 %v821, %v820
      %v847 = vpack.c.b16 %v823, %v822
      %v848 = vpack.c.b16 %v825, %v824
      %v849 = vpack.c.b16 %v827, %v826
      %v850 = vpack.c.b16 %v829, %v828
      %v851 = vpack.c.b16 %v831, %v830
      %v852 = vpack.c.b16 %v833, %v832
      %v853 = vpack.c.b16 %v835, %v834
      %v854 = vpack.c.b16 %v837, %v836
      %v855 = vpack.c.b16 %v839, %v838
      %v861 = vunpack.c.l.b16 %v803
      %v862 = vunpack.c.l.b16 %v804
      %v863 = vunpack.c.l.b16 %v805
      %v864 = vunpack.c.l.b16 %v806
      %v865 = vunpack.c.l.b16 %v807
      %v866 = vpack.c.b16 %v862, %v861
      %v867 = vpack.c.b16 %v864, %v863
      %v868 = vpack.c.b16 %v865, %v865
      %vm871 = vcmask 326656
      %v873 = vsel %vm871, %v840, 0
      %v876 = vsel %vm871, %v841, 0
      %v879 = vsel %vm871, %v842, 0
      %v882 = vsel %vm871, %v843, 0
      %v885 = vsel %vm871, %v844, 0
      %v888 = vsel %vm871, %v845, 0
      %v891 = vsel %vm871, %v846, 0
      %v894 = vsel %vm871, %v847, 0
      %v897 = vsel %vm871, %v848, 0
      %v900 = vsel %vm871, %v849, 0
      %v903 = vsel %vm871, %v850, 0
      %v906 = vsel %vm871, %v851, 0
      %v909 = vsel %vm871, %v852, 0
      %v912 = vsel %vm871, %v853, 0
      %v915 = vsel %vm871, %v854, 0
      %v918 = vsel %vm871, %v855, 0
      %vm920 = vcmask 1043456
      %v922 = vsel %vm920, %v868, 0
      %924 = vmatprep.subr.bf16.mxu0 0
      %925 = vmatpush1.bf16.msra.mxu0 %v866
      %926 = vmatprep.subr.bf16.mxu0 0
      %927 = vmatpush1.bf16.msra.mxu0 %v867
      %928 = vmatprep.subr.bf16.mxu0 0
      %929 = vmatpush1.bf16.msra.mxu0 %v922
      %930 = vmatprep.subr.bf16.mxu0 0
      %931 = vmatpush1.bf16.msra.mxu0 0
      %932 = vmatprep.subr.bf16.mxu0 0
      %933 = vmatpush1.bf16.msra.mxu0 0
      %934 = vmatprep.subr.bf16.mxu0 0
      %935 = vmatpush1.bf16.msra.mxu0 0
      %936 = vmatprep.subr.bf16.mxu0 0
      %937 = vmatpush1.bf16.msra.mxu0 0
      %938 = vmatprep.subr.bf16.mxu0 0
      %939 = vmatpush1.bf16.msra.mxu0 0
      %940 = vmatprep.subr.bf16.mxu0 0
      %941 = vmatpush1.bf16.msra.mxu0 0
      %942 = vmatprep.subr.bf16.mxu0 0
      %943 = vmatpush1.bf16.msra.mxu0 0
      %944 = vmatprep.subr.bf16.mxu0 0
      %945 = vmatpush1.bf16.msra.mxu0 0
      %946 = vmatprep.subr.bf16.mxu0 0
      %947 = vmatpush1.bf16.msra.mxu0 0
      %948 = vmatprep.subr.bf16.mxu0 0
      %949 = vmatpush1.bf16.msra.mxu0 0
      %950 = vmatprep.subr.bf16.mxu0 0
      %951 = vmatpush1.bf16.msra.mxu0 0
      %952 = vmatprep.subr.bf16.mxu0 0
      %953 = vmatpush1.bf16.msra.mxu0 0
      %954 = vmatprep.subr.bf16.mxu0 0
      %955 = vmatpush1.bf16.msra.mxu0 0
      %956 = vmatprep.mubr.bf16.mxu0 0
      %957 = vmatmul.mubr.bf16.gmra.mrb[0].mxu0 %v873
      %v958 = vpop.f32.mrb[0].mxu0
      %v959 = vadd.f32 0.0, %v958
      %v960 = vpop.f32.mrb[0].mxu0
      %v961 = vpop.f32.mrb[0].mxu0
      %v962 = vadd.f32 0.0, %v961
      %v963 = vpop.f32.mrb[0].mxu0
      %964 = vmatprep.mubr.bf16.mxu0 0
      %965 = vmatmul.mubr.bf16.gmra.mrb[0].mxu0 %v876
      %v966 = vpop.f32.mrb[0].mxu0
      %v967 = vadd.f32 0.0, %v966
      %v968 = vpop.f32.mrb[0].mxu0
      %v969 = vpop.f32.mrb[0].mxu0
      %v970 = vadd.f32 0.0, %v969
      %v971 = vpop.f32.mrb[0].mxu0
      %972 = vmatprep.mubr.bf16.mxu0 0
      %973 = vmatmul.mubr.bf16.gmra.mrb[0].mxu0 %v879
      %v974 = vpop.f32.mrb[0].mxu0
      %v975 = vadd.f32 0.0, %v974
      %v976 = vpop.f32.mrb[0].mxu0
      %v977 = vpop.f32.mrb[0].mxu0
      %v978 = vadd.f32 0.0, %v977
      %v979 = vpop.f32.mrb[0].mxu0
      %980 = vmatprep.mubr.bf16.mxu0 0
      %981 = vmatmul.mubr.bf16.gmra.mrb[0].mxu0 %v882
      %v982 = vpop.f32.mrb[0].mxu0
      %v983 = vadd.f32 0.0, %v982
      %v984 = vpop.f32.mrb[0].mxu0
      %v985 = vpop.f32.mrb[0].mxu0
      %v986 = vadd.f32 0.0, %v985
      %v987 = vpop.f32.mrb[0].mxu0
      %988 = vmatprep.mubr.bf16.mxu0 0
      %989 = vmatmul.mubr.bf16.gmra.mrb[0].mxu0 %v885
      %v990 = vpop.f32.mrb[0].mxu0
      %v991 = vadd.f32 0.0, %v990
      %v992 = vpop.f32.mrb[0].mxu0
      %v993 = vpop.f32.mrb[0].mxu0
      %v994 = vadd.f32 0.0, %v993
      %v995 = vpop.f32.mrb[0].mxu0
      %996 = vmatprep.mubr.bf16.mxu0 0
      %997 = vmatmul.mubr.bf16.gmra.mrb[0].mxu0 %v888
      %v998 = vpop.f32.mrb[0].mxu0
      %v999 = vadd.f32 0.0, %v998
      %v1000 = vpop.f32.mrb[0].mxu0
      %v1001 = vpop.f32.mrb[0].mxu0
      %v1002 = vadd.f32 0.0, %v1001
      %v1003 = vpop.f32.mrb[0].mxu0
      %1004 = vmatprep.mubr.bf16.mxu0 0
      %1005 = vmatmul.mubr.bf16.gmra.mrb[0].mxu0 %v891
      %v1006 = vpop.f32.mrb[0].mxu0
      %v1007 = vadd.f32 0.0, %v1006
      %v1008 = vpop.f32.mrb[0].mxu0
      %v1009 = vpop.f32.mrb[0].mxu0
      %v1010 = vadd.f32 0.0, %v1009
      %v1011 = vpop.f32.mrb[0].mxu0
      %1012 = vmatprep.mubr.bf16.mxu0 0
      %1013 = vmatmul.mubr.bf16.gmra.mrb[0].mxu0 %v894
      %v1014 = vpop.f32.mrb[0].mxu0
      %v1015 = vadd.f32 0.0, %v1014
      %v1016 = vpop.f32.mrb[0].mxu0
      %v1017 = vpop.f32.mrb[0].mxu0
      %v1018 = vadd.f32 0.0, %v1017
      %v1019 = vpop.f32.mrb[0].mxu0
      %1020 = vmatprep.mubr.bf16.mxu0 0
      %1021 = vmatmul.mubr.bf16.gmra.mrb[0].mxu0 %v897
      %v1022 = vpop.f32.mrb[0].mxu0
      %v1023 = vadd.f32 0.0, %v1022
      %v1024 = vpop.f32.mrb[0].mxu0
      %v1025 = vpop.f32.mrb[0].mxu0
      %v1026 = vadd.f32 0.0, %v1025
      %v1027 = vpop.f32.mrb[0].mxu0
      %1028 = vmatprep.mubr.bf16.mxu0 0
      %1029 = vmatmul.mubr.bf16.gmra.mrb[0].mxu0 %v900
      %v1030 = vpop.f32.mrb[0].mxu0
      %v1031 = vadd.f32 0.0, %v1030
      %v1032 = vpop.f32.mrb[0].mxu0
      %v1033 = vpop.f32.mrb[0].mxu0
      %v1034 = vadd.f32 0.0, %v1033
      %v1035 = vpop.f32.mrb[0].mxu0
      %1036 = vmatprep.mubr.bf16.mxu0 0
      %1037 = vmatmul.mubr.bf16.gmra.mrb[0].mxu0 %v903
      %v1038 = vpop.f32.mrb[0].mxu0
      %v1039 = vadd.f32 0.0, %v1038
      %v1040 = vpop.f32.mrb[0].mxu0
      %v1041 = vpop.f32.mrb[0].mxu0
      %v1042 = vadd.f32 0.0, %v1041
      %v1043 = vpop.f32.mrb[0].mxu0
      %1044 = vmatprep.mubr.bf16.mxu0 0
      %1045 = vmatmul.mubr.bf16.gmra.mrb[0].mxu0 %v906
      %v1046 = vpop.f32.mrb[0].mxu0
      %v1047 = vadd.f32 0.0, %v1046
      %v1048 = vpop.f32.mrb[0].mxu0
      %v1049 = vpop.f32.mrb[0].mxu0
      %v1050 = vadd.f32 0.0, %v1049
      %v1051 = vpop.f32.mrb[0].mxu0
      %1052 = vmatprep.mubr.bf16.mxu0 0
      %1053 = vmatmul.mubr.bf16.gmra.mrb[0].mxu0 %v909
      %v1054 = vpop.f32.mrb[0].mxu0
      %v1055 = vadd.f32 0.0, %v1054
      %v1056 = vpop.f32.mrb[0].mxu0
      %v1057 = vpop.f32.mrb[0].mxu0
      %v1058 = vadd.f32 0.0, %v1057
      %v1059 = vpop.f32.mrb[0].mxu0
      %1060 = vmatprep.mubr.bf16.mxu0 0
      %1061 = vmatmul.mubr.bf16.gmra.mrb[0].mxu0 %v912
      %v1062 = vpop.f32.mrb[0].mxu0
      %v1063 = vadd.f32 0.0, %v1062
      %v1064 = vpop.f32.mrb[0].mxu0
      %v1065 = vpop.f32.mrb[0].mxu0
      %v1066 = vadd.f32 0.0, %v1065
      %v1067 = vpop.f32.mrb[0].mxu0
      %1068 = vmatprep.mubr.bf16.mxu0 0
      %1069 = vmatmul.mubr.bf16.gmra.mrb[0].mxu0 %v915
      %v1070 = vpop.f32.mrb[0].mxu0
      %v1071 = vadd.f32 0.0, %v1070
      %v1072 = vpop.f32.mrb[0].mxu0
      %v1073 = vpop.f32.mrb[0].mxu0
      %v1074 = vadd.f32 0.0, %v1073
      %v1075 = vpop.f32.mrb[0].mxu0
      %1076 = vmatprep.mubr.bf16.mxu0 0
      %1077 = vmatmul.mubr.bf16.gmra.mrb[0].mxu0 %v918
      %v1078 = vpop.f32.mrb[0].mxu0
      %v1079 = vadd.f32 0.0, %v1078
      %v1080 = vpop.f32.mrb[0].mxu0
      %v1081 = vpop.f32.mrb[0].mxu0
      %v1082 = vadd.f32 0.0, %v1081
      %v1083 = vpop.f32.mrb[0].mxu0
      %1084 = vdwg.mxu0
      %v1117 = vunpack.c.l.b16 %v362
      %v1118 = vunpack.c.l.b16 %v363
      %v1119 = vunpack.c.l.b16 %v364
      %v1120 = vunpack.c.l.b16 %v365
      %v1121 = vunpack.c.l.b16 %v366
      %v1122 = vunpack.c.l.b16 %v367
      %v1123 = vunpack.c.l.b16 %v368
      %v1124 = vunpack.c.l.b16 %v369
      %v1125 = vunpack.c.l.b16 %v370
      %v1126 = vunpack.c.l.b16 %v371
      %v1127 = vunpack.c.l.b16 %v372
      %v1128 = vunpack.c.l.b16 %v373
      %v1129 = vunpack.c.l.b16 %v374
      %v1130 = vunpack.c.l.b16 %v375
      %v1131 = vunpack.c.l.b16 %v376
      %v1132 = vunpack.c.l.b16 %v377
      %v1133 = vunpack.c.l.b16 %v378
      %v1134 = vunpack.c.l.b16 %v379
      %v1135 = vunpack.c.l.b16 %v380
      %v1136 = vunpack.c.l.b16 %v381
      %v1137 = vunpack.c.l.b16 %v382
      %v1138 = vunpack.c.l.b16 %v383
      %v1139 = vunpack.c.l.b16 %v384
      %v1140 = vunpack.c.l.b16 %v385
      %v1141 = vunpack.c.l.b16 %v386
      %v1142 = vunpack.c.l.b16 %v387
      %v1143 = vunpack.c.l.b16 %v388
      %v1144 = vunpack.c.l.b16 %v389
      %v1145 = vunpack.c.l.b16 %v390
      %v1146 = vunpack.c.l.b16 %v391
      %v1147 = vunpack.c.l.b16 %v392
      %v1148 = vunpack.c.l.b16 %v393
      %v1149 = vpack.c.b16 %v1118, %v1117
      %v1150 = vpack.c.b16 %v1120, %v1119
      %v1151 = vpack.c.b16 %v1122, %v1121
      %v1152 = vpack.c.b16 %v1124, %v1123
      %v1153 = vpack.c.b16 %v1126, %v1125
      %v1154 = vpack.c.b16 %v1128, %v1127
      %v1155 = vpack.c.b16 %v1130, %v1129
      %v1156 = vpack.c.b16 %v1132, %v1131
      %v1157 = vpack.c.b16 %v1134, %v1133
      %v1158 = vpack.c.b16 %v1136, %v1135
      %v1159 = vpack.c.b16 %v1138, %v1137
      %v1160 = vpack.c.b16 %v1140, %v1139
      %v1161 = vpack.c.b16 %v1142, %v1141
      %v1162 = vpack.c.b16 %v1144, %v1143
      %v1163 = vpack.c.b16 %v1146, %v1145
      %v1164 = vpack.c.b16 %v1148, %v1147
      %v1170 = vunpack.c.l.b16 %v394
      %v1171 = vunpack.c.l.b16 %v395
      %v1172 = vunpack.c.l.b16 %v396
      %v1173 = vunpack.c.l.b16 %v397
      %v1174 = vunpack.c.l.b16 %v398
      %v1175 = vpack.c.b16 %v1171, %v1170
      %v1176 = vpack.c.b16 %v1173, %v1172
      %v1177 = vpack.c.b16 %v1174, %v1174
      %v1181 = vsel %vm871, %v1149, 0
      %v1184 = vsel %vm871, %v1150, 0
      %v1187 = vsel %vm871, %v1151, 0
      %v1190 = vsel %vm871, %v1152, 0
      %v1193 = vsel %vm871, %v1153, 0
      %v1196 = vsel %vm871, %v1154, 0
      %v1199 = vsel %vm871, %v1155, 0
      %v1202 = vsel %vm871, %v1156, 0
      %v1205 = vsel %vm871, %v1157, 0
      %v1208 = vsel %vm871, %v1158, 0
      %v1211 = vsel %vm871, %v1159, 0
      %v1214 = vsel %vm871, %v1160, 0
      %v1217 = vsel %vm871, %v1161, 0
      %v1220 = vsel %vm871, %v1162, 0
      %v1223 = vsel %vm871, %v1163, 0
      %v1226 = vsel %vm871, %v1164, 0
      %v1229 = vsel %vm920, %v1177, 0
      %1231 = vmatprep.subr.bf16.mxu0 0
      %1232 = vmatpush1.bf16.msra.mxu0 %v1175
      %1233 = vmatprep.subr.bf16.mxu0 0
      %1234 = vmatpush1.bf16.msra.mxu0 %v1176
      %1235 = vmatprep.subr.bf16.mxu0 0
      %1236 = vmatpush1.bf16.msra.mxu0 %v1229
      %1237 = vmatprep.subr.bf16.mxu0 0
      %1238 = vmatpush1.bf16.msra.mxu0 0
      %1239 = vmatprep.subr.bf16.mxu0 0
      %1240 = vmatpush1.bf16.msra.mxu0 0
      %1241 = vmatprep.subr.bf16.mxu0 0
      %1242 = vmatpush1.bf16.msra.mxu0 0
      %1243 = vmatprep.subr.bf16.mxu0 0
      %1244 = vmatpush1.bf16.msra.mxu0 0
      %1245 = vmatprep.subr.bf16.mxu0 0
      %1246 = vmatpush1.bf16.msra.mxu0 0
      %1247 = vmatprep.subr.bf16.mxu0 0
      %1248 = vmatpush1.bf16.msra.mxu0 0
      %1249 = vmatprep.subr.bf16.mxu0 0
      %1250 = vmatpush1.bf16.msra.mxu0 0
      %1251 = vmatprep.subr.bf16.mxu0 0
      %1252 = vmatpush1.bf16.msra.mxu0 0
      %1253 = vmatprep.subr.bf16.mxu0 0
      %1254 = vmatpush1.bf16.msra.mxu0 0
      %1255 = vmatprep.subr.bf16.mxu0 0
      %1256 = vmatpush1.bf16.msra.mxu0 0
      %1257 = vmatprep.subr.bf16.mxu0 0
      %1258 = vmatpush1.bf16.msra.mxu0 0
      %1259 = vmatprep.subr.bf16.mxu0 0
      %1260 = vmatpush1.bf16.msra.mxu0 0
      %1261 = vmatprep.subr.bf16.mxu0 0
      %1262 = vmatpush1.bf16.msra.mxu0 0
      %1263 = vmatprep.mubr.bf16.mxu0 0
      %1264 = vmatmul.mubr.bf16.gmra.mrb[0].mxu0 %v1181
      %v1265 = vpop.f32.mrb[0].mxu0
      %v1266 = vadd.f32 %v959, %v1265
      %v1267 = vpop.f32.mrb[0].mxu0
      %v1268 = vpop.f32.mrb[0].mxu0
      %v1269 = vadd.f32 %v962, %v1268
      %v1270 = vpop.f32.mrb[0].mxu0
      %1271 = vmatprep.mubr.bf16.mxu0 0
      %1272 = vmatmul.mubr.bf16.gmra.mrb[0].mxu0 %v1184
      %v1273 = vpop.f32.mrb[0].mxu0
      %v1274 = vadd.f32 %v967, %v1273
      %v1275 = vpop.f32.mrb[0].mxu0
      %v1276 = vpop.f32.mrb[0].mxu0
      %v1277 = vadd.f32 %v970, %v1276
      %v1278 = vpop.f32.mrb[0].mxu0
      %1279 = vmatprep.mubr.bf16.mxu0 0
      %1280 = vmatmul.mubr.bf16.gmra.mrb[0].mxu0 %v1187
      %v1281 = vpop.f32.mrb[0].mxu0
      %v1282 = vadd.f32 %v975, %v1281
      %v1283 = vpop.f32.mrb[0].mxu0
      %v1284 = vpop.f32.mrb[0].mxu0
      %v1285 = vadd.f32 %v978, %v1284
      %v1286 = vpop.f32.mrb[0].mxu0
      %1287 = vmatprep.mubr.bf16.mxu0 0
      %1288 = vmatmul.mubr.bf16.gmra.mrb[0].mxu0 %v1190
      %v1289 = vpop.f32.mrb[0].mxu0
      %v1290 = vadd.f32 %v983, %v1289
      %v1291 = vpop.f32.mrb[0].mxu0
      %v1292 = vpop.f32.mrb[0].mxu0
      %v1293 = vadd.f32 %v986, %v1292
      %v1294 = vpop.f32.mrb[0].mxu0
      %1295 = vmatprep.mubr.bf16.mxu0 0
      %1296 = vmatmul.mubr.bf16.gmra.mrb[0].mxu0 %v1193
      %v1297 = vpop.f32.mrb[0].mxu0
      %v1298 = vadd.f32 %v991, %v1297
      %v1299 = vpop.f32.mrb[0].mxu0
      %v1300 = vpop.f32.mrb[0].mxu0
      %v1301 = vadd.f32 %v994, %v1300
      %v1302 = vpop.f32.mrb[0].mxu0
      %1303 = vmatprep.mubr.bf16.mxu0 0
      %1304 = vmatmul.mubr.bf16.gmra.mrb[0].mxu0 %v1196
      %v1305 = vpop.f32.mrb[0].mxu0
      %v1306 = vadd.f32 %v999, %v1305
      %v1307 = vpop.f32.mrb[0].mxu0
      %v1308 = vpop.f32.mrb[0].mxu0
      %v1309 = vadd.f32 %v1002, %v1308
      %v1310 = vpop.f32.mrb[0].mxu0
      %1311 = vmatprep.mubr.bf16.mxu0 0
      %1312 = vmatmul.mubr.bf16.gmra.mrb[0].mxu0 %v1199
      %v1313 = vpop.f32.mrb[0].mxu0
      %v1314 = vadd.f32 %v1007, %v1313
      %v1315 = vpop.f32.mrb[0].mxu0
      %v1316 = vpop.f32.mrb[0].mxu0
      %v1317 = vadd.f32 %v1010, %v1316
      %v1318 = vpop.f32.mrb[0].mxu0
      %1319 = vmatprep.mubr.bf16.mxu0 0
      %1320 = vmatmul.mubr.bf16.gmra.mrb[0].mxu0 %v1202
      %v1321 = vpop.f32.mrb[0].mxu0
      %v1322 = vadd.f32 %v1015, %v1321
      %v1323 = vpop.f32.mrb[0].mxu0
      %v1324 = vpop.f32.mrb[0].mxu0
      %v1325 = vadd.f32 %v1018, %v1324
      %v1326 = vpop.f32.mrb[0].mxu0
      %1327 = vmatprep.mubr.bf16.mxu0 0
      %1328 = vmatmul.mubr.bf16.gmra.mrb[0].mxu0 %v1205
      %v1329 = vpop.f32.mrb[0].mxu0
      %v1330 = vadd.f32 %v1023, %v1329
      %v1331 = vpop.f32.mrb[0].mxu0
      %v1332 = vpop.f32.mrb[0].mxu0
      %v1333 = vadd.f32 %v1026, %v1332
      %v1334 = vpop.f32.mrb[0].mxu0
      %1335 = vmatprep.mubr.bf16.mxu0 0
      %1336 = vmatmul.mubr.bf16.gmra.mrb[0].mxu0 %v1208
      %v1337 = vpop.f32.mrb[0].mxu0
      %v1338 = vadd.f32 %v1031, %v1337
      %v1339 = vpop.f32.mrb[0].mxu0
      %v1340 = vpop.f32.mrb[0].mxu0
      %v1341 = vadd.f32 %v1034, %v1340
      %v1342 = vpop.f32.mrb[0].mxu0
      %1343 = vmatprep.mubr.bf16.mxu0 0
      %1344 = vmatmul.mubr.bf16.gmra.mrb[0].mxu0 %v1211
      %v1345 = vpop.f32.mrb[0].mxu0
      %v1346 = vadd.f32 %v1039, %v1345
      %v1347 = vpop.f32.mrb[0].mxu0
      %v1348 = vpop.f32.mrb[0].mxu0
      %v1349 = vadd.f32 %v1042, %v1348
      %v1350 = vpop.f32.mrb[0].mxu0
      %1351 = vmatprep.mubr.bf16.mxu0 0
      %1352 = vmatmul.mubr.bf16.gmra.mrb[0].mxu0 %v1214
      %v1353 = vpop.f32.mrb[0].mxu0
      %v1354 = vadd.f32 %v1047, %v1353
      %v1355 = vpop.f32.mrb[0].mxu0
      %v1356 = vpop.f32.mrb[0].mxu0
      %v1357 = vadd.f32 %v1050, %v1356
      %v1358 = vpop.f32.mrb[0].mxu0
      %1359 = vmatprep.mubr.bf16.mxu0 0
      %1360 = vmatmul.mubr.bf16.gmra.mrb[0].mxu0 %v1217
      %v1361 = vpop.f32.mrb[0].mxu0
      %v1362 = vadd.f32 %v1055, %v1361
      %v1363 = vpop.f32.mrb[0].mxu0
      %v1364 = vpop.f32.mrb[0].mxu0
      %v1365 = vadd.f32 %v1058, %v1364
      %v1366 = vpop.f32.mrb[0].mxu0
      %1367 = vmatprep.mubr.bf16.mxu0 0
      %1368 = vmatmul.mubr.bf16.gmra.mrb[0].mxu0 %v1220
      %v1369 = vpop.f32.mrb[0].mxu0
      %v1370 = vadd.f32 %v1063, %v1369
      %v1371 = vpop.f32.mrb[0].mxu0
      %v1372 = vpop.f32.mrb[0].mxu0
      %v1373 = vadd.f32 %v1066, %v1372
      %v1374 = vpop.f32.mrb[0].mxu0
      %1375 = vmatprep.mubr.bf16.mxu0 0
      %1376 = vmatmul.mubr.bf16.gmra.mrb[0].mxu0 %v1223
      %v1377 = vpop.f32.mrb[0].mxu0
      %v1378 = vadd.f32 %v1071, %v1377
      %v1379 = vpop.f32.mrb[0].mxu0
      %v1380 = vpop.f32.mrb[0].mxu0
      %v1381 = vadd.f32 %v1074, %v1380
      %v1382 = vpop.f32.mrb[0].mxu0
      %1383 = vmatprep.mubr.bf16.mxu0 0
      %1384 = vmatmul.mubr.bf16.gmra.mrb[0].mxu0 %v1226
      %v1385 = vpop.f32.mrb[0].mxu0
      %v1386 = vadd.f32 %v1079, %v1385
      %v1387 = vpop.f32.mrb[0].mxu0
      %v1388 = vpop.f32.mrb[0].mxu0
      %v1389 = vadd.f32 %v1082, %v1388
      %v1390 = vpop.f32.mrb[0].mxu0
      %1391 = vdwg.mxu0
      %v1392 = vld [vmem:[%s361] sm:$0xe]
      %v1393 = vld [vmem:[%s361 + $0xc] sm:$0xe]
      %v1394 = vld [vmem:[%s361 + $0x18] sm:$0xe]
      %v1395 = vld [vmem:[%s361 + $0x24] sm:$0xe]
      %v1396 = vld [vmem:[%s361 + $0x30] sm:$0xe]
      %v1397 = vld [vmem:[%s361 + $0x3c] sm:$0xe]
      %v1398 = vld [vmem:[%s361 + $0x48] sm:$0xe]
      %v1399 = vld [vmem:[%s361 + $0x54] sm:$0xe]
      %v1400 = vld [vmem:[%s361 + $0x60] sm:$0xe]
      %v1401 = vld [vmem:[%s361 + $0x6c] sm:$0xe]
      %v1402 = vld [vmem:[%s361 + $0x78] sm:$0xe]
      %v1403 = vld [vmem:[%s361 + $0x84] sm:$0xe]
      %v1404 = vld [vmem:[%s361 + $0x90] sm:$0xe]
      %v1405 = vld [vmem:[%s361 + $0x9c] sm:$0xe]
      %v1406 = vld [vmem:[%s361 + $0xa8] sm:$0xe]
      %v1407 = vld [vmem:[%s361 + $0xb4] sm:$0xe]
      %vm1440 = vcmask 1042432
      %vm1441 = vcmask 1046532
      %vm1442 = vmor %vm1440, %vm1441
      %v1443 = vrot.slane %v1392, 5
      %v1444 = vrot.slane %v1443, 4
      %v1445 = vrot.slane %v363, 5
      %v1446 = vsel %vm1442, %v1444, %v1445
      %v1447 = vrot.slane %v1445, 4
      %v1448 = vrot.slane %v399, 5
      %v1449 = vsel %vm1442, %v1447, %v1448
      %v1450 = vrot.slane %v1393, 5
      %v1451 = vrot.slane %v1450, 4
      %v1452 = vrot.slane %v365, 5
      %v1453 = vsel %vm1442, %v1451, %v1452
      %v1454 = vrot.slane %v1452, 4
      %v1455 = vrot.slane %v400, 5
      %v1456 = vsel %vm1442, %v1454, %v1455
      %v1457 = vrot.slane %v1394, 5
      %v1458 = vrot.slane %v1457, 4
      %v1459 = vrot.slane %v367, 5
      %v1460 = vsel %vm1442, %v1458, %v1459
      %v1461 = vrot.slane %v1459, 4
      %v1462 = vrot.slane %v401, 5
      %v1463 = vsel %vm1442, %v1461, %v1462
      %v1464 = vrot.slane %v1395, 5
      %v1465 = vrot.slane %v1464, 4
      %v1466 = vrot.slane %v369, 5
      %v1467 = vsel %vm1442, %v1465, %v1466
      %v1468 = vrot.slane %v1466, 4
      %v1469 = vrot.slane %v402, 5
      %v1470 = vsel %vm1442, %v1468, %v1469
      %v1471 = vrot.slane %v1396, 5
      %v1472 = vrot.slane %v1471, 4
      %v1473 = vrot.slane %v371, 5
      %v1474 = vsel %vm1442, %v1472, %v1473
      %v1475 = vrot.slane %v1473, 4
      %v1476 = vrot.slane %v403, 5
      %v1477 = vsel %vm1442, %v1475, %v1476
      %v1478 = vrot.slane %v1397, 5
      %v1479 = vrot.slane %v1478, 4
      %v1480 = vrot.slane %v373, 5
      %v1481 = vsel %vm1442, %v1479, %v1480
      %v1482 = vrot.slane %v1480, 4
      %v1483 = vrot.slane %v404, 5
      %v1484 = vsel %vm1442, %v1482, %v1483
      %v1485 = vrot.slane %v1398, 5
      %v1486 = vrot.slane %v1485, 4
      %v1487 = vrot.slane %v375, 5
      %v1488 = vsel %vm1442, %v1486, %v1487
      %v1489 = vrot.slane %v1487, 4
      %v1490 = vrot.slane %v405, 5
      %v1491 = vsel %vm1442, %v1489, %v1490
      %v1492 = vrot.slane %v1399, 5
      %v1493 = vrot.slane %v1492, 4
      %v1494 = vrot.slane %v377, 5
      %v1495 = vsel %vm1442, %v1493, %v1494
      %v1496 = vrot.slane %v1494, 4
      %v1497 = vrot.slane %v406, 5
      %v1498 = vsel %vm1442, %v1496, %v1497
      %v1499 = vrot.slane %v1400, 5
      %v1500 = vrot.slane %v1499, 4
      %v1501 = vrot.slane %v379, 5
      %v1502 = vsel %vm1442, %v1500, %v1501
      %v1503 = vrot.slane %v1501, 4
      %v1504 = vrot.slane %v407, 5
      %v1505 = vsel %vm1442, %v1503, %v1504
      %v1506 = vrot.slane %v1401, 5
      %v1507 = vrot.slane %v1506, 4
      %v1508 = vrot.slane %v381, 5
      %v1509 = vsel %vm1442, %v1507, %v1508
      %v1510 = vrot.slane %v1508, 4
      %v1511 = vrot.slane %v408, 5
      %v1512 = vsel %vm1442, %v1510, %v1511
      %v1513 = vrot.slane %v1402, 5
      %v1514 = vrot.slane %v1513, 4
      %v1515 = vrot.slane %v383, 5
      %v1516 = vsel %vm1442, %v1514, %v1515
      %v1517 = vrot.slane %v1515, 4
      %v1518 = vrot.slane %v409, 5
      %v1519 = vsel %vm1442, %v1517, %v1518
      %v1520 = vrot.slane %v1403, 5
      %v1521 = vrot.slane %v1520, 4
      %v1522 = vrot.slane %v385, 5
      %v1523 = vsel %vm1442, %v1521, %v1522
      %v1524 = vrot.slane %v1522, 4
      %v1525 = vrot.slane %v410, 5
      %v1526 = vsel %vm1442, %v1524, %v1525
      %v1527 = vrot.slane %v1404, 5
      %v1528 = vrot.slane %v1527, 4
      %v1529 = vrot.slane %v387, 5
      %v1530 = vsel %vm1442, %v1528, %v1529
      %v1531 = vrot.slane %v1529, 4
      %v1532 = vrot.slane %v411, 5
      %v1533 = vsel %vm1442, %v1531, %v1532
      %v1534 = vrot.slane %v1405, 5
      %v1535 = vrot.slane %v1534, 4
      %v1536 = vrot.slane %v389, 5
      %v1537 = vsel %vm1442, %v1535, %v1536
      %v1538 = vrot.slane %v1536, 4
      %v1539 = vrot.slane %v412, 5
      %v1540 = vsel %vm1442, %v1538, %v1539
      %v1541 = vrot.slane %v1406, 5
      %v1542 = vrot.slane %v1541, 4
      %v1543 = vrot.slane %v391, 5
      %v1544 = vsel %vm1442, %v1542, %v1543
      %v1545 = vrot.slane %v1543, 4
      %v1546 = vrot.slane %v413, 5
      %v1547 = vsel %vm1442, %v1545, %v1546
      %v1548 = vrot.slane %v1407, 5
      %v1549 = vrot.slane %v1548, 4
      %v1550 = vrot.slane %v393, 5
      %v1551 = vsel %vm1442, %v1549, %v1550
      %v1552 = vrot.slane %v1550, 4
      %v1553 = vrot.slane %v414, 5
      %v1554 = vsel %vm1442, %v1552, %v1553
      %s1555 = scalar_lea.vmem %s1, 40
      %v1556 = vld [vmem:[%s1555] sm:$0xf]
      %v1557 = vld [vmem:[%s1555 + $0x4] sm:$0xf]
      %v1558 = vld [vmem:[%s1555 + $0x8] sm:$0xf]
      %v1559 = vld [vmem:[%s1555 + $0xc] sm:$0xf]
      %v1560 = vld [vmem:[%s1555 + $0x10] sm:$0xf]
      %v1561 = vunpack.c.l.b16 %v1446
      %v1562 = vunpack.c.l.b16 %v1449
      %v1563 = vunpack.c.l.b16 %v1453
      %v1564 = vunpack.c.l.b16 %v1456
      %v1565 = vunpack.c.l.b16 %v1460
      %v1566 = vunpack.c.l.b16 %v1463
      %v1567 = vunpack.c.l.b16 %v1467
      %v1568 = vunpack.c.l.b16 %v1470
      %v1569 = vunpack.c.l.b16 %v1474
      %v1570 = vunpack.c.l.b16 %v1477
      %v1571 = vunpack.c.l.b16 %v1481
      %v1572 = vunpack.c.l.b16 %v1484
      %v1573 = vunpack.c.l.b16 %v1488
      %v1574 = vunpack.c.l.b16 %v1491
      %v1575 = vunpack.c.l.b16 %v1495
      %v1576 = vunpack.c.l.b16 %v1498
      %v1577 = vunpack.c.l.b16 %v1502
      %v1578 = vunpack.c.l.b16 %v1505
      %v1579 = vunpack.c.l.b16 %v1509
      %v1580 = vunpack.c.l.b16 %v1512
      %v1581 = vunpack.c.l.b16 %v1516
      %v1582 = vunpack.c.l.b16 %v1519
      %v1583 = vunpack.c.l.b16 %v1523
      %v1584 = vunpack.c.l.b16 %v1526
      %v1585 = vunpack.c.l.b16 %v1530
      %v1586 = vunpack.c.l.b16 %v1533
      %v1587 = vunpack.c.l.b16 %v1537
      %v1588 = vunpack.c.l.b16 %v1540
      %v1589 = vunpack.c.l.b16 %v1544
      %v1590 = vunpack.c.l.b16 %v1547
      %v1591 = vunpack.c.l.b16 %v1551
      %v1592 = vunpack.c.l.b16 %v1554
      %v1593 = vpack.c.b16 %v1562, %v1561
      %v1594 = vpack.c.b16 %v1564, %v1563
      %v1595 = vpack.c.b16 %v1566, %v1565
      %v1596 = vpack.c.b16 %v1568, %v1567
      %v1597 = vpack.c.b16 %v1570, %v1569
      %v1598 = vpack.c.b16 %v1572, %v1571
      %v1599 = vpack.c.b16 %v1574, %v1573
      %v1600 = vpack.c.b16 %v1576, %v1575
      %v1601 = vpack.c.b16 %v1578, %v1577
      %v1602 = vpack.c.b16 %v1580, %v1579
      %v1603 = vpack.c.b16 %v1582, %v1581
      %v1604 = vpack.c.b16 %v1584, %v1583
      %v1605 = vpack.c.b16 %v1586, %v1585
      %v1606 = vpack.c.b16 %v1588, %v1587
      %v1607 = vpack.c.b16 %v1590, %v1589
      %v1608 = vpack.c.b16 %v1592, %v1591
      %v1614 = vunpack.c.l.b16 %v1556
      %v1615 = vunpack.c.l.b16 %v1557
      %v1616 = vunpack.c.l.b16 %v1558
      %v1617 = vunpack.c.l.b16 %v1559
      %v1618 = vunpack.c.l.b16 %v1560
      %v1619 = vpack.c.b16 %v1615, %v1614
      %v1620 = vpack.c.b16 %v1617, %v1616
      %v1621 = vpack.c.b16 %v1618, %v1618
      %v1625 = vsel %vm871, %v1593, 0
      %v1628 = vsel %vm871, %v1594, 0
      %v1631 = vsel %vm871, %v1595, 0
      %v1634 = vsel %vm871, %v1596, 0
      %v1637 = vsel %vm871, %v1597, 0
      %v1640 = vsel %vm871, %v1598, 0
      %v1643 = vsel %vm871, %v1599, 0
      %v1646 = vsel %vm871, %v1600, 0
      %v1649 = vsel %vm871, %v1601, 0
      %v1652 = vsel %vm871, %v1602, 0
      %v1655 = vsel %vm871, %v1603, 0
      %v1658 = vsel %vm871, %v1604, 0
      %v1661 = vsel %vm871, %v1605, 0
      %v1664 = vsel %vm871, %v1606, 0
      %v1667 = vsel %vm871, %v1607, 0
      %v1670 = vsel %vm871, %v1608, 0
      %v1673 = vsel %vm920, %v1621, 0
      %1675 = vmatprep.subr.bf16.mxu0 0
      %1676 = vmatpush1.bf16.msra.mxu0 %v1619
      %1677 = vmatprep.subr.bf16.mxu0 0
      %1678 = vmatpush1.bf16.msra.mxu0 %v1620
      %1679 = vmatprep.subr.bf16.mxu0 0
      %1680 = vmatpush1.bf16.msra.mxu0 %v1673
      %1681 = vmatprep.subr.bf16.mxu0 0
      %1682 = vmatpush1.bf16.msra.mxu0 0
      %1683 = vmatprep.subr.bf16.mxu0 0
      %1684 = vmatpush1.bf16.msra.mxu0 0
      %1685 = vmatprep.subr.bf16.mxu0 0
      %1686 = vmatpush1.bf16.msra.mxu0 0
      %1687 = vmatprep.subr.bf16.mxu0 0
      %1688 = vmatpush1.bf16.msra.mxu0 0
      %1689 = vmatprep.subr.bf16.mxu0 0
      %1690 = vmatpush1.bf16.msra.mxu0 0
      %1691 = vmatprep.subr.bf16.mxu0 0
      %1692 = vmatpush1.bf16.msra.mxu0 0
      %1693 = vmatprep.subr.bf16.mxu0 0
      %1694 = vmatpush1.bf16.msra.mxu0 0
      %1695 = vmatprep.subr.bf16.mxu0 0
      %1696 = vmatpush1.bf16.msra.mxu0 0
      %1697 = vmatprep.subr.bf16.mxu0 0
      %1698 = vmatpush1.bf16.msra.mxu0 0
      %1699 = vmatprep.subr.bf16.mxu0 0
      %1700 = vmatpush1.bf16.msra.mxu0 0
      %1701 = vmatprep.subr.bf16.mxu0 0
      %1702 = vmatpush1.bf16.msra.mxu0 0
      %1703 = vmatprep.subr.bf16.mxu0 0
      %1704 = vmatpush1.bf16.msra.mxu0 0
      %1705 = vmatprep.subr.bf16.mxu0 0
      %1706 = vmatpush1.bf16.msra.mxu0 0
      %1707 = vmatprep.mubr.bf16.mxu0 0
      %1708 = vmatmul.mubr.bf16.gmra.mrb[0].mxu0 %v1625
      %v1709 = vpop.f32.mrb[0].mxu0
      %v1710 = vadd.f32 0.0, %v1709
      %v1711 = vpop.f32.mrb[0].mxu0
      %v1712 = vpop.f32.mrb[0].mxu0
      %v1713 = vadd.f32 0.0, %v1712
      %v1714 = vpop.f32.mrb[0].mxu0
      %1715 = vmatprep.mubr.bf16.mxu0 0
      %1716 = vmatmul.mubr.bf16.gmra.mrb[0].mxu0 %v1628
      %v1717 = vpop.f32.mrb[0].mxu0
      %v1718 = vadd.f32 0.0, %v1717
      %v1719 = vpop.f32.mrb[0].mxu0
      %v1720 = vpop.f32.mrb[0].mxu0
      %v1721 = vadd.f32 0.0, %v1720
      %v1722 = vpop.f32.mrb[0].mxu0
      %1723 = vmatprep.mubr.bf16.mxu0 0
      %1724 = vmatmul.mubr.bf16.gmra.mrb[0].mxu0 %v1631
      %v1725 = vpop.f32.mrb[0].mxu0
      %v1726 = vadd.f32 0.0, %v1725
      %v1727 = vpop.f32.mrb[0].mxu0
      %v1728 = vpop.f32.mrb[0].mxu0
      %v1729 = vadd.f32 0.0, %v1728
      %v1730 = vpop.f32.mrb[0].mxu0
      %1731 = vmatprep.mubr.bf16.mxu0 0
      %1732 = vmatmul.mubr.bf16.gmra.mrb[0].mxu0 %v1634
      %v1733 = vpop.f32.mrb[0].mxu0
      %v1734 = vadd.f32 0.0, %v1733
      %v1735 = vpop.f32.mrb[0].mxu0
      %v1736 = vpop.f32.mrb[0].mxu0
      %v1737 = vadd.f32 0.0, %v1736
      %v1738 = vpop.f32.mrb[0].mxu0
      %1739 = vmatprep.mubr.bf16.mxu0 0
      %1740 = vmatmul.mubr.bf16.gmra.mrb[0].mxu0 %v1637
      %v1741 = vpop.f32.mrb[0].mxu0
      %v1742 = vadd.f32 0.0, %v1741
      %v1743 = vpop.f32.mrb[0].mxu0
      %v1744 = vpop.f32.mrb[0].mxu0
      %v1745 = vadd.f32 0.0, %v1744
      %v1746 = vpop.f32.mrb[0].mxu0
      %1747 = vmatprep.mubr.bf16.mxu0 0
      %1748 = vmatmul.mubr.bf16.gmra.mrb[0].mxu0 %v1640
      %v1749 = vpop.f32.mrb[0].mxu0
      %v1750 = vadd.f32 0.0, %v1749
      %v1751 = vpop.f32.mrb[0].mxu0
      %v1752 = vpop.f32.mrb[0].mxu0
      %v1753 = vadd.f32 0.0, %v1752
      %v1754 = vpop.f32.mrb[0].mxu0
      %1755 = vmatprep.mubr.bf16.mxu0 0
      %1756 = vmatmul.mubr.bf16.gmra.mrb[0].mxu0 %v1643
      %v1757 = vpop.f32.mrb[0].mxu0
      %v1758 = vadd.f32 0.0, %v1757
      %v1759 = vpop.f32.mrb[0].mxu0
      %v1760 = vpop.f32.mrb[0].mxu0
      %v1761 = vadd.f32 0.0, %v1760
      %v1762 = vpop.f32.mrb[0].mxu0
      %1763 = vmatprep.mubr.bf16.mxu0 0
      %1764 = vmatmul.mubr.bf16.gmra.mrb[0].mxu0 %v1646
      %v1765 = vpop.f32.mrb[0].mxu0
      %v1766 = vadd.f32 0.0, %v1765
      %v1767 = vpop.f32.mrb[0].mxu0
      %v1768 = vpop.f32.mrb[0].mxu0
      %v1769 = vadd.f32 0.0, %v1768
      %v1770 = vpop.f32.mrb[0].mxu0
      %1771 = vmatprep.mubr.bf16.mxu0 0
      %1772 = vmatmul.mubr.bf16.gmra.mrb[0].mxu0 %v1649
      %v1773 = vpop.f32.mrb[0].mxu0
      %v1774 = vadd.f32 0.0, %v1773
      %v1775 = vpop.f32.mrb[0].mxu0
      %v1776 = vpop.f32.mrb[0].mxu0
      %v1777 = vadd.f32 0.0, %v1776
      %v1778 = vpop.f32.mrb[0].mxu0
      %1779 = vmatprep.mubr.bf16.mxu0 0
      %1780 = vmatmul.mubr.bf16.gmra.mrb[0].mxu0 %v1652
      %v1781 = vpop.f32.mrb[0].mxu0
      %v1782 = vadd.f32 0.0, %v1781
      %v1783 = vpop.f32.mrb[0].mxu0
      %v1784 = vpop.f32.mrb[0].mxu0
      %v1785 = vadd.f32 0.0, %v1784
      %v1786 = vpop.f32.mrb[0].mxu0
      %1787 = vmatprep.mubr.bf16.mxu0 0
      %1788 = vmatmul.mubr.bf16.gmra.mrb[0].mxu0 %v1655
      %v1789 = vpop.f32.mrb[0].mxu0
      %v1790 = vadd.f32 0.0, %v1789
      %v1791 = vpop.f32.mrb[0].mxu0
      %v1792 = vpop.f32.mrb[0].mxu0
      %v1793 = vadd.f32 0.0, %v1792
      %v1794 = vpop.f32.mrb[0].mxu0
      %1795 = vmatprep.mubr.bf16.mxu0 0
      %1796 = vmatmul.mubr.bf16.gmra.mrb[0].mxu0 %v1658
      %v1797 = vpop.f32.mrb[0].mxu0
      %v1798 = vadd.f32 0.0, %v1797
      %v1799 = vpop.f32.mrb[0].mxu0
      %v1800 = vpop.f32.mrb[0].mxu0
      %v1801 = vadd.f32 0.0, %v1800
      %v1802 = vpop.f32.mrb[0].mxu0
      %1803 = vmatprep.mubr.bf16.mxu0 0
      %1804 = vmatmul.mubr.bf16.gmra.mrb[0].mxu0 %v1661
      %v1805 = vpop.f32.mrb[0].mxu0
      %v1806 = vadd.f32 0.0, %v1805
      %v1807 = vpop.f32.mrb[0].mxu0
      %v1808 = vpop.f32.mrb[0].mxu0
      %v1809 = vadd.f32 0.0, %v1808
      %v1810 = vpop.f32.mrb[0].mxu0
      %1811 = vmatprep.mubr.bf16.mxu0 0
      %1812 = vmatmul.mubr.bf16.gmra.mrb[0].mxu0 %v1664
      %v1813 = vpop.f32.mrb[0].mxu0
      %v1814 = vadd.f32 0.0, %v1813
      %v1815 = vpop.f32.mrb[0].mxu0
      %v1816 = vpop.f32.mrb[0].mxu0
      %v1817 = vadd.f32 0.0, %v1816
      %v1818 = vpop.f32.mrb[0].mxu0
      %1819 = vmatprep.mubr.bf16.mxu0 0
      %1820 = vmatmul.mubr.bf16.gmra.mrb[0].mxu0 %v1667
      %v1821 = vpop.f32.mrb[0].mxu0
      %v1822 = vadd.f32 0.0, %v1821
      %v1823 = vpop.f32.mrb[0].mxu0
      %v1824 = vpop.f32.mrb[0].mxu0
      %v1825 = vadd.f32 0.0, %v1824
      %v1826 = vpop.f32.mrb[0].mxu0
      %1827 = vmatprep.mubr.bf16.mxu0 0
      %1828 = vmatmul.mubr.bf16.gmra.mrb[0].mxu0 %v1670
      %v1829 = vpop.f32.mrb[0].mxu0
      %v1830 = vadd.f32 0.0, %v1829
      %v1831 = vpop.f32.mrb[0].mxu0
      %v1832 = vpop.f32.mrb[0].mxu0
      %v1833 = vadd.f32 0.0, %v1832
      %v1834 = vpop.f32.mrb[0].mxu0
      %1835 = vdwg.mxu0
      %v1836 = vadd.f32 %v1266, %v1710
      %v1837 = vadd.f32 %v1269, %v1713
      %v1838 = vadd.f32 %v1274, %v1718
      %v1839 = vadd.f32 %v1277, %v1721
      %v1840 = vadd.f32 %v1282, %v1726
      %v1841 = vadd.f32 %v1285, %v1729
      %v1842 = vadd.f32 %v1290, %v1734
      %v1843 = vadd.f32 %v1293, %v1737
      %v1844 = vadd.f32 %v1298, %v1742
      %v1845 = vadd.f32 %v1301, %v1745
      %v1846 = vadd.f32 %v1306, %v1750
      %v1847 = vadd.f32 %v1309, %v1753
      %v1848 = vadd.f32 %v1314, %v1758
      %v1849 = vadd.f32 %v1317, %v1761
      %v1850 = vadd.f32 %v1322, %v1766
      %v1851 = vadd.f32 %v1325, %v1769
      %v1852 = vadd.f32 %v1330, %v1774
      %v1853 = vadd.f32 %v1333, %v1777
      %v1854 = vadd.f32 %v1338, %v1782
      %v1855 = vadd.f32 %v1341, %v1785
      %v1856 = vadd.f32 %v1346, %v1790
      %v1857 = vadd.f32 %v1349, %v1793
      %v1858 = vadd.f32 %v1354, %v1798
      %v1859 = vadd.f32 %v1357, %v1801
      %v1860 = vadd.f32 %v1362, %v1806
      %v1861 = vadd.f32 %v1365, %v1809
      %v1862 = vadd.f32 %v1370, %v1814
      %v1863 = vadd.f32 %v1373, %v1817
      %v1864 = vadd.f32 %v1378, %v1822
      %v1865 = vadd.f32 %v1381, %v1825
      %v1866 = vadd.f32 %v1386, %v1830
      %v1867 = vadd.f32 %v1389, %v1833
      %s1868 = sadd.s32 %s358, 1
      %s1869 = smul.u32 %s1868, 3
      %s1870 = smul.addr %s1869, 4
      %s1871 = scalar_lea.vmem %s320, %s1870
      %v1872 = vld [vmem:[%s1871] sm:$0xf]
      %v1873 = vld [vmem:[%s1871 + $0x4] sm:$0xf]
      %v1874 = vld [vmem:[%s1871 + $0xc] sm:$0xf]
      %v1875 = vld [vmem:[%s1871 + $0x10] sm:$0xf]
      %v1876 = vld [vmem:[%s1871 + $0x18] sm:$0xf]
      %v1877 = vld [vmem:[%s1871 + $0x1c] sm:$0xf]
      %v1878 = vld [vmem:[%s1871 + $0x24] sm:$0xf]
      %v1879 = vld [vmem:[%s1871 + $0x28] sm:$0xf]
      %v1880 = vld [vmem:[%s1871 + $0x30] sm:$0xf]
      %v1881 = vld [vmem:[%s1871 + $0x34] sm:$0xf]
      %v1882 = vld [vmem:[%s1871 + $0x3c] sm:$0xf]
      %v1883 = vld [vmem:[%s1871 + $0x40] sm:$0xf]
      %v1884 = vld [vmem:[%s1871 + $0x48] sm:$0xf]
      %v1885 = vld [vmem:[%s1871 + $0x4c] sm:$0xf]
      %v1886 = vld [vmem:[%s1871 + $0x54] sm:$0xf]
      %v1887 = vld [vmem:[%s1871 + $0x58] sm:$0xf]
      %v1888 = vld [vmem:[%s1871 + $0x60] sm:$0xf]
      %v1889 = vld [vmem:[%s1871 + $0x64] sm:$0xf]
      %v1890 = vld [vmem:[%s1871 + $0x6c] sm:$0xf]
      %v1891 = vld [vmem:[%s1871 + $0x70] sm:$0xf]
      %v1892 = vld [vmem:[%s1871 + $0x78] sm:$0xf]
      %v1893 = vld [vmem:[%s1871 + $0x7c] sm:$0xf]
      %v1894 = vld [vmem:[%s1871 + $0x84] sm:$0xf]
      %v1895 = vld [vmem:[%s1871 + $0x88] sm:$0xf]
      %v1896 = vld [vmem:[%s1871 + $0x90] sm:$0xf]
      %v1897 = vld [vmem:[%s1871 + $0x94] sm:$0xf]
      %v1898 = vld [vmem:[%s1871 + $0x9c] sm:$0xf]
      %v1899 = vld [vmem:[%s1871 + $0xa0] sm:$0xf]
      %v1900 = vld [vmem:[%s1871 + $0xa8] sm:$0xf]
      %v1901 = vld [vmem:[%s1871 + $0xac] sm:$0xf]
      %v1902 = vld [vmem:[%s1871 + $0xb4] sm:$0xf]
      %v1903 = vld [vmem:[%s1871 + $0xb8] sm:$0xf]
      %s1904 = scalar_lea.vmem %s1, 60
      %v1905 = vld [vmem:[%s1904] sm:$0xf]
      %v1906 = vld [vmem:[%s1904 + $0x4] sm:$0xf]
      %v1907 = vld [vmem:[%s1904 + $0x8] sm:$0xf]
      %v1908 = vld [vmem:[%s1904 + $0xc] sm:$0xf]
      %v1909 = vld [vmem:[%s1904 + $0x10] sm:$0xf]
      %v1942 = vunpack.c.l.b16 %v1872
      %v1943 = vunpack.c.l.b16 %v1873
      %v1944 = vunpack.c.l.b16 %v1874
      %v1945 = vunpack.c.l.b16 %v1875
      %v1946 = vunpack.c.l.b16 %v1876
      %v1947 = vunpack.c.l.b16 %v1877
      %v1948 = vunpack.c.l.b16 %v1878
      %v1949 = vunpack.c.l.b16 %v1879
      %v1950 = vunpack.c.l.b16 %v1880
      %v1951 = vunpack.c.l.b16 %v1881
      %v1952 = vunpack.c.l.b16 %v1882
      %v1953 = vunpack.c.l.b16 %v1883
      %v1954 = vunpack.c.l.b16 %v1884
      %v1955 = vunpack.c.l.b16 %v1885
      %v1956 = vunpack.c.l.b16 %v1886
      %v1957 = vunpack.c.l.b16 %v1887
      %v1958 = vunpack.c.l.b16 %v1888
      %v1959 = vunpack.c.l.b16 %v1889
      %v1960 = vunpack.c.l.b16 %v1890
      %v1961 = vunpack.c.l.b16 %v1891
      %v1962 = vunpack.c.l.b16 %v1892
      %v1963 = vunpack.c.l.b16 %v1893
      %v1964 = vunpack.c.l.b16 %v1894
      %v1965 = vunpack.c.l.b16 %v1895
      %v1966 = vunpack.c.l.b16 %v1896
      %v1967 = vunpack.c.l.b16 %v1897
      %v1968 = vunpack.c.l.b16 %v1898
      %v1969 = vunpack.c.l.b16 %v1899
      %v1970 = vunpack.c.l.b16 %v1900
      %v1971 = vunpack.c.l.b16 %v1901
      %v1972 = vunpack.c.l.b16 %v1902
      %v1973 = vunpack.c.l.b16 %v1903
      %v1974 = vpack.c.b16 %v1943, %v1942
      %v1975 = vpack.c.b16 %v1945, %v1944
      %v1976 = vpack.c.b16 %v1947, %v1946
      %v1977 = vpack.c.b16 %v1949, %v1948
      %v1978 = vpack.c.b16 %v1951, %v1950
      %v1979 = vpack.c.b16 %v1953, %v1952
      %v1980 = vpack.c.b16 %v1955, %v1954
      %v1981 = vpack.c.b16 %v1957, %v1956
      %v1982 = vpack.c.b16 %v1959, %v1958
      %v1983 = vpack.c.b16 %v1961, %v1960
      %v1984 = vpack.c.b16 %v1963, %v1962
      %v1985 = vpack.c.b16 %v1965, %v1964
      %v1986 = vpack.c.b16 %v1967, %v1966
      %v1987 = vpack.c.b16 %v1969, %v1968
      %v1988 = vpack.c.b16 %v1971, %v1970
      %v1989 = vpack.c.b16 %v1973, %v1972
      %v1995 = vunpack.c.l.b16 %v1905
      %v1996 = vunpack.c.l.b16 %v1906
      %v1997 = vunpack.c.l.b16 %v1907
      %v1998 = vunpack.c.l.b16 %v1908
      %v1999 = vunpack.c.l.b16 %v1909
      %v2000 = vpack.c.b16 %v1996, %v1995
      %v2001 = vpack.c.b16 %v1998, %v1997
      %v2002 = vpack.c.b16 %v1999, %v1999
      %v2006 = vsel %vm871, %v1974, 0
      %v2009 = vsel %vm871, %v1975, 0
      %v2012 = vsel %vm871, %v1976, 0
      %v2015 = vsel %vm871, %v1977, 0
      %v2018 = vsel %vm871, %v1978, 0
      %v2021 = vsel %vm871, %v1979, 0
      %v2024 = vsel %vm871, %v1980, 0
      %v2027 = vsel %vm871, %v1981, 0
      %v2030 = vsel %vm871, %v1982, 0
      %v2033 = vsel %vm871, %v1983, 0
      %v2036 = vsel %vm871, %v1984, 0
      %v2039 = vsel %vm871, %v1985, 0
      %v2042 = vsel %vm871, %v1986, 0
      %v2045 = vsel %vm871, %v1987, 0
      %v2048 = vsel %vm871, %v1988, 0
      %v2051 = vsel %vm871, %v1989, 0
      %v2054 = vsel %vm920, %v2002, 0
      %2056 = vmatprep.subr.bf16.mxu0 0
      %2057 = vmatpush1.bf16.msra.mxu0 %v2000
      %2058 = vmatprep.subr.bf16.mxu0 0
      %2059 = vmatpush1.bf16.msra.mxu0 %v2001
      %2060 = vmatprep.subr.bf16.mxu0 0
      %2061 = vmatpush1.bf16.msra.mxu0 %v2054
      %2062 = vmatprep.subr.bf16.mxu0 0
      %2063 = vmatpush1.bf16.msra.mxu0 0
      %2064 = vmatprep.subr.bf16.mxu0 0
      %2065 = vmatpush1.bf16.msra.mxu0 0
      %2066 = vmatprep.subr.bf16.mxu0 0
      %2067 = vmatpush1.bf16.msra.mxu0 0
      %2068 = vmatprep.subr.bf16.mxu0 0
      %2069 = vmatpush1.bf16.msra.mxu0 0
      %2070 = vmatprep.subr.bf16.mxu0 0
      %2071 = vmatpush1.bf16.msra.mxu0 0
      %2072 = vmatprep.subr.bf16.mxu0 0
      %2073 = vmatpush1.bf16.msra.mxu0 0
      %2074 = vmatprep.subr.bf16.mxu0 0
      %2075 = vmatpush1.bf16.msra.mxu0 0
      %2076 = vmatprep.subr.bf16.mxu0 0
      %2077 = vmatpush1.bf16.msra.mxu0 0
      %2078 = vmatprep.subr.bf16.mxu0 0
      %2079 = vmatpush1.bf16.msra.mxu0 0
      %2080 = vmatprep.subr.bf16.mxu0 0
      %2081 = vmatpush1.bf16.msra.mxu0 0
      %2082 = vmatprep.subr.bf16.mxu0 0
      %2083 = vmatpush1.bf16.msra.mxu0 0
      %2084 = vmatprep.subr.bf16.mxu0 0
      %2085 = vmatpush1.bf16.msra.mxu0 0
      %2086 = vmatprep.subr.bf16.mxu0 0
      %2087 = vmatpush1.bf16.msra.mxu0 0
      %2088 = vmatprep.mubr.bf16.mxu0 0
      %2089 = vmatmul.mubr.bf16.gmra.mrb[0].mxu0 %v2006
      %v2090 = vpop.f32.mrb[0].mxu0
      %v2091 = vadd.f32 0.0, %v2090
      %v2092 = vpop.f32.mrb[0].mxu0
      %v2093 = vpop.f32.mrb[0].mxu0
      %v2094 = vadd.f32 0.0, %v2093
      %v2095 = vpop.f32.mrb[0].mxu0
      %2096 = vmatprep.mubr.bf16.mxu0 0
      %2097 = vmatmul.mubr.bf16.gmra.mrb[0].mxu0 %v2009
      %v2098 = vpop.f32.mrb[0].mxu0
      %v2099 = vadd.f32 0.0, %v2098
      %v2100 = vpop.f32.mrb[0].mxu0
      %v2101 = vpop.f32.mrb[0].mxu0
      %v2102 = vadd.f32 0.0, %v2101
      %v2103 = vpop.f32.mrb[0].mxu0
      %2104 = vmatprep.mubr.bf16.mxu0 0
      %2105 = vmatmul.mubr.bf16.gmra.mrb[0].mxu0 %v2012
      %v2106 = vpop.f32.mrb[0].mxu0
      %v2107 = vadd.f32 0.0, %v2106
      %v2108 = vpop.f32.mrb[0].mxu0
      %v2109 = vpop.f32.mrb[0].mxu0
      %v2110 = vadd.f32 0.0, %v2109
      %v2111 = vpop.f32.mrb[0].mxu0
      %2112 = vmatprep.mubr.bf16.mxu0 0
      %2113 = vmatmul.mubr.bf16.gmra.mrb[0].mxu0 %v2015
      %v2114 = vpop.f32.mrb[0].mxu0
      %v2115 = vadd.f32 0.0, %v2114
      %v2116 = vpop.f32.mrb[0].mxu0
      %v2117 = vpop.f32.mrb[0].mxu0
      %v2118 = vadd.f32 0.0, %v2117
      %v2119 = vpop.f32.mrb[0].mxu0
      %2120 = vmatprep.mubr.bf16.mxu0 0
      %2121 = vmatmul.mubr.bf16.gmra.mrb[0].mxu0 %v2018
      %v2122 = vpop.f32.mrb[0].mxu0
      %v2123 = vadd.f32 0.0, %v2122
      %v2124 = vpop.f32.mrb[0].mxu0
      %v2125 = vpop.f32.mrb[0].mxu0
      %v2126 = vadd.f32 0.0, %v2125
      %v2127 = vpop.f32.mrb[0].mxu0
      %2128 = vmatprep.mubr.bf16.mxu0 0
      %2129 = vmatmul.mubr.bf16.gmra.mrb[0].mxu0 %v2021
      %v2130 = vpop.f32.mrb[0].mxu0
      %v2131 = vadd.f32 0.0, %v2130
      %v2132 = vpop.f32.mrb[0].mxu0
      %v2133 = vpop.f32.mrb[0].mxu0
      %v2134 = vadd.f32 0.0, %v2133
      %v2135 = vpop.f32.mrb[0].mxu0
      %2136 = vmatprep.mubr.bf16.mxu0 0
      %2137 = vmatmul.mubr.bf16.gmra.mrb[0].mxu0 %v2024
      %v2138 = vpop.f32.mrb[0].mxu0
      %v2139 = vadd.f32 0.0, %v2138
      %v2140 = vpop.f32.mrb[0].mxu0
      %v2141 = vpop.f32.mrb[0].mxu0
      %v2142 = vadd.f32 0.0, %v2141
      %v2143 = vpop.f32.mrb[0].mxu0
      %2144 = vmatprep.mubr.bf16.mxu0 0
      %2145 = vmatmul.mubr.bf16.gmra.mrb[0].mxu0 %v2027
      %v2146 = vpop.f32.mrb[0].mxu0
      %v2147 = vadd.f32 0.0, %v2146
      %v2148 = vpop.f32.mrb[0].mxu0
      %v2149 = vpop.f32.mrb[0].mxu0
      %v2150 = vadd.f32 0.0, %v2149
      %v2151 = vpop.f32.mrb[0].mxu0
      %2152 = vmatprep.mubr.bf16.mxu0 0
      %2153 = vmatmul.mubr.bf16.gmra.mrb[0].mxu0 %v2030
      %v2154 = vpop.f32.mrb[0].mxu0
      %v2155 = vadd.f32 0.0, %v2154
      %v2156 = vpop.f32.mrb[0].mxu0
      %v2157 = vpop.f32.mrb[0].mxu0
      %v2158 = vadd.f32 0.0, %v2157
      %v2159 = vpop.f32.mrb[0].mxu0
      %2160 = vmatprep.mubr.bf16.mxu0 0
      %2161 = vmatmul.mubr.bf16.gmra.mrb[0].mxu0 %v2033
      %v2162 = vpop.f32.mrb[0].mxu0
      %v2163 = vadd.f32 0.0, %v2162
      %v2164 = vpop.f32.mrb[0].mxu0
      %v2165 = vpop.f32.mrb[0].mxu0
      %v2166 = vadd.f32 0.0, %v2165
      %v2167 = vpop.f32.mrb[0].mxu0
      %2168 = vmatprep.mubr.bf16.mxu0 0
      %2169 = vmatmul.mubr.bf16.gmra.mrb[0].mxu0 %v2036
      %v2170 = vpop.f32.mrb[0].mxu0
      %v2171 = vadd.f32 0.0, %v2170
      %v2172 = vpop.f32.mrb[0].mxu0
      %v2173 = vpop.f32.mrb[0].mxu0
      %v2174 = vadd.f32 0.0, %v2173
      %v2175 = vpop.f32.mrb[0].mxu0
      %2176 = vmatprep.mubr.bf16.mxu0 0
      %2177 = vmatmul.mubr.bf16.gmra.mrb[0].mxu0 %v2039
      %v2178 = vpop.f32.mrb[0].mxu0
      %v2179 = vadd.f32 0.0, %v2178
      %v2180 = vpop.f32.mrb[0].mxu0
      %v2181 = vpop.f32.mrb[0].mxu0
      %v2182 = vadd.f32 0.0, %v2181
      %v2183 = vpop.f32.mrb[0].mxu0
      %2184 = vmatprep.mubr.bf16.mxu0 0
      %2185 = vmatmul.mubr.bf16.gmra.mrb[0].mxu0 %v2042
      %v2186 = vpop.f32.mrb[0].mxu0
      %v2187 = vadd.f32 0.0, %v2186
      %v2188 = vpop.f32.mrb[0].mxu0
      %v2189 = vpop.f32.mrb[0].mxu0
      %v2190 = vadd.f32 0.0, %v2189
      %v2191 = vpop.f32.mrb[0].mxu0
      %2192 = vmatprep.mubr.bf16.mxu0 0
      %2193 = vmatmul.mubr.bf16.gmra.mrb[0].mxu0 %v2045
      %v2194 = vpop.f32.mrb[0].mxu0
      %v2195 = vadd.f32 0.0, %v2194
      %v2196 = vpop.f32.mrb[0].mxu0
      %v2197 = vpop.f32.mrb[0].mxu0
      %v2198 = vadd.f32 0.0, %v2197
      %v2199 = vpop.f32.mrb[0].mxu0
      %2200 = vmatprep.mubr.bf16.mxu0 0
      %2201 = vmatmul.mubr.bf16.gmra.mrb[0].mxu0 %v2048
      %v2202 = vpop.f32.mrb[0].mxu0
      %v2203 = vadd.f32 0.0, %v2202
      %v2204 = vpop.f32.mrb[0].mxu0
      %v2205 = vpop.f32.mrb[0].mxu0
      %v2206 = vadd.f32 0.0, %v2205
      %v2207 = vpop.f32.mrb[0].mxu0
      %2208 = vmatprep.mubr.bf16.mxu0 0
      %2209 = vmatmul.mubr.bf16.gmra.mrb[0].mxu0 %v2051
      %v2210 = vpop.f32.mrb[0].mxu0
      %v2211 = vadd.f32 0.0, %v2210
      %v2212 = vpop.f32.mrb[0].mxu0
      %v2213 = vpop.f32.mrb[0].mxu0
      %v2214 = vadd.f32 0.0, %v2213
      %v2215 = vpop.f32.mrb[0].mxu0
      %2216 = vdwg.mxu0
      %v2217 = vadd.f32 %v1836, %v2091
      %v2218 = vadd.f32 %v1837, %v2094
      %v2219 = vadd.f32 %v1838, %v2099
      %v2220 = vadd.f32 %v1839, %v2102
      %v2221 = vadd.f32 %v1840, %v2107
      %v2222 = vadd.f32 %v1841, %v2110
      %v2223 = vadd.f32 %v1842, %v2115
      %v2224 = vadd.f32 %v1843, %v2118
      %v2225 = vadd.f32 %v1844, %v2123
      %v2226 = vadd.f32 %v1845, %v2126
      %v2227 = vadd.f32 %v1846, %v2131
      %v2228 = vadd.f32 %v1847, %v2134
      %v2229 = vadd.f32 %v1848, %v2139
      %v2230 = vadd.f32 %v1849, %v2142
      %v2231 = vadd.f32 %v1850, %v2147
      %v2232 = vadd.f32 %v1851, %v2150
      %v2233 = vadd.f32 %v1852, %v2155
      %v2234 = vadd.f32 %v1853, %v2158
      %v2235 = vadd.f32 %v1854, %v2163
      %v2236 = vadd.f32 %v1855, %v2166
      %v2237 = vadd.f32 %v1856, %v2171
      %v2238 = vadd.f32 %v1857, %v2174
      %v2239 = vadd.f32 %v1858, %v2179
      %v2240 = vadd.f32 %v1859, %v2182
      %v2241 = vadd.f32 %v1860, %v2187
      %v2242 = vadd.f32 %v1861, %v2190
      %v2243 = vadd.f32 %v1862, %v2195
      %v2244 = vadd.f32 %v1863, %v2198
      %v2245 = vadd.f32 %v1864, %v2203
      %v2246 = vadd.f32 %v1865, %v2206
      %v2247 = vadd.f32 %v1866, %v2211
      %v2248 = vadd.f32 %v1867, %v2214
      %v2249 = vld [vmem:[%s1871] sm:$0xf]
      %v2250 = vld [vmem:[%s1871 + $0x4] sm:$0xf]
      %v2251 = vld [vmem:[%s1871 + $0x8] sm:$0x1]
      %v2252 = vld [vmem:[%s1871 + $0xc] sm:$0xf]
      %v2253 = vld [vmem:[%s1871 + $0x10] sm:$0xf]
      %v2254 = vld [vmem:[%s1871 + $0x14] sm:$0x1]
      %v2255 = vld [vmem:[%s1871 + $0x18] sm:$0xf]
      %v2256 = vld [vmem:[%s1871 + $0x1c] sm:$0xf]
      %v2257 = vld [vmem:[%s1871 + $0x20] sm:$0x1]
      %v2258 = vld [vmem:[%s1871 + $0x24] sm:$0xf]
      %v2259 = vld [vmem:[%s1871 + $0x28] sm:$0xf]
      %v2260 = vld [vmem:[%s1871 + $0x2c] sm:$0x1]
      %v2261 = vld [vmem:[%s1871 + $0x30] sm:$0xf]
      %v2262 = vld [vmem:[%s1871 + $0x34] sm:$0xf]
      %v2263 = vld [vmem:[%s1871 + $0x38] sm:$0x1]
      %v2264 = vld [vmem:[%s1871 + $0x3c] sm:$0xf]
      %v2265 = vld [vmem:[%s1871 + $0x40] sm:$0xf]
      %v2266 = vld [vmem:[%s1871 + $0x44] sm:$0x1]
      %v2267 = vld [vmem:[%s1871 + $0x48] sm:$0xf]
      %v2268 = vld [vmem:[%s1871 + $0x4c] sm:$0xf]
      %v2269 = vld [vmem:[%s1871 + $0x50] sm:$0x1]
      %v2270 = vld [vmem:[%s1871 + $0x54] sm:$0xf]
      %v2271 = vld [vmem:[%s1871 + $0x58] sm:$0xf]
      %v2272 = vld [vmem:[%s1871 + $0x5c] sm:$0x1]
      %v2273 = vld [vmem:[%s1871 + $0x60] sm:$0xf]
      %v2274 = vld [vmem:[%s1871 + $0x64] sm:$0xf]
      %v2275 = vld [vmem:[%s1871 + $0x68] sm:$0x1]
      %v2276 = vld [vmem:[%s1871 + $0x6c] sm:$0xf]
      %v2277 = vld [vmem:[%s1871 + $0x70] sm:$0xf]
      %v2278 = vld [vmem:[%s1871 + $0x74] sm:$0x1]
      %v2279 = vld [vmem:[%s1871 + $0x78] sm:$0xf]
      %v2280 = vld [vmem:[%s1871 + $0x7c] sm:$0xf]
      %v2281 = vld [vmem:[%s1871 + $0x80] sm:$0x1]
      %v2282 = vld [vmem:[%s1871 + $0x84] sm:$0xf]
      %v2283 = vld [vmem:[%s1871 + $0x88] sm:$0xf]
      %v2284 = vld [vmem:[%s1871 + $0x8c] sm:$0x1]
      %v2285 = vld [vmem:[%s1871 + $0x90] sm:$0xf]
      %v2286 = vld [vmem:[%s1871 + $0x94] sm:$0xf]
      %v2287 = vld [vmem:[%s1871 + $0x98] sm:$0x1]
      %v2288 = vld [vmem:[%s1871 + $0x9c] sm:$0xf]
      %v2289 = vld [vmem:[%s1871 + $0xa0] sm:$0xf]
      %v2290 = vld [vmem:[%s1871 + $0xa4] sm:$0x1]
      %v2291 = vld [vmem:[%s1871 + $0xa8] sm:$0xf]
      %v2292 = vld [vmem:[%s1871 + $0xac] sm:$0xf]
      %v2293 = vld [vmem:[%s1871 + $0xb0] sm:$0x1]
      %v2294 = vld [vmem:[%s1871 + $0xb4] sm:$0xf]
      %v2295 = vld [vmem:[%s1871 + $0xb8] sm:$0xf]
      %v2296 = vld [vmem:[%s1871 + $0xbc] sm:$0x1]
      %v2298 = vshrl.u32 %v2249, 16
      %v2300 = vrot.slane %v2298, 4
      %v2301 = vshll.u32 %v2249, 16
      %v2303 = vrot.slane %v2301, 5
      %v2304 = vor.u32 %v2300, %v2303
      %v2305 = vrot.slane %v2304, 4
      %v2307 = vshll.u32 %v2250, 16
      %v2309 = vrot.slane %v2307, 5
      %v2310 = vsel %vm417, %v2305, %v2309
      %v2311 = vshrl.u32 %v2250, 16
      %v2313 = vrot.slane %v2311, 4
      %v2314 = vor.u32 %v2313, %v2309
      %v2315 = vrot.slane %v2314, 4
      %v2317 = vshll.u32 %v2251, 16
      %v2319 = vrot.slane %v2317, 5
      %v2320 = vsel %vm417, %v2315, %v2319
      %v2322 = vshrl.u32 %v2252, 16
      %v2324 = vrot.slane %v2322, 4
      %v2325 = vshll.u32 %v2252, 16
      %v2327 = vrot.slane %v2325, 5
      %v2328 = vor.u32 %v2324, %v2327
      %v2329 = vrot.slane %v2328, 4
      %v2331 = vshll.u32 %v2253, 16
      %v2333 = vrot.slane %v2331, 5
      %v2334 = vsel %vm417, %v2329, %v2333
      %v2335 = vshrl.u32 %v2253, 16
      %v2337 = vrot.slane %v2335, 4
      %v2338 = vor.u32 %v2337, %v2333
      %v2339 = vrot.slane %v2338, 4
      %v2341 = vshll.u32 %v2254, 16
      %v2343 = vrot.slane %v2341, 5
      %v2344 = vsel %vm417, %v2339, %v2343
      %v2346 = vshrl.u32 %v2255, 16
      %v2348 = vrot.slane %v2346, 4
      %v2349 = vshll.u32 %v2255, 16
      %v2351 = vrot.slane %v2349, 5
      %v2352 = vor.u32 %v2348, %v2351
      %v2353 = vrot.slane %v2352, 4
      %v2355 = vshll.u32 %v2256, 16
      %v2357 = vrot.slane %v2355, 5
      %v2358 = vsel %vm417, %v2353, %v2357
      %v2359 = vshrl.u32 %v2256, 16
      %v2361 = vrot.slane %v2359, 4
      %v2362 = vor.u32 %v2361, %v2357
      %v2363 = vrot.slane %v2362, 4
      %v2365 = vshll.u32 %v2257, 16
      %v2367 = vrot.slane %v2365, 5
      %v2368 = vsel %vm417, %v2363, %v2367
      %v2370 = vshrl.u32 %v2258, 16
      %v2372 = vrot.slane %v2370, 4
      %v2373 = vshll.u32 %v2258, 16
      %v2375 = vrot.slane %v2373, 5
      %v2376 = vor.u32 %v2372, %v2375
      %v2377 = vrot.slane %v2376, 4
      %v2379 = vshll.u32 %v2259, 16
      %v2381 = vrot.slane %v2379, 5
      %v2382 = vsel %vm417, %v2377, %v2381
      %v2383 = vshrl.u32 %v2259, 16
      %v2385 = vrot.slane %v2383, 4
      %v2386 = vor.u32 %v2385, %v2381
      %v2387 = vrot.slane %v2386, 4
      %v2389 = vshll.u32 %v2260, 16
      %v2391 = vrot.slane %v2389, 5
      %v2392 = vsel %vm417, %v2387, %v2391
      %v2394 = vshrl.u32 %v2261, 16
      %v2396 = vrot.slane %v2394, 4
      %v2397 = vshll.u32 %v2261, 16
      %v2399 = vrot.slane %v2397, 5
      %v2400 = vor.u32 %v2396, %v2399
      %v2401 = vrot.slane %v2400, 4
      %v2403 = vshll.u32 %v2262, 16
      %v2405 = vrot.slane %v2403, 5
      %v2406 = vsel %vm417, %v2401, %v2405
      %v2407 = vshrl.u32 %v2262, 16
      %v2409 = vrot.slane %v2407, 4
      %v2410 = vor.u32 %v2409, %v2405
      %v2411 = vrot.slane %v2410, 4
      %v2413 = vshll.u32 %v2263, 16
      %v2415 = vrot.slane %v2413, 5
      %v2416 = vsel %vm417, %v2411, %v2415
      %v2418 = vshrl.u32 %v2264, 16
      %v2420 = vrot.slane %v2418, 4
      %v2421 = vshll.u32 %v2264, 16
      %v2423 = vrot.slane %v2421, 5
      %v2424 = vor.u32 %v2420, %v2423
      %v2425 = vrot.slane %v2424, 4
      %v2427 = vshll.u32 %v2265, 16
      %v2429 = vrot.slane %v2427, 5
      %v2430 = vsel %vm417, %v2425, %v2429
      %v2431 = vshrl.u32 %v2265, 16
      %v2433 = vrot.slane %v2431, 4
      %v2434 = vor.u32 %v2433, %v2429
      %v2435 = vrot.slane %v2434, 4
      %v2437 = vshll.u32 %v2266, 16
      %v2439 = vrot.slane %v2437, 5
      %v2440 = vsel %vm417, %v2435, %v2439
      %v2442 = vshrl.u32 %v2267, 16
      %v2444 = vrot.slane %v2442, 4
      %v2445 = vshll.u32 %v2267, 16
      %v2447 = vrot.slane %v2445, 5
      %v2448 = vor.u32 %v2444, %v2447
      %v2449 = vrot.slane %v2448, 4
      %v2451 = vshll.u32 %v2268, 16
      %v2453 = vrot.slane %v2451, 5
      %v2454 = vsel %vm417, %v2449, %v2453
      %v2455 = vshrl.u32 %v2268, 16
      %v2457 = vrot.slane %v2455, 4
      %v2458 = vor.u32 %v2457, %v2453
      %v2459 = vrot.slane %v2458, 4
      %v2461 = vshll.u32 %v2269, 16
      %v2463 = vrot.slane %v2461, 5
      %v2464 = vsel %vm417, %v2459, %v2463
      %v2466 = vshrl.u32 %v2270, 16
      %v2468 = vrot.slane %v2466, 4
      %v2469 = vshll.u32 %v2270, 16
      %v2471 = vrot.slane %v2469, 5
      %v2472 = vor.u32 %v2468, %v2471
      %v2473 = vrot.slane %v2472, 4
      %v2475 = vshll.u32 %v2271, 16
      %v2477 = vrot.slane %v2475, 5
      %v2478 = vsel %vm417, %v2473, %v2477
      %v2479 = vshrl.u32 %v2271, 16
      %v2481 = vrot.slane %v2479, 4
      %v2482 = vor.u32 %v2481, %v2477
      %v2483 = vrot.slane %v2482, 4
      %v2485 = vshll.u32 %v2272, 16
      %v2487 = vrot.slane %v2485, 5
      %v2488 = vsel %vm417, %v2483, %v2487
      %v2490 = vshrl.u32 %v2273, 16
      %v2492 = vrot.slane %v2490, 4
      %v2493 = vshll.u32 %v2273, 16
      %v2495 = vrot.slane %v2493, 5
      %v2496 = vor.u32 %v2492, %v2495
      %v2497 = vrot.slane %v2496, 4
      %v2499 = vshll.u32 %v2274, 16
      %v2501 = vrot.slane %v2499, 5
      %v2502 = vsel %vm417, %v2497, %v2501
      %v2503 = vshrl.u32 %v2274, 16
      %v2505 = vrot.slane %v2503, 4
      %v2506 = vor.u32 %v2505, %v2501
      %v2507 = vrot.slane %v2506, 4
      %v2509 = vshll.u32 %v2275, 16
      %v2511 = vrot.slane %v2509, 5
      %v2512 = vsel %vm417, %v2507, %v2511
      %v2514 = vshrl.u32 %v2276, 16
      %v2516 = vrot.slane %v2514, 4
      %v2517 = vshll.u32 %v2276, 16
      %v2519 = vrot.slane %v2517, 5
      %v2520 = vor.u32 %v2516, %v2519
      %v2521 = vrot.slane %v2520, 4
      %v2523 = vshll.u32 %v2277, 16
      %v2525 = vrot.slane %v2523, 5
      %v2526 = vsel %vm417, %v2521, %v2525
      %v2527 = vshrl.u32 %v2277, 16
      %v2529 = vrot.slane %v2527, 4
      %v2530 = vor.u32 %v2529, %v2525
      %v2531 = vrot.slane %v2530, 4
      %v2533 = vshll.u32 %v2278, 16
      %v2535 = vrot.slane %v2533, 5
      %v2536 = vsel %vm417, %v2531, %v2535
      %v2538 = vshrl.u32 %v2279, 16
      %v2540 = vrot.slane %v2538, 4
      %v2541 = vshll.u32 %v2279, 16
      %v2543 = vrot.slane %v2541, 5
      %v2544 = vor.u32 %v2540, %v2543
      %v2545 = vrot.slane %v2544, 4
      %v2547 = vshll.u32 %v2280, 16
      %v2549 = vrot.slane %v2547, 5
      %v2550 = vsel %vm417, %v2545, %v2549
      %v2551 = vshrl.u32 %v2280, 16
      %v2553 = vrot.slane %v2551, 4
      %v2554 = vor.u32 %v2553, %v2549
      %v2555 = vrot.slane %v2554, 4
      %v2557 = vshll.u32 %v2281, 16
      %v2559 = vrot.slane %v2557, 5
      %v2560 = vsel %vm417, %v2555, %v2559
      %v2562 = vshrl.u32 %v2282, 16
      %v2564 = vrot.slane %v2562, 4
      %v2565 = vshll.u32 %v2282, 16
      %v2567 = vrot.slane %v2565, 5
      %v2568 = vor.u32 %v2564, %v2567
      %v2569 = vrot.slane %v2568, 4
      %v2571 = vshll.u32 %v2283, 16
      %v2573 = vrot.slane %v2571, 5
      %v2574 = vsel %vm417, %v2569, %v2573
      %v2575 = vshrl.u32 %v2283, 16
      %v2577 = vrot.slane %v2575, 4
      %v2578 = vor.u32 %v2577, %v2573
      %v2579 = vrot.slane %v2578, 4
      %v2581 = vshll.u32 %v2284, 16
      %v2583 = vrot.slane %v2581, 5
      %v2584 = vsel %vm417, %v2579, %v2583
      %v2586 = vshrl.u32 %v2285, 16
      %v2588 = vrot.slane %v2586, 4
      %v2589 = vshll.u32 %v2285, 16
      %v2591 = vrot.slane %v2589, 5
      %v2592 = vor.u32 %v2588, %v2591
      %v2593 = vrot.slane %v2592, 4
      %v2595 = vshll.u32 %v2286, 16
      %v2597 = vrot.slane %v2595, 5
      %v2598 = vsel %vm417, %v2593, %v2597
      %v2599 = vshrl.u32 %v2286, 16
      %v2601 = vrot.slane %v2599, 4
      %v2602 = vor.u32 %v2601, %v2597
      %v2603 = vrot.slane %v2602, 4
      %v2605 = vshll.u32 %v2287, 16
      %v2607 = vrot.slane %v2605, 5
      %v2608 = vsel %vm417, %v2603, %v2607
      %v2610 = vshrl.u32 %v2288, 16
      %v2612 = vrot.slane %v2610, 4
      %v2613 = vshll.u32 %v2288, 16
      %v2615 = vrot.slane %v2613, 5
      %v2616 = vor.u32 %v2612, %v2615
      %v2617 = vrot.slane %v2616, 4
      %v2619 = vshll.u32 %v2289, 16
      %v2621 = vrot.slane %v2619, 5
      %v2622 = vsel %vm417, %v2617, %v2621
      %v2623 = vshrl.u32 %v2289, 16
      %v2625 = vrot.slane %v2623, 4
      %v2626 = vor.u32 %v2625, %v2621
      %v2627 = vrot.slane %v2626, 4
      %v2629 = vshll.u32 %v2290, 16
      %v2631 = vrot.slane %v2629, 5
      %v2632 = vsel %vm417, %v2627, %v2631
      %v2634 = vshrl.u32 %v2291, 16
      %v2636 = vrot.slane %v2634, 4
      %v2637 = vshll.u32 %v2291, 16
      %v2639 = vrot.slane %v2637, 5
      %v2640 = vor.u32 %v2636, %v2639
      %v2641 = vrot.slane %v2640, 4
      %v2643 = vshll.u32 %v2292, 16
      %v2645 = vrot.slane %v2643, 5
      %v2646 = vsel %vm417, %v2641, %v2645
      %v2647 = vshrl.u32 %v2292, 16
      %v2649 = vrot.slane %v2647, 4
      %v2650 = vor.u32 %v2649, %v2645
      %v2651 = vrot.slane %v2650, 4
      %v2653 = vshll.u32 %v2293, 16
      %v2655 = vrot.slane %v2653, 5
      %v2656 = vsel %vm417, %v2651, %v2655
      %v2658 = vshrl.u32 %v2294, 16
      %v2660 = vrot.slane %v2658, 4
      %v2661 = vshll.u32 %v2294, 16
      %v2663 = vrot.slane %v2661, 5
      %v2664 = vor.u32 %v2660, %v2663
      %v2665 = vrot.slane %v2664, 4
      %v2667 = vshll.u32 %v2295, 16
      %v2669 = vrot.slane %v2667, 5
      %v2670 = vsel %vm417, %v2665, %v2669
      %v2671 = vshrl.u32 %v2295, 16
      %v2673 = vrot.slane %v2671, 4
      %v2674 = vor.u32 %v2673, %v2669
      %v2675 = vrot.slane %v2674, 4
      %v2677 = vshll.u32 %v2296, 16
      %v2679 = vrot.slane %v2677, 5
      %v2680 = vsel %vm417, %v2675, %v2679
      %s2681 = scalar_lea.vmem %s1, 80
      %v2682 = vld [vmem:[%s2681] sm:$0xf]
      %v2683 = vld [vmem:[%s2681 + $0x4] sm:$0xf]
      %v2684 = vld [vmem:[%s2681 + $0x8] sm:$0xf]
      %v2685 = vld [vmem:[%s2681 + $0xc] sm:$0xf]
      %v2686 = vld [vmem:[%s2681 + $0x10] sm:$0xf]
      %v2687 = vunpack.c.l.b16 %v2310
      %v2688 = vunpack.c.l.b16 %v2320
      %v2689 = vunpack.c.l.b16 %v2334
      %v2690 = vunpack.c.l.b16 %v2344
      %v2691 = vunpack.c.l.b16 %v2358
      %v2692 = vunpack.c.l.b16 %v2368
      %v2693 = vunpack.c.l.b16 %v2382
      %v2694 = vunpack.c.l.b16 %v2392
      %v2695 = vunpack.c.l.b16 %v2406
      %v2696 = vunpack.c.l.b16 %v2416
      %v2697 = vunpack.c.l.b16 %v2430
      %v2698 = vunpack.c.l.b16 %v2440
      %v2699 = vunpack.c.l.b16 %v2454
      %v2700 = vunpack.c.l.b16 %v2464
      %v2701 = vunpack.c.l.b16 %v2478
      %v2702 = vunpack.c.l.b16 %v2488
      %v2703 = vunpack.c.l.b16 %v2502
      %v2704 = vunpack.c.l.b16 %v2512
      %v2705 = vunpack.c.l.b16 %v2526
      %v2706 = vunpack.c.l.b16 %v2536
      %v2707 = vunpack.c.l.b16 %v2550
      %v2708 = vunpack.c.l.b16 %v2560
      %v2709 = vunpack.c.l.b16 %v2574
      %v2710 = vunpack.c.l.b16 %v2584
      %v2711 = vunpack.c.l.b16 %v2598
      %v2712 = vunpack.c.l.b16 %v2608
      %v2713 = vunpack.c.l.b16 %v2622
      %v2714 = vunpack.c.l.b16 %v2632
      %v2715 = vunpack.c.l.b16 %v2646
      %v2716 = vunpack.c.l.b16 %v2656
      %v2717 = vunpack.c.l.b16 %v2670
      %v2718 = vunpack.c.l.b16 %v2680
      %v2719 = vpack.c.b16 %v2688, %v2687
      %v2720 = vpack.c.b16 %v2690, %v2689
      %v2721 = vpack.c.b16 %v2692, %v2691
      %v2722 = vpack.c.b16 %v2694, %v2693
      %v2723 = vpack.c.b16 %v2696, %v2695
      %v2724 = vpack.c.b16 %v2698, %v2697
      %v2725 = vpack.c.b16 %v2700, %v2699
      %v2726 = vpack.c.b16 %v2702, %v2701
      %v2727 = vpack.c.b16 %v2704, %v2703
      %v2728 = vpack.c.b16 %v2706, %v2705
      %v2729 = vpack.c.b16 %v2708, %v2707
      %v2730 = vpack.c.b16 %v2710, %v2709
      %v2731 = vpack.c.b16 %v2712, %v2711
      %v2732 = vpack.c.b16 %v2714, %v2713
      %v2733 = vpack.c.b16 %v2716, %v2715
      %v2734 = vpack.c.b16 %v2718, %v2717
      %v2740 = vunpack.c.l.b16 %v2682
      %v2741 = vunpack.c.l.b16 %v2683
      %v2742 = vunpack.c.l.b16 %v2684
      %v2743 = vunpack.c.l.b16 %v2685
      %v2744 = vunpack.c.l.b16 %v2686
      %v2745 = vpack.c.b16 %v2741, %v2740
      %v2746 = vpack.c.b16 %v2743, %v2742
      %v2747 = vpack.c.b16 %v2744, %v2744
      %v2751 = vsel %vm871, %v2719, 0
      %v2754 = vsel %vm871, %v2720, 0
      %v2757 = vsel %vm871, %v2721, 0
      %v2760 = vsel %vm871, %v2722, 0
      %v2763 = vsel %vm871, %v2723, 0
      %v2766 = vsel %vm871, %v2724, 0
      %v2769 = vsel %vm871, %v2725, 0
      %v2772 = vsel %vm871, %v2726, 0
      %v2775 = vsel %vm871, %v2727, 0
      %v2778 = vsel %vm871, %v2728, 0
      %v2781 = vsel %vm871, %v2729, 0
      %v2784 = vsel %vm871, %v2730, 0
      %v2787 = vsel %vm871, %v2731, 0
      %v2790 = vsel %vm871, %v2732, 0
      %v2793 = vsel %vm871, %v2733, 0
      %v2796 = vsel %vm871, %v2734, 0
      %v2799 = vsel %vm920, %v2747, 0
      %2801 = vmatprep.subr.bf16.mxu0 0
      %2802 = vmatpush1.bf16.msra.mxu0 %v2745
      %2803 = vmatprep.subr.bf16.mxu0 0
      %2804 = vmatpush1.bf16.msra.mxu0 %v2746
      %2805 = vmatprep.subr.bf16.mxu0 0
      %2806 = vmatpush1.bf16.msra.mxu0 %v2799
      %2807 = vmatprep.subr.bf16.mxu0 0
      %2808 = vmatpush1.bf16.msra.mxu0 0
      %2809 = vmatprep.subr.bf16.mxu0 0
      %2810 = vmatpush1.bf16.msra.mxu0 0
      %2811 = vmatprep.subr.bf16.mxu0 0
      %2812 = vmatpush1.bf16.msra.mxu0 0
      %2813 = vmatprep.subr.bf16.mxu0 0
      %2814 = vmatpush1.bf16.msra.mxu0 0
      %2815 = vmatprep.subr.bf16.mxu0 0
      %2816 = vmatpush1.bf16.msra.mxu0 0
      %2817 = vmatprep.subr.bf16.mxu0 0
      %2818 = vmatpush1.bf16.msra.mxu0 0
      %2819 = vmatprep.subr.bf16.mxu0 0
      %2820 = vmatpush1.bf16.msra.mxu0 0
      %2821 = vmatprep.subr.bf16.mxu0 0
      %2822 = vmatpush1.bf16.msra.mxu0 0
      %2823 = vmatprep.subr.bf16.mxu0 0
      %2824 = vmatpush1.bf16.msra.mxu0 0
      %2825 = vmatprep.subr.bf16.mxu0 0
      %2826 = vmatpush1.bf16.msra.mxu0 0
      %2827 = vmatprep.subr.bf16.mxu0 0
      %2828 = vmatpush1.bf16.msra.mxu0 0
      %2829 = vmatprep.subr.bf16.mxu0 0
      %2830 = vmatpush1.bf16.msra.mxu0 0
      %2831 = vmatprep.subr.bf16.mxu0 0
      %2832 = vmatpush1.bf16.msra.mxu0 0
      %2833 = vmatprep.mubr.bf16.mxu0 0
      %2834 = vmatmul.mubr.bf16.gmra.mrb[0].mxu0 %v2751
      %v2835 = vpop.f32.mrb[0].mxu0
      %v2836 = vadd.f32 0.0, %v2835
      %v2837 = vpop.f32.mrb[0].mxu0
      %v2838 = vpop.f32.mrb[0].mxu0
      %v2839 = vadd.f32 0.0, %v2838
      %v2840 = vpop.f32.mrb[0].mxu0
      %2841 = vmatprep.mubr.bf16.mxu0 0
      %2842 = vmatmul.mubr.bf16.gmra.mrb[0].mxu0 %v2754
      %v2843 = vpop.f32.mrb[0].mxu0
      %v2844 = vadd.f32 0.0, %v2843
      %v2845 = vpop.f32.mrb[0].mxu0
      %v2846 = vpop.f32.mrb[0].mxu0
      %v2847 = vadd.f32 0.0, %v2846
      %v2848 = vpop.f32.mrb[0].mxu0
      %2849 = vmatprep.mubr.bf16.mxu0 0
      %2850 = vmatmul.mubr.bf16.gmra.mrb[0].mxu0 %v2757
      %v2851 = vpop.f32.mrb[0].mxu0
      %v2852 = vadd.f32 0.0, %v2851
      %v2853 = vpop.f32.mrb[0].mxu0
      %v2854 = vpop.f32.mrb[0].mxu0
      %v2855 = vadd.f32 0.0, %v2854
      %v2856 = vpop.f32.mrb[0].mxu0
      %2857 = vmatprep.mubr.bf16.mxu0 0
      %2858 = vmatmul.mubr.bf16.gmra.mrb[0].mxu0 %v2760
      %v2859 = vpop.f32.mrb[0].mxu0
      %v2860 = vadd.f32 0.0, %v2859
      %v2861 = vpop.f32.mrb[0].mxu0
      %v2862 = vpop.f32.mrb[0].mxu0
      %v2863 = vadd.f32 0.0, %v2862
      %v2864 = vpop.f32.mrb[0].mxu0
      %2865 = vmatprep.mubr.bf16.mxu0 0
      %2866 = vmatmul.mubr.bf16.gmra.mrb[0].mxu0 %v2763
      %v2867 = vpop.f32.mrb[0].mxu0
      %v2868 = vadd.f32 0.0, %v2867
      %v2869 = vpop.f32.mrb[0].mxu0
      %v2870 = vpop.f32.mrb[0].mxu0
      %v2871 = vadd.f32 0.0, %v2870
      %v2872 = vpop.f32.mrb[0].mxu0
      %2873 = vmatprep.mubr.bf16.mxu0 0
      %2874 = vmatmul.mubr.bf16.gmra.mrb[0].mxu0 %v2766
      %v2875 = vpop.f32.mrb[0].mxu0
      %v2876 = vadd.f32 0.0, %v2875
      %v2877 = vpop.f32.mrb[0].mxu0
      %v2878 = vpop.f32.mrb[0].mxu0
      %v2879 = vadd.f32 0.0, %v2878
      %v2880 = vpop.f32.mrb[0].mxu0
      %2881 = vmatprep.mubr.bf16.mxu0 0
      %2882 = vmatmul.mubr.bf16.gmra.mrb[0].mxu0 %v2769
      %v2883 = vpop.f32.mrb[0].mxu0
      %v2884 = vadd.f32 0.0, %v2883
      %v2885 = vpop.f32.mrb[0].mxu0
      %v2886 = vpop.f32.mrb[0].mxu0
      %v2887 = vadd.f32 0.0, %v2886
      %v2888 = vpop.f32.mrb[0].mxu0
      %2889 = vmatprep.mubr.bf16.mxu0 0
      %2890 = vmatmul.mubr.bf16.gmra.mrb[0].mxu0 %v2772
      %v2891 = vpop.f32.mrb[0].mxu0
      %v2892 = vadd.f32 0.0, %v2891
      %v2893 = vpop.f32.mrb[0].mxu0
      %v2894 = vpop.f32.mrb[0].mxu0
      %v2895 = vadd.f32 0.0, %v2894
      %v2896 = vpop.f32.mrb[0].mxu0
      %2897 = vmatprep.mubr.bf16.mxu0 0
      %2898 = vmatmul.mubr.bf16.gmra.mrb[0].mxu0 %v2775
      %v2899 = vpop.f32.mrb[0].mxu0
      %v2900 = vadd.f32 0.0, %v2899
      %v2901 = vpop.f32.mrb[0].mxu0
      %v2902 = vpop.f32.mrb[0].mxu0
      %v2903 = vadd.f32 0.0, %v2902
      %v2904 = vpop.f32.mrb[0].mxu0
      %2905 = vmatprep.mubr.bf16.mxu0 0
      %2906 = vmatmul.mubr.bf16.gmra.mrb[0].mxu0 %v2778
      %v2907 = vpop.f32.mrb[0].mxu0
      %v2908 = vadd.f32 0.0, %v2907
      %v2909 = vpop.f32.mrb[0].mxu0
      %v2910 = vpop.f32.mrb[0].mxu0
      %v2911 = vadd.f32 0.0, %v2910
      %v2912 = vpop.f32.mrb[0].mxu0
      %2913 = vmatprep.mubr.bf16.mxu0 0
      %2914 = vmatmul.mubr.bf16.gmra.mrb[0].mxu0 %v2781
      %v2915 = vpop.f32.mrb[0].mxu0
      %v2916 = vadd.f32 0.0, %v2915
      %v2917 = vpop.f32.mrb[0].mxu0
      %v2918 = vpop.f32.mrb[0].mxu0
      %v2919 = vadd.f32 0.0, %v2918
      %v2920 = vpop.f32.mrb[0].mxu0
      %2921 = vmatprep.mubr.bf16.mxu0 0
      %2922 = vmatmul.mubr.bf16.gmra.mrb[0].mxu0 %v2784
      %v2923 = vpop.f32.mrb[0].mxu0
      %v2924 = vadd.f32 0.0, %v2923
      %v2925 = vpop.f32.mrb[0].mxu0
      %v2926 = vpop.f32.mrb[0].mxu0
      %v2927 = vadd.f32 0.0, %v2926
      %v2928 = vpop.f32.mrb[0].mxu0
      %2929 = vmatprep.mubr.bf16.mxu0 0
      %2930 = vmatmul.mubr.bf16.gmra.mrb[0].mxu0 %v2787
      %v2931 = vpop.f32.mrb[0].mxu0
      %v2932 = vadd.f32 0.0, %v2931
      %v2933 = vpop.f32.mrb[0].mxu0
      %v2934 = vpop.f32.mrb[0].mxu0
      %v2935 = vadd.f32 0.0, %v2934
      %v2936 = vpop.f32.mrb[0].mxu0
      %2937 = vmatprep.mubr.bf16.mxu0 0
      %2938 = vmatmul.mubr.bf16.gmra.mrb[0].mxu0 %v2790
      %v2939 = vpop.f32.mrb[0].mxu0
      %v2940 = vadd.f32 0.0, %v2939
      %v2941 = vpop.f32.mrb[0].mxu0
      %v2942 = vpop.f32.mrb[0].mxu0
      %v2943 = vadd.f32 0.0, %v2942
      %v2944 = vpop.f32.mrb[0].mxu0
      %2945 = vmatprep.mubr.bf16.mxu0 0
      %2946 = vmatmul.mubr.bf16.gmra.mrb[0].mxu0 %v2793
      %v2947 = vpop.f32.mrb[0].mxu0
      %v2948 = vadd.f32 0.0, %v2947
      %v2949 = vpop.f32.mrb[0].mxu0
      %v2950 = vpop.f32.mrb[0].mxu0
      %v2951 = vadd.f32 0.0, %v2950
      %v2952 = vpop.f32.mrb[0].mxu0
      %2953 = vmatprep.mubr.bf16.mxu0 0
      %2954 = vmatmul.mubr.bf16.gmra.mrb[0].mxu0 %v2796
      %v2955 = vpop.f32.mrb[0].mxu0
      %v2956 = vadd.f32 0.0, %v2955
      %v2957 = vpop.f32.mrb[0].mxu0
      %v2958 = vpop.f32.mrb[0].mxu0
      %v2959 = vadd.f32 0.0, %v2958
      %v2960 = vpop.f32.mrb[0].mxu0
      %2961 = vdwg.mxu0
      %v2962 = vadd.f32 %v2217, %v2836
      %v2963 = vadd.f32 %v2218, %v2839
      %v2964 = vadd.f32 %v2219, %v2844
      %v2965 = vadd.f32 %v2220, %v2847
      %v2966 = vadd.f32 %v2221, %v2852
      %v2967 = vadd.f32 %v2222, %v2855
      %v2968 = vadd.f32 %v2223, %v2860
      %v2969 = vadd.f32 %v2224, %v2863
      %v2970 = vadd.f32 %v2225, %v2868
      %v2971 = vadd.f32 %v2226, %v2871
      %v2972 = vadd.f32 %v2227, %v2876
      %v2973 = vadd.f32 %v2228, %v2879
      %v2974 = vadd.f32 %v2229, %v2884
      %v2975 = vadd.f32 %v2230, %v2887
      %v2976 = vadd.f32 %v2231, %v2892
      %v2977 = vadd.f32 %v2232, %v2895
      %v2978 = vadd.f32 %v2233, %v2900
      %v2979 = vadd.f32 %v2234, %v2903
      %v2980 = vadd.f32 %v2235, %v2908
      %v2981 = vadd.f32 %v2236, %v2911
      %v2982 = vadd.f32 %v2237, %v2916
      %v2983 = vadd.f32 %v2238, %v2919
      %v2984 = vadd.f32 %v2239, %v2924
      %v2985 = vadd.f32 %v2240, %v2927
      %v2986 = vadd.f32 %v2241, %v2932
      %v2987 = vadd.f32 %v2242, %v2935
      %v2988 = vadd.f32 %v2243, %v2940
      %v2989 = vadd.f32 %v2244, %v2943
      %v2990 = vadd.f32 %v2245, %v2948
      %v2991 = vadd.f32 %v2246, %v2951
      %v2992 = vadd.f32 %v2247, %v2956
      %v2993 = vadd.f32 %v2248, %v2959
      %v2994 = vld [vmem:[%s1871] sm:$0xe]
      %v2995 = vld [vmem:[%s1871 + $0xc] sm:$0xe]
      %v2996 = vld [vmem:[%s1871 + $0x18] sm:$0xe]
      %v2997 = vld [vmem:[%s1871 + $0x24] sm:$0xe]
      %v2998 = vld [vmem:[%s1871 + $0x30] sm:$0xe]
      %v2999 = vld [vmem:[%s1871 + $0x3c] sm:$0xe]
      %v3000 = vld [vmem:[%s1871 + $0x48] sm:$0xe]
      %v3001 = vld [vmem:[%s1871 + $0x54] sm:$0xe]
      %v3002 = vld [vmem:[%s1871 + $0x60] sm:$0xe]
      %v3003 = vld [vmem:[%s1871 + $0x6c] sm:$0xe]
      %v3004 = vld [vmem:[%s1871 + $0x78] sm:$0xe]
      %v3005 = vld [vmem:[%s1871 + $0x84] sm:$0xe]
      %v3006 = vld [vmem:[%s1871 + $0x90] sm:$0xe]
      %v3007 = vld [vmem:[%s1871 + $0x9c] sm:$0xe]
      %v3008 = vld [vmem:[%s1871 + $0xa8] sm:$0xe]
      %v3009 = vld [vmem:[%s1871 + $0xb4] sm:$0xe]
      %v3058 = vrot.slane %v2994, 5
      %v3059 = vrot.slane %v3058, 4
      %v3060 = vrot.slane %v2250, 5
      %v3061 = vsel %vm1442, %v3059, %v3060
      %v3062 = vrot.slane %v3060, 4
      %v3063 = vrot.slane %v2251, 5
      %v3064 = vsel %vm1442, %v3062, %v3063
      %v3065 = vrot.slane %v2995, 5
      %v3066 = vrot.slane %v3065, 4
      %v3067 = vrot.slane %v2253, 5
      %v3068 = vsel %vm1442, %v3066, %v3067
      %v3069 = vrot.slane %v3067, 4
      %v3070 = vrot.slane %v2254, 5
      %v3071 = vsel %vm1442, %v3069, %v3070
      %v3072 = vrot.slane %v2996, 5
      %v3073 = vrot.slane %v3072, 4
      %v3074 = vrot.slane %v2256, 5
      %v3075 = vsel %vm1442, %v3073, %v3074
      %v3076 = vrot.slane %v3074, 4
      %v3077 = vrot.slane %v2257, 5
      %v3078 = vsel %vm1442, %v3076, %v3077
      %v3079 = vrot.slane %v2997, 5
      %v3080 = vrot.slane %v3079, 4
      %v3081 = vrot.slane %v2259, 5
      %v3082 = vsel %vm1442, %v3080, %v3081
      %v3083 = vrot.slane %v3081, 4
      %v3084 = vrot.slane %v2260, 5
      %v3085 = vsel %vm1442, %v3083, %v3084
      %v3086 = vrot.slane %v2998, 5
      %v3087 = vrot.slane %v3086, 4
      %v3088 = vrot.slane %v2262, 5
      %v3089 = vsel %vm1442, %v3087, %v3088
      %v3090 = vrot.slane %v3088, 4
      %v3091 = vrot.slane %v2263, 5
      %v3092 = vsel %vm1442, %v3090, %v3091
      %v3093 = vrot.slane %v2999, 5
      %v3094 = vrot.slane %v3093, 4
      %v3095 = vrot.slane %v2265, 5
      %v3096 = vsel %vm1442, %v3094, %v3095
      %v3097 = vrot.slane %v3095, 4
      %v3098 = vrot.slane %v2266, 5
      %v3099 = vsel %vm1442, %v3097, %v3098
      %v3100 = vrot.slane %v3000, 5
      %v3101 = vrot.slane %v3100, 4
      %v3102 = vrot.slane %v2268, 5
      %v3103 = vsel %vm1442, %v3101, %v3102
      %v3104 = vrot.slane %v3102, 4
      %v3105 = vrot.slane %v2269, 5
      %v3106 = vsel %vm1442, %v3104, %v3105
      %v3107 = vrot.slane %v3001, 5
      %v3108 = vrot.slane %v3107, 4
      %v3109 = vrot.slane %v2271, 5
      %v3110 = vsel %vm1442, %v3108, %v3109
      %v3111 = vrot.slane %v3109, 4
      %v3112 = vrot.slane %v2272, 5
      %v3113 = vsel %vm1442, %v3111, %v3112
      %v3114 = vrot.slane %v3002, 5
      %v3115 = vrot.slane %v3114, 4
      %v3116 = vrot.slane %v2274, 5
      %v3117 = vsel %vm1442, %v3115, %v3116
      %v3118 = vrot.slane %v3116, 4
      %v3119 = vrot.slane %v2275, 5
      %v3120 = vsel %vm1442, %v3118, %v3119
      %v3121 = vrot.slane %v3003, 5
      %v3122 = vrot.slane %v3121, 4
      %v3123 = vrot.slane %v2277, 5
      %v3124 = vsel %vm1442, %v3122, %v3123
      %v3125 = vrot.slane %v3123, 4
      %v3126 = vrot.slane %v2278, 5
      %v3127 = vsel %vm1442, %v3125, %v3126
      %v3128 = vrot.slane %v3004, 5
      %v3129 = vrot.slane %v3128, 4
      %v3130 = vrot.slane %v2280, 5
      %v3131 = vsel %vm1442, %v3129, %v3130
      %v3132 = vrot.slane %v3130, 4
      %v3133 = vrot.slane %v2281, 5
      %v3134 = vsel %vm1442, %v3132, %v3133
      %v3135 = vrot.slane %v3005, 5
      %v3136 = vrot.slane %v3135, 4
      %v3137 = vrot.slane %v2283, 5
      %v3138 = vsel %vm1442, %v3136, %v3137
      %v3139 = vrot.slane %v3137, 4
      %v3140 = vrot.slane %v2284, 5
      %v3141 = vsel %vm1442, %v3139, %v3140
      %v3142 = vrot.slane %v3006, 5
      %v3143 = vrot.slane %v3142, 4
      %v3144 = vrot.slane %v2286, 5
      %v3145 = vsel %vm1442, %v3143, %v3144
      %v3146 = vrot.slane %v3144, 4
      %v3147 = vrot.slane %v2287, 5
      %v3148 = vsel %vm1442, %v3146, %v3147
      %v3149 = vrot.slane %v3007, 5
      %v3150 = vrot.slane %v3149, 4
      %v3151 = vrot.slane %v2289, 5
      %v3152 = vsel %vm1442, %v3150, %v3151
      %v3153 = vrot.slane %v3151, 4
      %v3154 = vrot.slane %v2290, 5
      %v3155 = vsel %vm1442, %v3153, %v3154
      %v3156 = vrot.slane %v3008, 5
      %v3157 = vrot.slane %v3156, 4
      %v3158 = vrot.slane %v2292, 5
      %v3159 = vsel %vm1442, %v3157, %v3158
      %v3160 = vrot.slane %v3158, 4
      %v3161 = vrot.slane %v2293, 5
      %v3162 = vsel %vm1442, %v3160, %v3161
      %v3163 = vrot.slane %v3009, 5
      %v3164 = vrot.slane %v3163, 4
      %v3165 = vrot.slane %v2295, 5
      %v3166 = vsel %vm1442, %v3164, %v3165
      %v3167 = vrot.slane %v3165, 4
      %v3168 = vrot.slane %v2296, 5
      %v3169 = vsel %vm1442, %v3167, %v3168
      %s3170 = scalar_lea.vmem %s1, 100
      %v3171 = vld [vmem:[%s3170] sm:$0xf]
      %v3172 = vld [vmem:[%s3170 + $0x4] sm:$0xf]
      %v3173 = vld [vmem:[%s3170 + $0x8] sm:$0xf]
      %v3174 = vld [vmem:[%s3170 + $0xc] sm:$0xf]
      %v3175 = vld [vmem:[%s3170 + $0x10] sm:$0xf]
      %v3176 = vunpack.c.l.b16 %v3061
      %v3177 = vunpack.c.l.b16 %v3064
      %v3178 = vunpack.c.l.b16 %v3068
      %v3179 = vunpack.c.l.b16 %v3071
      %v3180 = vunpack.c.l.b16 %v3075
      %v3181 = vunpack.c.l.b16 %v3078
      %v3182 = vunpack.c.l.b16 %v3082
      %v3183 = vunpack.c.l.b16 %v3085
      %v3184 = vunpack.c.l.b16 %v3089
      %v3185 = vunpack.c.l.b16 %v3092
      %v3186 = vunpack.c.l.b16 %v3096
      %v3187 = vunpack.c.l.b16 %v3099
      %v3188 = vunpack.c.l.b16 %v3103
      %v3189 = vunpack.c.l.b16 %v3106
      %v3190 = vunpack.c.l.b16 %v3110
      %v3191 = vunpack.c.l.b16 %v3113
      %v3192 = vunpack.c.l.b16 %v3117
      %v3193 = vunpack.c.l.b16 %v3120
      %v3194 = vunpack.c.l.b16 %v3124
      %v3195 = vunpack.c.l.b16 %v3127
      %v3196 = vunpack.c.l.b16 %v3131
      %v3197 = vunpack.c.l.b16 %v3134
      %v3198 = vunpack.c.l.b16 %v3138
      %v3199 = vunpack.c.l.b16 %v3141
      %v3200 = vunpack.c.l.b16 %v3145
      %v3201 = vunpack.c.l.b16 %v3148
      %v3202 = vunpack.c.l.b16 %v3152
      %v3203 = vunpack.c.l.b16 %v3155
      %v3204 = vunpack.c.l.b16 %v3159
      %v3205 = vunpack.c.l.b16 %v3162
      %v3206 = vunpack.c.l.b16 %v3166
      %v3207 = vunpack.c.l.b16 %v3169
      %v3208 = vpack.c.b16 %v3177, %v3176
      %v3209 = vpack.c.b16 %v3179, %v3178
      %v3210 = vpack.c.b16 %v3181, %v3180
      %v3211 = vpack.c.b16 %v3183, %v3182
      %v3212 = vpack.c.b16 %v3185, %v3184
      %v3213 = vpack.c.b16 %v3187, %v3186
      %v3214 = vpack.c.b16 %v3189, %v3188
      %v3215 = vpack.c.b16 %v3191, %v3190
      %v3216 = vpack.c.b16 %v3193, %v3192
      %v3217 = vpack.c.b16 %v3195, %v3194
      %v3218 = vpack.c.b16 %v3197, %v3196
      %v3219 = vpack.c.b16 %v3199, %v3198
      %v3220 = vpack.c.b16 %v3201, %v3200
      %v3221 = vpack.c.b16 %v3203, %v3202
      %v3222 = vpack.c.b16 %v3205, %v3204
      %v3223 = vpack.c.b16 %v3207, %v3206
      %v3229 = vunpack.c.l.b16 %v3171
      %v3230 = vunpack.c.l.b16 %v3172
      %v3231 = vunpack.c.l.b16 %v3173
      %v3232 = vunpack.c.l.b16 %v3174
      %v3233 = vunpack.c.l.b16 %v3175
      %v3234 = vpack.c.b16 %v3230, %v3229
      %v3235 = vpack.c.b16 %v3232, %v3231
      %v3236 = vpack.c.b16 %v3233, %v3233
      %v3240 = vsel %vm871, %v3208, 0
      %v3243 = vsel %vm871, %v3209, 0
      %v3246 = vsel %vm871, %v3210, 0
      %v3249 = vsel %vm871, %v3211, 0
      %v3252 = vsel %vm871, %v3212, 0
      %v3255 = vsel %vm871, %v3213, 0
      %v3258 = vsel %vm871, %v3214, 0
      %v3261 = vsel %vm871, %v3215, 0
      %v3264 = vsel %vm871, %v3216, 0
      %v3267 = vsel %vm871, %v3217, 0
      %v3270 = vsel %vm871, %v3218, 0
      %v3273 = vsel %vm871, %v3219, 0
      %v3276 = vsel %vm871, %v3220, 0
      %v3279 = vsel %vm871, %v3221, 0
      %v3282 = vsel %vm871, %v3222, 0
      %v3285 = vsel %vm871, %v3223, 0
      %v3288 = vsel %vm920, %v3236, 0
      %3290 = vmatprep.subr.bf16.mxu0 0
      %3291 = vmatpush1.bf16.msra.mxu0 %v3234
      %3292 = vmatprep.subr.bf16.mxu0 0
      %3293 = vmatpush1.bf16.msra.mxu0 %v3235
      %3294 = vmatprep.subr.bf16.mxu0 0
      %3295 = vmatpush1.bf16.msra.mxu0 %v3288
      %3296 = vmatprep.subr.bf16.mxu0 0
      %3297 = vmatpush1.bf16.msra.mxu0 0
      %3298 = vmatprep.subr.bf16.mxu0 0
      %3299 = vmatpush1.bf16.msra.mxu0 0
      %3300 = vmatprep.subr.bf16.mxu0 0
      %3301 = vmatpush1.bf16.msra.mxu0 0
      %3302 = vmatprep.subr.bf16.mxu0 0
      %3303 = vmatpush1.bf16.msra.mxu0 0
      %3304 = vmatprep.subr.bf16.mxu0 0
      %3305 = vmatpush1.bf16.msra.mxu0 0
      %3306 = vmatprep.subr.bf16.mxu0 0
      %3307 = vmatpush1.bf16.msra.mxu0 0
      %3308 = vmatprep.subr.bf16.mxu0 0
      %3309 = vmatpush1.bf16.msra.mxu0 0
      %3310 = vmatprep.subr.bf16.mxu0 0
      %3311 = vmatpush1.bf16.msra.mxu0 0
      %3312 = vmatprep.subr.bf16.mxu0 0
      %3313 = vmatpush1.bf16.msra.mxu0 0
      %3314 = vmatprep.subr.bf16.mxu0 0
      %3315 = vmatpush1.bf16.msra.mxu0 0
      %3316 = vmatprep.subr.bf16.mxu0 0
      %3317 = vmatpush1.bf16.msra.mxu0 0
      %3318 = vmatprep.subr.bf16.mxu0 0
      %3319 = vmatpush1.bf16.msra.mxu0 0
      %3320 = vmatprep.subr.bf16.mxu0 0
      %3321 = vmatpush1.bf16.msra.mxu0 0
      %3322 = vmatprep.mubr.bf16.mxu0 0
      %3323 = vmatmul.mubr.bf16.gmra.mrb[0].mxu0 %v3240
      %v3324 = vpop.f32.mrb[0].mxu0
      %v3325 = vadd.f32 0.0, %v3324
      %v3326 = vpop.f32.mrb[0].mxu0
      %v3327 = vpop.f32.mrb[0].mxu0
      %v3328 = vadd.f32 0.0, %v3327
      %v3329 = vpop.f32.mrb[0].mxu0
      %3330 = vmatprep.mubr.bf16.mxu0 0
      %3331 = vmatmul.mubr.bf16.gmra.mrb[0].mxu0 %v3243
      %v3332 = vpop.f32.mrb[0].mxu0
      %v3333 = vadd.f32 0.0, %v3332
      %v3334 = vpop.f32.mrb[0].mxu0
      %v3335 = vpop.f32.mrb[0].mxu0
      %v3336 = vadd.f32 0.0, %v3335
      %v3337 = vpop.f32.mrb[0].mxu0
      %3338 = vmatprep.mubr.bf16.mxu0 0
      %3339 = vmatmul.mubr.bf16.gmra.mrb[0].mxu0 %v3246
      %v3340 = vpop.f32.mrb[0].mxu0
      %v3341 = vadd.f32 0.0, %v3340
      %v3342 = vpop.f32.mrb[0].mxu0
      %v3343 = vpop.f32.mrb[0].mxu0
      %v3344 = vadd.f32 0.0, %v3343
      %v3345 = vpop.f32.mrb[0].mxu0
      %3346 = vmatprep.mubr.bf16.mxu0 0
      %3347 = vmatmul.mubr.bf16.gmra.mrb[0].mxu0 %v3249
      %v3348 = vpop.f32.mrb[0].mxu0
      %v3349 = vadd.f32 0.0, %v3348
      %v3350 = vpop.f32.mrb[0].mxu0
      %v3351 = vpop.f32.mrb[0].mxu0
      %v3352 = vadd.f32 0.0, %v3351
      %v3353 = vpop.f32.mrb[0].mxu0
      %3354 = vmatprep.mubr.bf16.mxu0 0
      %3355 = vmatmul.mubr.bf16.gmra.mrb[0].mxu0 %v3252
      %v3356 = vpop.f32.mrb[0].mxu0
      %v3357 = vadd.f32 0.0, %v3356
      %v3358 = vpop.f32.mrb[0].mxu0
      %v3359 = vpop.f32.mrb[0].mxu0
      %v3360 = vadd.f32 0.0, %v3359
      %v3361 = vpop.f32.mrb[0].mxu0
      %3362 = vmatprep.mubr.bf16.mxu0 0
      %3363 = vmatmul.mubr.bf16.gmra.mrb[0].mxu0 %v3255
      %v3364 = vpop.f32.mrb[0].mxu0
      %v3365 = vadd.f32 0.0, %v3364
      %v3366 = vpop.f32.mrb[0].mxu0
      %v3367 = vpop.f32.mrb[0].mxu0
      %v3368 = vadd.f32 0.0, %v3367
      %v3369 = vpop.f32.mrb[0].mxu0
      %3370 = vmatprep.mubr.bf16.mxu0 0
      %3371 = vmatmul.mubr.bf16.gmra.mrb[0].mxu0 %v3258
      %v3372 = vpop.f32.mrb[0].mxu0
      %v3373 = vadd.f32 0.0, %v3372
      %v3374 = vpop.f32.mrb[0].mxu0
      %v3375 = vpop.f32.mrb[0].mxu0
      %v3376 = vadd.f32 0.0, %v3375
      %v3377 = vpop.f32.mrb[0].mxu0
      %3378 = vmatprep.mubr.bf16.mxu0 0
      %3379 = vmatmul.mubr.bf16.gmra.mrb[0].mxu0 %v3261
      %v3380 = vpop.f32.mrb[0].mxu0
      %v3381 = vadd.f32 0.0, %v3380
      %v3382 = vpop.f32.mrb[0].mxu0
      %v3383 = vpop.f32.mrb[0].mxu0
      %v3384 = vadd.f32 0.0, %v3383
      %v3385 = vpop.f32.mrb[0].mxu0
      %3386 = vmatprep.mubr.bf16.mxu0 0
      %3387 = vmatmul.mubr.bf16.gmra.mrb[0].mxu0 %v3264
      %v3388 = vpop.f32.mrb[0].mxu0
      %v3389 = vadd.f32 0.0, %v3388
      %v3390 = vpop.f32.mrb[0].mxu0
      %v3391 = vpop.f32.mrb[0].mxu0
      %v3392 = vadd.f32 0.0, %v3391
      %v3393 = vpop.f32.mrb[0].mxu0
      %3394 = vmatprep.mubr.bf16.mxu0 0
      %3395 = vmatmul.mubr.bf16.gmra.mrb[0].mxu0 %v3267
      %v3396 = vpop.f32.mrb[0].mxu0
      %v3397 = vadd.f32 0.0, %v3396
      %v3398 = vpop.f32.mrb[0].mxu0
      %v3399 = vpop.f32.mrb[0].mxu0
      %v3400 = vadd.f32 0.0, %v3399
      %v3401 = vpop.f32.mrb[0].mxu0
      %3402 = vmatprep.mubr.bf16.mxu0 0
      %3403 = vmatmul.mubr.bf16.gmra.mrb[0].mxu0 %v3270
      %v3404 = vpop.f32.mrb[0].mxu0
      %v3405 = vadd.f32 0.0, %v3404
      %v3406 = vpop.f32.mrb[0].mxu0
      %v3407 = vpop.f32.mrb[0].mxu0
      %v3408 = vadd.f32 0.0, %v3407
      %v3409 = vpop.f32.mrb[0].mxu0
      %3410 = vmatprep.mubr.bf16.mxu0 0
      %3411 = vmatmul.mubr.bf16.gmra.mrb[0].mxu0 %v3273
      %v3412 = vpop.f32.mrb[0].mxu0
      %v3413 = vadd.f32 0.0, %v3412
      %v3414 = vpop.f32.mrb[0].mxu0
      %v3415 = vpop.f32.mrb[0].mxu0
      %v3416 = vadd.f32 0.0, %v3415
      %v3417 = vpop.f32.mrb[0].mxu0
      %3418 = vmatprep.mubr.bf16.mxu0 0
      %3419 = vmatmul.mubr.bf16.gmra.mrb[0].mxu0 %v3276
      %v3420 = vpop.f32.mrb[0].mxu0
      %v3421 = vadd.f32 0.0, %v3420
      %v3422 = vpop.f32.mrb[0].mxu0
      %v3423 = vpop.f32.mrb[0].mxu0
      %v3424 = vadd.f32 0.0, %v3423
      %v3425 = vpop.f32.mrb[0].mxu0
      %3426 = vmatprep.mubr.bf16.mxu0 0
      %3427 = vmatmul.mubr.bf16.gmra.mrb[0].mxu0 %v3279
      %v3428 = vpop.f32.mrb[0].mxu0
      %v3429 = vadd.f32 0.0, %v3428
      %v3430 = vpop.f32.mrb[0].mxu0
      %v3431 = vpop.f32.mrb[0].mxu0
      %v3432 = vadd.f32 0.0, %v3431
      %v3433 = vpop.f32.mrb[0].mxu0
      %3434 = vmatprep.mubr.bf16.mxu0 0
      %3435 = vmatmul.mubr.bf16.gmra.mrb[0].mxu0 %v3282
      %v3436 = vpop.f32.mrb[0].mxu0
      %v3437 = vadd.f32 0.0, %v3436
      %v3438 = vpop.f32.mrb[0].mxu0
      %v3439 = vpop.f32.mrb[0].mxu0
      %v3440 = vadd.f32 0.0, %v3439
      %v3441 = vpop.f32.mrb[0].mxu0
      %3442 = vmatprep.mubr.bf16.mxu0 0
      %3443 = vmatmul.mubr.bf16.gmra.mrb[0].mxu0 %v3285
      %v3444 = vpop.f32.mrb[0].mxu0
      %v3445 = vadd.f32 0.0, %v3444
      %v3446 = vpop.f32.mrb[0].mxu0
      %v3447 = vpop.f32.mrb[0].mxu0
      %v3448 = vadd.f32 0.0, %v3447
      %v3449 = vpop.f32.mrb[0].mxu0
      %3450 = vdwg.mxu0
      %v3451 = vadd.f32 %v2962, %v3325
      %v3452 = vadd.f32 %v2963, %v3328
      %v3453 = vadd.f32 %v2964, %v3333
      %v3454 = vadd.f32 %v2965, %v3336
      %v3455 = vadd.f32 %v2966, %v3341
      %v3456 = vadd.f32 %v2967, %v3344
      %v3457 = vadd.f32 %v2968, %v3349
      %v3458 = vadd.f32 %v2969, %v3352
      %v3459 = vadd.f32 %v2970, %v3357
      %v3460 = vadd.f32 %v2971, %v3360
      %v3461 = vadd.f32 %v2972, %v3365
      %v3462 = vadd.f32 %v2973, %v3368
      %v3463 = vadd.f32 %v2974, %v3373
      %v3464 = vadd.f32 %v2975, %v3376
      %v3465 = vadd.f32 %v2976, %v3381
      %v3466 = vadd.f32 %v2977, %v3384
      %v3467 = vadd.f32 %v2978, %v3389
      %v3468 = vadd.f32 %v2979, %v3392
      %v3469 = vadd.f32 %v2980, %v3397
      %v3470 = vadd.f32 %v2981, %v3400
      %v3471 = vadd.f32 %v2982, %v3405
      %v3472 = vadd.f32 %v2983, %v3408
      %v3473 = vadd.f32 %v2984, %v3413
      %v3474 = vadd.f32 %v2985, %v3416
      %v3475 = vadd.f32 %v2986, %v3421
      %v3476 = vadd.f32 %v2987, %v3424
      %v3477 = vadd.f32 %v2988, %v3429
      %v3478 = vadd.f32 %v2989, %v3432
      %v3479 = vadd.f32 %v2990, %v3437
      %v3480 = vadd.f32 %v2991, %v3440
      %v3481 = vadd.f32 %v2992, %v3445
      %v3482 = vadd.f32 %v2993, %v3448
      %s3483 = sadd.s32 %s358, 2
      %s3484 = smul.u32 %s3483, 3
      %s3485 = smul.addr %s3484, 4
      %s3486 = scalar_lea.vmem %s320, %s3485
      %v3487 = vld [vmem:[%s3486] sm:$0xf]
      %v3488 = vld [vmem:[%s3486 + $0x4] sm:$0xf]
      %v3489 = vld [vmem:[%s3486 + $0xc] sm:$0xf]
      %v3490 = vld [vmem:[%s3486 + $0x10] sm:$0xf]
      %v3491 = vld [vmem:[%s3486 + $0x18] sm:$0xf]
      %v3492 = vld [vmem:[%s3486 + $0x1c] sm:$0xf]
      %v3493 = vld [vmem:[%s3486 + $0x24] sm:$0xf]
      %v3494 = vld [vmem:[%s3486 + $0x28] sm:$0xf]
      %v3495 = vld [vmem:[%s3486 + $0x30] sm:$0xf]
      %v3496 = vld [vmem:[%s3486 + $0x34] sm:$0xf]
      %v3497 = vld [vmem:[%s3486 + $0x3c] sm:$0xf]
      %v3498 = vld [vmem:[%s3486 + $0x40] sm:$0xf]
      %v3499 = vld [vmem:[%s3486 + $0x48] sm:$0xf]
      %v3500 = vld [vmem:[%s3486 + $0x4c] sm:$0xf]
      %v3501 = vld [vmem:[%s3486 + $0x54] sm:$0xf]
      %v3502 = vld [vmem:[%s3486 + $0x58] sm:$0xf]
      %v3503 = vld [vmem:[%s3486 + $0x60] sm:$0xf]
      %v3504 = vld [vmem:[%s3486 + $0x64] sm:$0xf]
      %v3505 = vld [vmem:[%s3486 + $0x6c] sm:$0xf]
      %v3506 = vld [vmem:[%s3486 + $0x70] sm:$0xf]
      %v3507 = vld [vmem:[%s3486 + $0x78] sm:$0xf]
      %v3508 = vld [vmem:[%s3486 + $0x7c] sm:$0xf]
      %v3509 = vld [vmem:[%s3486 + $0x84] sm:$0xf]
      %v3510 = vld [vmem:[%s3486 + $0x88] sm:$0xf]
      %v3511 = vld [vmem:[%s3486 + $0x90] sm:$0xf]
      %v3512 = vld [vmem:[%s3486 + $0x94] sm:$0xf]
      %v3513 = vld [vmem:[%s3486 + $0x9c] sm:$0xf]
      %v3514 = vld [vmem:[%s3486 + $0xa0] sm:$0xf]
      %v3515 = vld [vmem:[%s3486 + $0xa8] sm:$0xf]
      %v3516 = vld [vmem:[%s3486 + $0xac] sm:$0xf]
      %v3517 = vld [vmem:[%s3486 + $0xb4] sm:$0xf]
      %v3518 = vld [vmem:[%s3486 + $0xb8] sm:$0xf]
      %s3519 = scalar_lea.vmem %s1, 120
      %v3520 = vld [vmem:[%s3519] sm:$0xf]
      %v3521 = vld [vmem:[%s3519 + $0x4] sm:$0xf]
      %v3522 = vld [vmem:[%s3519 + $0x8] sm:$0xf]
      %v3523 = vld [vmem:[%s3519 + $0xc] sm:$0xf]
      %v3524 = vld [vmem:[%s3519 + $0x10] sm:$0xf]
      %v3557 = vunpack.c.l.b16 %v3487
      %v3558 = vunpack.c.l.b16 %v3488
      %v3559 = vunpack.c.l.b16 %v3489
      %v3560 = vunpack.c.l.b16 %v3490
      %v3561 = vunpack.c.l.b16 %v3491
      %v3562 = vunpack.c.l.b16 %v3492
      %v3563 = vunpack.c.l.b16 %v3493
      %v3564 = vunpack.c.l.b16 %v3494
      %v3565 = vunpack.c.l.b16 %v3495
      %v3566 = vunpack.c.l.b16 %v3496
      %v3567 = vunpack.c.l.b16 %v3497
      %v3568 = vunpack.c.l.b16 %v3498
      %v3569 = vunpack.c.l.b16 %v3499
      %v3570 = vunpack.c.l.b16 %v3500
      %v3571 = vunpack.c.l.b16 %v3501
      %v3572 = vunpack.c.l.b16 %v3502
      %v3573 = vunpack.c.l.b16 %v3503
      %v3574 = vunpack.c.l.b16 %v3504
      %v3575 = vunpack.c.l.b16 %v3505
      %v3576 = vunpack.c.l.b16 %v3506
      %v3577 = vunpack.c.l.b16 %v3507
      %v3578 = vunpack.c.l.b16 %v3508
      %v3579 = vunpack.c.l.b16 %v3509
      %v3580 = vunpack.c.l.b16 %v3510
      %v3581 = vunpack.c.l.b16 %v3511
      %v3582 = vunpack.c.l.b16 %v3512
      %v3583 = vunpack.c.l.b16 %v3513
      %v3584 = vunpack.c.l.b16 %v3514
      %v3585 = vunpack.c.l.b16 %v3515
      %v3586 = vunpack.c.l.b16 %v3516
      %v3587 = vunpack.c.l.b16 %v3517
      %v3588 = vunpack.c.l.b16 %v3518
      %v3589 = vpack.c.b16 %v3558, %v3557
      %v3590 = vpack.c.b16 %v3560, %v3559
      %v3591 = vpack.c.b16 %v3562, %v3561
      %v3592 = vpack.c.b16 %v3564, %v3563
      %v3593 = vpack.c.b16 %v3566, %v3565
      %v3594 = vpack.c.b16 %v3568, %v3567
      %v3595 = vpack.c.b16 %v3570, %v3569
      %v3596 = vpack.c.b16 %v3572, %v3571
      %v3597 = vpack.c.b16 %v3574, %v3573
      %v3598 = vpack.c.b16 %v3576, %v3575
      %v3599 = vpack.c.b16 %v3578, %v3577
      %v3600 = vpack.c.b16 %v3580, %v3579
      %v3601 = vpack.c.b16 %v3582, %v3581
      %v3602 = vpack.c.b16 %v3584, %v3583
      %v3603 = vpack.c.b16 %v3586, %v3585
      %v3604 = vpack.c.b16 %v3588, %v3587
      %v3610 = vunpack.c.l.b16 %v3520
      %v3611 = vunpack.c.l.b16 %v3521
      %v3612 = vunpack.c.l.b16 %v3522
      %v3613 = vunpack.c.l.b16 %v3523
      %v3614 = vunpack.c.l.b16 %v3524
      %v3615 = vpack.c.b16 %v3611, %v3610
      %v3616 = vpack.c.b16 %v3613, %v3612
      %v3617 = vpack.c.b16 %v3614, %v3614
      %v3621 = vsel %vm871, %v3589, 0
      %v3624 = vsel %vm871, %v3590, 0
      %v3627 = vsel %vm871, %v3591, 0
      %v3630 = vsel %vm871, %v3592, 0
      %v3633 = vsel %vm871, %v3593, 0
      %v3636 = vsel %vm871, %v3594, 0
      %v3639 = vsel %vm871, %v3595, 0
      %v3642 = vsel %vm871, %v3596, 0
      %v3645 = vsel %vm871, %v3597, 0
      %v3648 = vsel %vm871, %v3598, 0
      %v3651 = vsel %vm871, %v3599, 0
      %v3654 = vsel %vm871, %v3600, 0
      %v3657 = vsel %vm871, %v3601, 0
      %v3660 = vsel %vm871, %v3602, 0
      %v3663 = vsel %vm871, %v3603, 0
      %v3666 = vsel %vm871, %v3604, 0
      %v3669 = vsel %vm920, %v3617, 0
      %3671 = vmatprep.subr.bf16.mxu0 0
      %3672 = vmatpush1.bf16.msra.mxu0 %v3615
      %3673 = vmatprep.subr.bf16.mxu0 0
      %3674 = vmatpush1.bf16.msra.mxu0 %v3616
      %3675 = vmatprep.subr.bf16.mxu0 0
      %3676 = vmatpush1.bf16.msra.mxu0 %v3669
      %3677 = vmatprep.subr.bf16.mxu0 0
      %3678 = vmatpush1.bf16.msra.mxu0 0
      %3679 = vmatprep.subr.bf16.mxu0 0
      %3680 = vmatpush1.bf16.msra.mxu0 0
      %3681 = vmatprep.subr.bf16.mxu0 0
      %3682 = vmatpush1.bf16.msra.mxu0 0
      %3683 = vmatprep.subr.bf16.mxu0 0
      %3684 = vmatpush1.bf16.msra.mxu0 0
      %3685 = vmatprep.subr.bf16.mxu0 0
      %3686 = vmatpush1.bf16.msra.mxu0 0
      %3687 = vmatprep.subr.bf16.mxu0 0
      %3688 = vmatpush1.bf16.msra.mxu0 0
      %3689 = vmatprep.subr.bf16.mxu0 0
      %3690 = vmatpush1.bf16.msra.mxu0 0
      %3691 = vmatprep.subr.bf16.mxu0 0
      %3692 = vmatpush1.bf16.msra.mxu0 0
      %3693 = vmatprep.subr.bf16.mxu0 0
      %3694 = vmatpush1.bf16.msra.mxu0 0
      %3695 = vmatprep.subr.bf16.mxu0 0
      %3696 = vmatpush1.bf16.msra.mxu0 0
      %3697 = vmatprep.subr.bf16.mxu0 0
      %3698 = vmatpush1.bf16.msra.mxu0 0
      %3699 = vmatprep.subr.bf16.mxu0 0
      %3700 = vmatpush1.bf16.msra.mxu0 0
      %3701 = vmatprep.subr.bf16.mxu0 0
      %3702 = vmatpush1.bf16.msra.mxu0 0
      %3703 = vmatprep.mubr.bf16.mxu0 0
      %3704 = vmatmul.mubr.bf16.gmra.mrb[0].mxu0 %v3621
      %v3705 = vpop.f32.mrb[0].mxu0
      %v3706 = vadd.f32 0.0, %v3705
      %v3707 = vpop.f32.mrb[0].mxu0
      %v3708 = vpop.f32.mrb[0].mxu0
      %v3709 = vadd.f32 0.0, %v3708
      %v3710 = vpop.f32.mrb[0].mxu0
      %3711 = vmatprep.mubr.bf16.mxu0 0
      %3712 = vmatmul.mubr.bf16.gmra.mrb[0].mxu0 %v3624
      %v3713 = vpop.f32.mrb[0].mxu0
      %v3714 = vadd.f32 0.0, %v3713
      %v3715 = vpop.f32.mrb[0].mxu0
      %v3716 = vpop.f32.mrb[0].mxu0
      %v3717 = vadd.f32 0.0, %v3716
      %v3718 = vpop.f32.mrb[0].mxu0
      %3719 = vmatprep.mubr.bf16.mxu0 0
      %3720 = vmatmul.mubr.bf16.gmra.mrb[0].mxu0 %v3627
      %v3721 = vpop.f32.mrb[0].mxu0
      %v3722 = vadd.f32 0.0, %v3721
      %v3723 = vpop.f32.mrb[0].mxu0
      %v3724 = vpop.f32.mrb[0].mxu0
      %v3725 = vadd.f32 0.0, %v3724
      %v3726 = vpop.f32.mrb[0].mxu0
      %3727 = vmatprep.mubr.bf16.mxu0 0
      %3728 = vmatmul.mubr.bf16.gmra.mrb[0].mxu0 %v3630
      %v3729 = vpop.f32.mrb[0].mxu0
      %v3730 = vadd.f32 0.0, %v3729
      %v3731 = vpop.f32.mrb[0].mxu0
      %v3732 = vpop.f32.mrb[0].mxu0
      %v3733 = vadd.f32 0.0, %v3732
      %v3734 = vpop.f32.mrb[0].mxu0
      %3735 = vmatprep.mubr.bf16.mxu0 0
      %3736 = vmatmul.mubr.bf16.gmra.mrb[0].mxu0 %v3633
      %v3737 = vpop.f32.mrb[0].mxu0
      %v3738 = vadd.f32 0.0, %v3737
      %v3739 = vpop.f32.mrb[0].mxu0
      %v3740 = vpop.f32.mrb[0].mxu0
      %v3741 = vadd.f32 0.0, %v3740
      %v3742 = vpop.f32.mrb[0].mxu0
      %3743 = vmatprep.mubr.bf16.mxu0 0
      %3744 = vmatmul.mubr.bf16.gmra.mrb[0].mxu0 %v3636
      %v3745 = vpop.f32.mrb[0].mxu0
      %v3746 = vadd.f32 0.0, %v3745
      %v3747 = vpop.f32.mrb[0].mxu0
      %v3748 = vpop.f32.mrb[0].mxu0
      %v3749 = vadd.f32 0.0, %v3748
      %v3750 = vpop.f32.mrb[0].mxu0
      %3751 = vmatprep.mubr.bf16.mxu0 0
      %3752 = vmatmul.mubr.bf16.gmra.mrb[0].mxu0 %v3639
      %v3753 = vpop.f32.mrb[0].mxu0
      %v3754 = vadd.f32 0.0, %v3753
      %v3755 = vpop.f32.mrb[0].mxu0
      %v3756 = vpop.f32.mrb[0].mxu0
      %v3757 = vadd.f32 0.0, %v3756
      %v3758 = vpop.f32.mrb[0].mxu0
      %3759 = vmatprep.mubr.bf16.mxu0 0
      %3760 = vmatmul.mubr.bf16.gmra.mrb[0].mxu0 %v3642
      %v3761 = vpop.f32.mrb[0].mxu0
      %v3762 = vadd.f32 0.0, %v3761
      %v3763 = vpop.f32.mrb[0].mxu0
      %v3764 = vpop.f32.mrb[0].mxu0
      %v3765 = vadd.f32 0.0, %v3764
      %v3766 = vpop.f32.mrb[0].mxu0
      %3767 = vmatprep.mubr.bf16.mxu0 0
      %3768 = vmatmul.mubr.bf16.gmra.mrb[0].mxu0 %v3645
      %v3769 = vpop.f32.mrb[0].mxu0
      %v3770 = vadd.f32 0.0, %v3769
      %v3771 = vpop.f32.mrb[0].mxu0
      %v3772 = vpop.f32.mrb[0].mxu0
      %v3773 = vadd.f32 0.0, %v3772
      %v3774 = vpop.f32.mrb[0].mxu0
      %3775 = vmatprep.mubr.bf16.mxu0 0
      %3776 = vmatmul.mubr.bf16.gmra.mrb[0].mxu0 %v3648
      %v3777 = vpop.f32.mrb[0].mxu0
      %v3778 = vadd.f32 0.0, %v3777
      %v3779 = vpop.f32.mrb[0].mxu0
      %v3780 = vpop.f32.mrb[0].mxu0
      %v3781 = vadd.f32 0.0, %v3780
      %v3782 = vpop.f32.mrb[0].mxu0
      %3783 = vmatprep.mubr.bf16.mxu0 0
      %3784 = vmatmul.mubr.bf16.gmra.mrb[0].mxu0 %v3651
      %v3785 = vpop.f32.mrb[0].mxu0
      %v3786 = vadd.f32 0.0, %v3785
      %v3787 = vpop.f32.mrb[0].mxu0
      %v3788 = vpop.f32.mrb[0].mxu0
      %v3789 = vadd.f32 0.0, %v3788
      %v3790 = vpop.f32.mrb[0].mxu0
      %3791 = vmatprep.mubr.bf16.mxu0 0
      %3792 = vmatmul.mubr.bf16.gmra.mrb[0].mxu0 %v3654
      %v3793 = vpop.f32.mrb[0].mxu0
      %v3794 = vadd.f32 0.0, %v3793
      %v3795 = vpop.f32.mrb[0].mxu0
      %v3796 = vpop.f32.mrb[0].mxu0
      %v3797 = vadd.f32 0.0, %v3796
      %v3798 = vpop.f32.mrb[0].mxu0
      %3799 = vmatprep.mubr.bf16.mxu0 0
      %3800 = vmatmul.mubr.bf16.gmra.mrb[0].mxu0 %v3657
      %v3801 = vpop.f32.mrb[0].mxu0
      %v3802 = vadd.f32 0.0, %v3801
      %v3803 = vpop.f32.mrb[0].mxu0
      %v3804 = vpop.f32.mrb[0].mxu0
      %v3805 = vadd.f32 0.0, %v3804
      %v3806 = vpop.f32.mrb[0].mxu0
      %3807 = vmatprep.mubr.bf16.mxu0 0
      %3808 = vmatmul.mubr.bf16.gmra.mrb[0].mxu0 %v3660
      %v3809 = vpop.f32.mrb[0].mxu0
      %v3810 = vadd.f32 0.0, %v3809
      %v3811 = vpop.f32.mrb[0].mxu0
      %v3812 = vpop.f32.mrb[0].mxu0
      %v3813 = vadd.f32 0.0, %v3812
      %v3814 = vpop.f32.mrb[0].mxu0
      %3815 = vmatprep.mubr.bf16.mxu0 0
      %3816 = vmatmul.mubr.bf16.gmra.mrb[0].mxu0 %v3663
      %v3817 = vpop.f32.mrb[0].mxu0
      %v3818 = vadd.f32 0.0, %v3817
      %v3819 = vpop.f32.mrb[0].mxu0
      %v3820 = vpop.f32.mrb[0].mxu0
      %v3821 = vadd.f32 0.0, %v3820
      %v3822 = vpop.f32.mrb[0].mxu0
      %3823 = vmatprep.mubr.bf16.mxu0 0
      %3824 = vmatmul.mubr.bf16.gmra.mrb[0].mxu0 %v3666
      %v3825 = vpop.f32.mrb[0].mxu0
      %v3826 = vadd.f32 0.0, %v3825
      %v3827 = vpop.f32.mrb[0].mxu0
      %v3828 = vpop.f32.mrb[0].mxu0
      %v3829 = vadd.f32 0.0, %v3828
      %v3830 = vpop.f32.mrb[0].mxu0
      %3831 = vdwg.mxu0
      %v3832 = vadd.f32 %v3451, %v3706
      %v3833 = vadd.f32 %v3452, %v3709
      %v3834 = vadd.f32 %v3453, %v3714
      %v3835 = vadd.f32 %v3454, %v3717
      %v3836 = vadd.f32 %v3455, %v3722
      %v3837 = vadd.f32 %v3456, %v3725
      %v3838 = vadd.f32 %v3457, %v3730
      %v3839 = vadd.f32 %v3458, %v3733
      %v3840 = vadd.f32 %v3459, %v3738
      %v3841 = vadd.f32 %v3460, %v3741
      %v3842 = vadd.f32 %v3461, %v3746
      %v3843 = vadd.f32 %v3462, %v3749
      %v3844 = vadd.f32 %v3463, %v3754
      %v3845 = vadd.f32 %v3464, %v3757
      %v3846 = vadd.f32 %v3465, %v3762
      %v3847 = vadd.f32 %v3466, %v3765
      %v3848 = vadd.f32 %v3467, %v3770
      %v3849 = vadd.f32 %v3468, %v3773
      %v3850 = vadd.f32 %v3469, %v3778
      %v3851 = vadd.f32 %v3470, %v3781
      %v3852 = vadd.f32 %v3471, %v3786
      %v3853 = vadd.f32 %v3472, %v3789
      %v3854 = vadd.f32 %v3473, %v3794
      %v3855 = vadd.f32 %v3474, %v3797
      %v3856 = vadd.f32 %v3475, %v3802
      %v3857 = vadd.f32 %v3476, %v3805
      %v3858 = vadd.f32 %v3477, %v3810
      %v3859 = vadd.f32 %v3478, %v3813
      %v3860 = vadd.f32 %v3479, %v3818
      %v3861 = vadd.f32 %v3480, %v3821
      %v3862 = vadd.f32 %v3481, %v3826
      %v3863 = vadd.f32 %v3482, %v3829
      %v3864 = vld [vmem:[%s3486] sm:$0xf]
      %v3865 = vld [vmem:[%s3486 + $0x4] sm:$0xf]
      %v3866 = vld [vmem:[%s3486 + $0x8] sm:$0x1]
      %v3867 = vld [vmem:[%s3486 + $0xc] sm:$0xf]
      %v3868 = vld [vmem:[%s3486 + $0x10] sm:$0xf]
      %v3869 = vld [vmem:[%s3486 + $0x14] sm:$0x1]
      %v3870 = vld [vmem:[%s3486 + $0x18] sm:$0xf]
      %v3871 = vld [vmem:[%s3486 + $0x1c] sm:$0xf]
      %v3872 = vld [vmem:[%s3486 + $0x20] sm:$0x1]
      %v3873 = vld [vmem:[%s3486 + $0x24] sm:$0xf]
      %v3874 = vld [vmem:[%s3486 + $0x28] sm:$0xf]
      %v3875 = vld [vmem:[%s3486 + $0x2c] sm:$0x1]
      %v3876 = vld [vmem:[%s3486 + $0x30] sm:$0xf]
      %v3877 = vld [vmem:[%s3486 + $0x34] sm:$0xf]
      %v3878 = vld [vmem:[%s3486 + $0x38] sm:$0x1]
      %v3879 = vld [vmem:[%s3486 + $0x3c] sm:$0xf]
      %v3880 = vld [vmem:[%s3486 + $0x40] sm:$0xf]
      %v3881 = vld [vmem:[%s3486 + $0x44] sm:$0x1]
      %v3882 = vld [vmem:[%s3486 + $0x48] sm:$0xf]
      %v3883 = vld [vmem:[%s3486 + $0x4c] sm:$0xf]
      %v3884 = vld [vmem:[%s3486 + $0x50] sm:$0x1]
      %v3885 = vld [vmem:[%s3486 + $0x54] sm:$0xf]
      %v3886 = vld [vmem:[%s3486 + $0x58] sm:$0xf]
      %v3887 = vld [vmem:[%s3486 + $0x5c] sm:$0x1]
      %v3888 = vld [vmem:[%s3486 + $0x60] sm:$0xf]
      %v3889 = vld [vmem:[%s3486 + $0x64] sm:$0xf]
      %v3890 = vld [vmem:[%s3486 + $0x68] sm:$0x1]
      %v3891 = vld [vmem:[%s3486 + $0x6c] sm:$0xf]
      %v3892 = vld [vmem:[%s3486 + $0x70] sm:$0xf]
      %v3893 = vld [vmem:[%s3486 + $0x74] sm:$0x1]
      %v3894 = vld [vmem:[%s3486 + $0x78] sm:$0xf]
      %v3895 = vld [vmem:[%s3486 + $0x7c] sm:$0xf]
      %v3896 = vld [vmem:[%s3486 + $0x80] sm:$0x1]
      %v3897 = vld [vmem:[%s3486 + $0x84] sm:$0xf]
      %v3898 = vld [vmem:[%s3486 + $0x88] sm:$0xf]
      %v3899 = vld [vmem:[%s3486 + $0x8c] sm:$0x1]
      %v3900 = vld [vmem:[%s3486 + $0x90] sm:$0xf]
      %v3901 = vld [vmem:[%s3486 + $0x94] sm:$0xf]
      %v3902 = vld [vmem:[%s3486 + $0x98] sm:$0x1]
      %v3903 = vld [vmem:[%s3486 + $0x9c] sm:$0xf]
      %v3904 = vld [vmem:[%s3486 + $0xa0] sm:$0xf]
      %v3905 = vld [vmem:[%s3486 + $0xa4] sm:$0x1]
      %v3906 = vld [vmem:[%s3486 + $0xa8] sm:$0xf]
      %v3907 = vld [vmem:[%s3486 + $0xac] sm:$0xf]
      %v3908 = vld [vmem:[%s3486 + $0xb0] sm:$0x1]
      %v3909 = vld [vmem:[%s3486 + $0xb4] sm:$0xf]
      %v3910 = vld [vmem:[%s3486 + $0xb8] sm:$0xf]
      %v3911 = vld [vmem:[%s3486 + $0xbc] sm:$0x1]
      %v3913 = vshrl.u32 %v3864, 16
      %v3915 = vrot.slane %v3913, 4
      %v3916 = vshll.u32 %v3864, 16
      %v3918 = vrot.slane %v3916, 5
      %v3919 = vor.u32 %v3915, %v3918
      %v3920 = vrot.slane %v3919, 4
      %v3922 = vshll.u32 %v3865, 16
      %v3924 = vrot.slane %v3922, 5
      %v3925 = vsel %vm417, %v3920, %v3924
      %v3926 = vshrl.u32 %v3865, 16
      %v3928 = vrot.slane %v3926, 4
      %v3929 = vor.u32 %v3928, %v3924
      %v3930 = vrot.slane %v3929, 4
      %v3932 = vshll.u32 %v3866, 16
      %v3934 = vrot.slane %v3932, 5
      %v3935 = vsel %vm417, %v3930, %v3934
      %v3937 = vshrl.u32 %v3867, 16
      %v3939 = vrot.slane %v3937, 4
      %v3940 = vshll.u32 %v3867, 16
      %v3942 = vrot.slane %v3940, 5
      %v3943 = vor.u32 %v3939, %v3942
      %v3944 = vrot.slane %v3943, 4
      %v3946 = vshll.u32 %v3868, 16
      %v3948 = vrot.slane %v3946, 5
      %v3949 = vsel %vm417, %v3944, %v3948
      %v3950 = vshrl.u32 %v3868, 16
      %v3952 = vrot.slane %v3950, 4
      %v3953 = vor.u32 %v3952, %v3948
      %v3954 = vrot.slane %v3953, 4
      %v3956 = vshll.u32 %v3869, 16
      %v3958 = vrot.slane %v3956, 5
      %v3959 = vsel %vm417, %v3954, %v3958
      %v3961 = vshrl.u32 %v3870, 16
      %v3963 = vrot.slane %v3961, 4
      %v3964 = vshll.u32 %v3870, 16
      %v3966 = vrot.slane %v3964, 5
      %v3967 = vor.u32 %v3963, %v3966
      %v3968 = vrot.slane %v3967, 4
      %v3970 = vshll.u32 %v3871, 16
      %v3972 = vrot.slane %v3970, 5
      %v3973 = vsel %vm417, %v3968, %v3972
      %v3974 = vshrl.u32 %v3871, 16
      %v3976 = vrot.slane %v3974, 4
      %v3977 = vor.u32 %v3976, %v3972
      %v3978 = vrot.slane %v3977, 4
      %v3980 = vshll.u32 %v3872, 16
      %v3982 = vrot.slane %v3980, 5
      %v3983 = vsel %vm417, %v3978, %v3982
      %v3985 = vshrl.u32 %v3873, 16
      %v3987 = vrot.slane %v3985, 4
      %v3988 = vshll.u32 %v3873, 16
      %v3990 = vrot.slane %v3988, 5
      %v3991 = vor.u32 %v3987, %v3990
      %v3992 = vrot.slane %v3991, 4
      %v3994 = vshll.u32 %v3874, 16
      %v3996 = vrot.slane %v3994, 5
      %v3997 = vsel %vm417, %v3992, %v3996
      %v3998 = vshrl.u32 %v3874, 16
      %v4000 = vrot.slane %v3998, 4
      %v4001 = vor.u32 %v4000, %v3996
      %v4002 = vrot.slane %v4001, 4
      %v4004 = vshll.u32 %v3875, 16
      %v4006 = vrot.slane %v4004, 5
      %v4007 = vsel %vm417, %v4002, %v4006
      %v4009 = vshrl.u32 %v3876, 16
      %v4011 = vrot.slane %v4009, 4
      %v4012 = vshll.u32 %v3876, 16
      %v4014 = vrot.slane %v4012, 5
      %v4015 = vor.u32 %v4011, %v4014
      %v4016 = vrot.slane %v4015, 4
      %v4018 = vshll.u32 %v3877, 16
      %v4020 = vrot.slane %v4018, 5
      %v4021 = vsel %vm417, %v4016, %v4020
      %v4022 = vshrl.u32 %v3877, 16
      %v4024 = vrot.slane %v4022, 4
      %v4025 = vor.u32 %v4024, %v4020
      %v4026 = vrot.slane %v4025, 4
      %v4028 = vshll.u32 %v3878, 16
      %v4030 = vrot.slane %v4028, 5
      %v4031 = vsel %vm417, %v4026, %v4030
      %v4033 = vshrl.u32 %v3879, 16
      %v4035 = vrot.slane %v4033, 4
      %v4036 = vshll.u32 %v3879, 16
      %v4038 = vrot.slane %v4036, 5
      %v4039 = vor.u32 %v4035, %v4038
      %v4040 = vrot.slane %v4039, 4
      %v4042 = vshll.u32 %v3880, 16
      %v4044 = vrot.slane %v4042, 5
      %v4045 = vsel %vm417, %v4040, %v4044
      %v4046 = vshrl.u32 %v3880, 16
      %v4048 = vrot.slane %v4046, 4
      %v4049 = vor.u32 %v4048, %v4044
      %v4050 = vrot.slane %v4049, 4
      %v4052 = vshll.u32 %v3881, 16
      %v4054 = vrot.slane %v4052, 5
      %v4055 = vsel %vm417, %v4050, %v4054
      %v4057 = vshrl.u32 %v3882, 16
      %v4059 = vrot.slane %v4057, 4
      %v4060 = vshll.u32 %v3882, 16
      %v4062 = vrot.slane %v4060, 5
      %v4063 = vor.u32 %v4059, %v4062
      %v4064 = vrot.slane %v4063, 4
      %v4066 = vshll.u32 %v3883, 16
      %v4068 = vrot.slane %v4066, 5
      %v4069 = vsel %vm417, %v4064, %v4068
      %v4070 = vshrl.u32 %v3883, 16
      %v4072 = vrot.slane %v4070, 4
      %v4073 = vor.u32 %v4072, %v4068
      %v4074 = vrot.slane %v4073, 4
      %v4076 = vshll.u32 %v3884, 16
      %v4078 = vrot.slane %v4076, 5
      %v4079 = vsel %vm417, %v4074, %v4078
      %v4081 = vshrl.u32 %v3885, 16
      %v4083 = vrot.slane %v4081, 4
      %v4084 = vshll.u32 %v3885, 16
      %v4086 = vrot.slane %v4084, 5
      %v4087 = vor.u32 %v4083, %v4086
      %v4088 = vrot.slane %v4087, 4
      %v4090 = vshll.u32 %v3886, 16
      %v4092 = vrot.slane %v4090, 5
      %v4093 = vsel %vm417, %v4088, %v4092
      %v4094 = vshrl.u32 %v3886, 16
      %v4096 = vrot.slane %v4094, 4
      %v4097 = vor.u32 %v4096, %v4092
      %v4098 = vrot.slane %v4097, 4
      %v4100 = vshll.u32 %v3887, 16
      %v4102 = vrot.slane %v4100, 5
      %v4103 = vsel %vm417, %v4098, %v4102
      %v4105 = vshrl.u32 %v3888, 16
      %v4107 = vrot.slane %v4105, 4
      %v4108 = vshll.u32 %v3888, 16
      %v4110 = vrot.slane %v4108, 5
      %v4111 = vor.u32 %v4107, %v4110
      %v4112 = vrot.slane %v4111, 4
      %v4114 = vshll.u32 %v3889, 16
      %v4116 = vrot.slane %v4114, 5
      %v4117 = vsel %vm417, %v4112, %v4116
      %v4118 = vshrl.u32 %v3889, 16
      %v4120 = vrot.slane %v4118, 4
      %v4121 = vor.u32 %v4120, %v4116
      %v4122 = vrot.slane %v4121, 4
      %v4124 = vshll.u32 %v3890, 16
      %v4126 = vrot.slane %v4124, 5
      %v4127 = vsel %vm417, %v4122, %v4126
      %v4129 = vshrl.u32 %v3891, 16
      %v4131 = vrot.slane %v4129, 4
      %v4132 = vshll.u32 %v3891, 16
      %v4134 = vrot.slane %v4132, 5
      %v4135 = vor.u32 %v4131, %v4134
      %v4136 = vrot.slane %v4135, 4
      %v4138 = vshll.u32 %v3892, 16
      %v4140 = vrot.slane %v4138, 5
      %v4141 = vsel %vm417, %v4136, %v4140
      %v4142 = vshrl.u32 %v3892, 16
      %v4144 = vrot.slane %v4142, 4
      %v4145 = vor.u32 %v4144, %v4140
      %v4146 = vrot.slane %v4145, 4
      %v4148 = vshll.u32 %v3893, 16
      %v4150 = vrot.slane %v4148, 5
      %v4151 = vsel %vm417, %v4146, %v4150
      %v4153 = vshrl.u32 %v3894, 16
      %v4155 = vrot.slane %v4153, 4
      %v4156 = vshll.u32 %v3894, 16
      %v4158 = vrot.slane %v4156, 5
      %v4159 = vor.u32 %v4155, %v4158
      %v4160 = vrot.slane %v4159, 4
      %v4162 = vshll.u32 %v3895, 16
      %v4164 = vrot.slane %v4162, 5
      %v4165 = vsel %vm417, %v4160, %v4164
      %v4166 = vshrl.u32 %v3895, 16
      %v4168 = vrot.slane %v4166, 4
      %v4169 = vor.u32 %v4168, %v4164
      %v4170 = vrot.slane %v4169, 4
      %v4172 = vshll.u32 %v3896, 16
      %v4174 = vrot.slane %v4172, 5
      %v4175 = vsel %vm417, %v4170, %v4174
      %v4177 = vshrl.u32 %v3897, 16
      %v4179 = vrot.slane %v4177, 4
      %v4180 = vshll.u32 %v3897, 16
      %v4182 = vrot.slane %v4180, 5
      %v4183 = vor.u32 %v4179, %v4182
      %v4184 = vrot.slane %v4183, 4
      %v4186 = vshll.u32 %v3898, 16
      %v4188 = vrot.slane %v4186, 5
      %v4189 = vsel %vm417, %v4184, %v4188
      %v4190 = vshrl.u32 %v3898, 16
      %v4192 = vrot.slane %v4190, 4
      %v4193 = vor.u32 %v4192, %v4188
      %v4194 = vrot.slane %v4193, 4
      %v4196 = vshll.u32 %v3899, 16
      %v4198 = vrot.slane %v4196, 5
      %v4199 = vsel %vm417, %v4194, %v4198
      %v4201 = vshrl.u32 %v3900, 16
      %v4203 = vrot.slane %v4201, 4
      %v4204 = vshll.u32 %v3900, 16
      %v4206 = vrot.slane %v4204, 5
      %v4207 = vor.u32 %v4203, %v4206
      %v4208 = vrot.slane %v4207, 4
      %v4210 = vshll.u32 %v3901, 16
      %v4212 = vrot.slane %v4210, 5
      %v4213 = vsel %vm417, %v4208, %v4212
      %v4214 = vshrl.u32 %v3901, 16
      %v4216 = vrot.slane %v4214, 4
      %v4217 = vor.u32 %v4216, %v4212
      %v4218 = vrot.slane %v4217, 4
      %v4220 = vshll.u32 %v3902, 16
      %v4222 = vrot.slane %v4220, 5
      %v4223 = vsel %vm417, %v4218, %v4222
      %v4225 = vshrl.u32 %v3903, 16
      %v4227 = vrot.slane %v4225, 4
      %v4228 = vshll.u32 %v3903, 16
      %v4230 = vrot.slane %v4228, 5
      %v4231 = vor.u32 %v4227, %v4230
      %v4232 = vrot.slane %v4231, 4
      %v4234 = vshll.u32 %v3904, 16
      %v4236 = vrot.slane %v4234, 5
      %v4237 = vsel %vm417, %v4232, %v4236
      %v4238 = vshrl.u32 %v3904, 16
      %v4240 = vrot.slane %v4238, 4
      %v4241 = vor.u32 %v4240, %v4236
      %v4242 = vrot.slane %v4241, 4
      %v4244 = vshll.u32 %v3905, 16
      %v4246 = vrot.slane %v4244, 5
      %v4247 = vsel %vm417, %v4242, %v4246
      %v4249 = vshrl.u32 %v3906, 16
      %v4251 = vrot.slane %v4249, 4
      %v4252 = vshll.u32 %v3906, 16
      %v4254 = vrot.slane %v4252, 5
      %v4255 = vor.u32 %v4251, %v4254
      %v4256 = vrot.slane %v4255, 4
      %v4258 = vshll.u32 %v3907, 16
      %v4260 = vrot.slane %v4258, 5
      %v4261 = vsel %vm417, %v4256, %v4260
      %v4262 = vshrl.u32 %v3907, 16
      %v4264 = vrot.slane %v4262, 4
      %v4265 = vor.u32 %v4264, %v4260
      %v4266 = vrot.slane %v4265, 4
      %v4268 = vshll.u32 %v3908, 16
      %v4270 = vrot.slane %v4268, 5
      %v4271 = vsel %vm417, %v4266, %v4270
      %v4273 = vshrl.u32 %v3909, 16
      %v4275 = vrot.slane %v4273, 4
      %v4276 = vshll.u32 %v3909, 16
      %v4278 = vrot.slane %v4276, 5
      %v4279 = vor.u32 %v4275, %v4278
      %v4280 = vrot.slane %v4279, 4
      %v4282 = vshll.u32 %v3910, 16
      %v4284 = vrot.slane %v4282, 5
      %v4285 = vsel %vm417, %v4280, %v4284
      %v4286 = vshrl.u32 %v3910, 16
      %v4288 = vrot.slane %v4286, 4
      %v4289 = vor.u32 %v4288, %v4284
      %v4290 = vrot.slane %v4289, 4
      %v4292 = vshll.u32 %v3911, 16
      %v4294 = vrot.slane %v4292, 5
      %v4295 = vsel %vm417, %v4290, %v4294
      %s4296 = scalar_lea.vmem %s1, 140
      %v4297 = vld [vmem:[%s4296] sm:$0xf]
      %v4298 = vld [vmem:[%s4296 + $0x4] sm:$0xf]
      %v4299 = vld [vmem:[%s4296 + $0x8] sm:$0xf]
      %v4300 = vld [vmem:[%s4296 + $0xc] sm:$0xf]
      %v4301 = vld [vmem:[%s4296 + $0x10] sm:$0xf]
      %v4302 = vunpack.c.l.b16 %v3925
      %v4303 = vunpack.c.l.b16 %v3935
      %v4304 = vunpack.c.l.b16 %v3949
      %v4305 = vunpack.c.l.b16 %v3959
      %v4306 = vunpack.c.l.b16 %v3973
      %v4307 = vunpack.c.l.b16 %v3983
      %v4308 = vunpack.c.l.b16 %v3997
      %v4309 = vunpack.c.l.b16 %v4007
      %v4310 = vunpack.c.l.b16 %v4021
      %v4311 = vunpack.c.l.b16 %v4031
      %v4312 = vunpack.c.l.b16 %v4045
      %v4313 = vunpack.c.l.b16 %v4055
      %v4314 = vunpack.c.l.b16 %v4069
      %v4315 = vunpack.c.l.b16 %v4079
      %v4316 = vunpack.c.l.b16 %v4093
      %v4317 = vunpack.c.l.b16 %v4103
      %v4318 = vunpack.c.l.b16 %v4117
      %v4319 = vunpack.c.l.b16 %v4127
      %v4320 = vunpack.c.l.b16 %v4141
      %v4321 = vunpack.c.l.b16 %v4151
      %v4322 = vunpack.c.l.b16 %v4165
      %v4323 = vunpack.c.l.b16 %v4175
      %v4324 = vunpack.c.l.b16 %v4189
      %v4325 = vunpack.c.l.b16 %v4199
      %v4326 = vunpack.c.l.b16 %v4213
      %v4327 = vunpack.c.l.b16 %v4223
      %v4328 = vunpack.c.l.b16 %v4237
      %v4329 = vunpack.c.l.b16 %v4247
      %v4330 = vunpack.c.l.b16 %v4261
      %v4331 = vunpack.c.l.b16 %v4271
      %v4332 = vunpack.c.l.b16 %v4285
      %v4333 = vunpack.c.l.b16 %v4295
      %v4334 = vpack.c.b16 %v4303, %v4302
      %v4335 = vpack.c.b16 %v4305, %v4304
      %v4336 = vpack.c.b16 %v4307, %v4306
      %v4337 = vpack.c.b16 %v4309, %v4308
      %v4338 = vpack.c.b16 %v4311, %v4310
      %v4339 = vpack.c.b16 %v4313, %v4312
      %v4340 = vpack.c.b16 %v4315, %v4314
      %v4341 = vpack.c.b16 %v4317, %v4316
      %v4342 = vpack.c.b16 %v4319, %v4318
      %v4343 = vpack.c.b16 %v4321, %v4320
      %v4344 = vpack.c.b16 %v4323, %v4322
      %v4345 = vpack.c.b16 %v4325, %v4324
      %v4346 = vpack.c.b16 %v4327, %v4326
      %v4347 = vpack.c.b16 %v4329, %v4328
      %v4348 = vpack.c.b16 %v4331, %v4330
      %v4349 = vpack.c.b16 %v4333, %v4332
      %v4355 = vunpack.c.l.b16 %v4297
      %v4356 = vunpack.c.l.b16 %v4298
      %v4357 = vunpack.c.l.b16 %v4299
      %v4358 = vunpack.c.l.b16 %v4300
      %v4359 = vunpack.c.l.b16 %v4301
      %v4360 = vpack.c.b16 %v4356, %v4355
      %v4361 = vpack.c.b16 %v4358, %v4357
      %v4362 = vpack.c.b16 %v4359, %v4359
      %v4366 = vsel %vm871, %v4334, 0
      %v4369 = vsel %vm871, %v4335, 0
      %v4372 = vsel %vm871, %v4336, 0
      %v4375 = vsel %vm871, %v4337, 0
      %v4378 = vsel %vm871, %v4338, 0
      %v4381 = vsel %vm871, %v4339, 0
      %v4384 = vsel %vm871, %v4340, 0
      %v4387 = vsel %vm871, %v4341, 0
      %v4390 = vsel %vm871, %v4342, 0
      %v4393 = vsel %vm871, %v4343, 0
      %v4396 = vsel %vm871, %v4344, 0
      %v4399 = vsel %vm871, %v4345, 0
      %v4402 = vsel %vm871, %v4346, 0
      %v4405 = vsel %vm871, %v4347, 0
      %v4408 = vsel %vm871, %v4348, 0
      %v4411 = vsel %vm871, %v4349, 0
      %v4414 = vsel %vm920, %v4362, 0
      %4416 = vmatprep.subr.bf16.mxu0 0
      %4417 = vmatpush1.bf16.msra.mxu0 %v4360
      %4418 = vmatprep.subr.bf16.mxu0 0
      %4419 = vmatpush1.bf16.msra.mxu0 %v4361
      %4420 = vmatprep.subr.bf16.mxu0 0
      %4421 = vmatpush1.bf16.msra.mxu0 %v4414
      %4422 = vmatprep.subr.bf16.mxu0 0
      %4423 = vmatpush1.bf16.msra.mxu0 0
      %4424 = vmatprep.subr.bf16.mxu0 0
      %4425 = vmatpush1.bf16.msra.mxu0 0
      %4426 = vmatprep.subr.bf16.mxu0 0
      %4427 = vmatpush1.bf16.msra.mxu0 0
      %4428 = vmatprep.subr.bf16.mxu0 0
      %4429 = vmatpush1.bf16.msra.mxu0 0
      %4430 = vmatprep.subr.bf16.mxu0 0
      %4431 = vmatpush1.bf16.msra.mxu0 0
      %4432 = vmatprep.subr.bf16.mxu0 0
      %4433 = vmatpush1.bf16.msra.mxu0 0
      %4434 = vmatprep.subr.bf16.mxu0 0
      %4435 = vmatpush1.bf16.msra.mxu0 0
      %4436 = vmatprep.subr.bf16.mxu0 0
      %4437 = vmatpush1.bf16.msra.mxu0 0
      %4438 = vmatprep.subr.bf16.mxu0 0
      %4439 = vmatpush1.bf16.msra.mxu0 0
      %4440 = vmatprep.subr.bf16.mxu0 0
      %4441 = vmatpush1.bf16.msra.mxu0 0
      %4442 = vmatprep.subr.bf16.mxu0 0
      %4443 = vmatpush1.bf16.msra.mxu0 0
      %4444 = vmatprep.subr.bf16.mxu0 0
      %4445 = vmatpush1.bf16.msra.mxu0 0
      %4446 = vmatprep.subr.bf16.mxu0 0
      %4447 = vmatpush1.bf16.msra.mxu0 0
      %4448 = vmatprep.mubr.bf16.mxu0 0
      %4449 = vmatmul.mubr.bf16.gmra.mrb[0].mxu0 %v4366
      %v4450 = vpop.f32.mrb[0].mxu0
      %v4451 = vadd.f32 0.0, %v4450
      %v4452 = vpop.f32.mrb[0].mxu0
      %v4453 = vpop.f32.mrb[0].mxu0
      %v4454 = vadd.f32 0.0, %v4453
      %v4455 = vpop.f32.mrb[0].mxu0
      %4456 = vmatprep.mubr.bf16.mxu0 0
      %4457 = vmatmul.mubr.bf16.gmra.mrb[0].mxu0 %v4369
      %v4458 = vpop.f32.mrb[0].mxu0
      %v4459 = vadd.f32 0.0, %v4458
      %v4460 = vpop.f32.mrb[0].mxu0
      %v4461 = vpop.f32.mrb[0].mxu0
      %v4462 = vadd.f32 0.0, %v4461
      %v4463 = vpop.f32.mrb[0].mxu0
      %4464 = vmatprep.mubr.bf16.mxu0 0
      %4465 = vmatmul.mubr.bf16.gmra.mrb[0].mxu0 %v4372
      %v4466 = vpop.f32.mrb[0].mxu0
      %v4467 = vadd.f32 0.0, %v4466
      %v4468 = vpop.f32.mrb[0].mxu0
      %v4469 = vpop.f32.mrb[0].mxu0
      %v4470 = vadd.f32 0.0, %v4469
      %v4471 = vpop.f32.mrb[0].mxu0
      %4472 = vmatprep.mubr.bf16.mxu0 0
      %4473 = vmatmul.mubr.bf16.gmra.mrb[0].mxu0 %v4375
      %v4474 = vpop.f32.mrb[0].mxu0
      %v4475 = vadd.f32 0.0, %v4474
      %v4476 = vpop.f32.mrb[0].mxu0
      %v4477 = vpop.f32.mrb[0].mxu0
      %v4478 = vadd.f32 0.0, %v4477
      %v4479 = vpop.f32.mrb[0].mxu0
      %4480 = vmatprep.mubr.bf16.mxu0 0
      %4481 = vmatmul.mubr.bf16.gmra.mrb[0].mxu0 %v4378
      %v4482 = vpop.f32.mrb[0].mxu0
      %v4483 = vadd.f32 0.0, %v4482
      %v4484 = vpop.f32.mrb[0].mxu0
      %v4485 = vpop.f32.mrb[0].mxu0
      %v4486 = vadd.f32 0.0, %v4485
      %v4487 = vpop.f32.mrb[0].mxu0
      %4488 = vmatprep.mubr.bf16.mxu0 0
      %4489 = vmatmul.mubr.bf16.gmra.mrb[0].mxu0 %v4381
      %v4490 = vpop.f32.mrb[0].mxu0
      %v4491 = vadd.f32 0.0, %v4490
      %v4492 = vpop.f32.mrb[0].mxu0
      %v4493 = vpop.f32.mrb[0].mxu0
      %v4494 = vadd.f32 0.0, %v4493
      %v4495 = vpop.f32.mrb[0].mxu0
      %4496 = vmatprep.mubr.bf16.mxu0 0
      %4497 = vmatmul.mubr.bf16.gmra.mrb[0].mxu0 %v4384
      %v4498 = vpop.f32.mrb[0].mxu0
      %v4499 = vadd.f32 0.0, %v4498
      %v4500 = vpop.f32.mrb[0].mxu0
      %v4501 = vpop.f32.mrb[0].mxu0
      %v4502 = vadd.f32 0.0, %v4501
      %v4503 = vpop.f32.mrb[0].mxu0
      %4504 = vmatprep.mubr.bf16.mxu0 0
      %4505 = vmatmul.mubr.bf16.gmra.mrb[0].mxu0 %v4387
      %v4506 = vpop.f32.mrb[0].mxu0
      %v4507 = vadd.f32 0.0, %v4506
      %v4508 = vpop.f32.mrb[0].mxu0
      %v4509 = vpop.f32.mrb[0].mxu0
      %v4510 = vadd.f32 0.0, %v4509
      %v4511 = vpop.f32.mrb[0].mxu0
      %4512 = vmatprep.mubr.bf16.mxu0 0
      %4513 = vmatmul.mubr.bf16.gmra.mrb[0].mxu0 %v4390
      %v4514 = vpop.f32.mrb[0].mxu0
      %v4515 = vadd.f32 0.0, %v4514
      %v4516 = vpop.f32.mrb[0].mxu0
      %v4517 = vpop.f32.mrb[0].mxu0
      %v4518 = vadd.f32 0.0, %v4517
      %v4519 = vpop.f32.mrb[0].mxu0
      %4520 = vmatprep.mubr.bf16.mxu0 0
      %4521 = vmatmul.mubr.bf16.gmra.mrb[0].mxu0 %v4393
      %v4522 = vpop.f32.mrb[0].mxu0
      %v4523 = vadd.f32 0.0, %v4522
      %v4524 = vpop.f32.mrb[0].mxu0
      %v4525 = vpop.f32.mrb[0].mxu0
      %v4526 = vadd.f32 0.0, %v4525
      %v4527 = vpop.f32.mrb[0].mxu0
      %4528 = vmatprep.mubr.bf16.mxu0 0
      %4529 = vmatmul.mubr.bf16.gmra.mrb[0].mxu0 %v4396
      %v4530 = vpop.f32.mrb[0].mxu0
      %v4531 = vadd.f32 0.0, %v4530
      %v4532 = vpop.f32.mrb[0].mxu0
      %v4533 = vpop.f32.mrb[0].mxu0
      %v4534 = vadd.f32 0.0, %v4533
      %v4535 = vpop.f32.mrb[0].mxu0
      %4536 = vmatprep.mubr.bf16.mxu0 0
      %4537 = vmatmul.mubr.bf16.gmra.mrb[0].mxu0 %v4399
      %v4538 = vpop.f32.mrb[0].mxu0
      %v4539 = vadd.f32 0.0, %v4538
      %v4540 = vpop.f32.mrb[0].mxu0
      %v4541 = vpop.f32.mrb[0].mxu0
      %v4542 = vadd.f32 0.0, %v4541
      %v4543 = vpop.f32.mrb[0].mxu0
      %4544 = vmatprep.mubr.bf16.mxu0 0
      %4545 = vmatmul.mubr.bf16.gmra.mrb[0].mxu0 %v4402
      %v4546 = vpop.f32.mrb[0].mxu0
      %v4547 = vadd.f32 0.0, %v4546
      %v4548 = vpop.f32.mrb[0].mxu0
      %v4549 = vpop.f32.mrb[0].mxu0
      %v4550 = vadd.f32 0.0, %v4549
      %v4551 = vpop.f32.mrb[0].mxu0
      %4552 = vmatprep.mubr.bf16.mxu0 0
      %4553 = vmatmul.mubr.bf16.gmra.mrb[0].mxu0 %v4405
      %v4554 = vpop.f32.mrb[0].mxu0
      %v4555 = vadd.f32 0.0, %v4554
      %v4556 = vpop.f32.mrb[0].mxu0
      %v4557 = vpop.f32.mrb[0].mxu0
      %v4558 = vadd.f32 0.0, %v4557
      %v4559 = vpop.f32.mrb[0].mxu0
      %4560 = vmatprep.mubr.bf16.mxu0 0
      %4561 = vmatmul.mubr.bf16.gmra.mrb[0].mxu0 %v4408
      %v4562 = vpop.f32.mrb[0].mxu0
      %v4563 = vadd.f32 0.0, %v4562
      %v4564 = vpop.f32.mrb[0].mxu0
      %v4565 = vpop.f32.mrb[0].mxu0
      %v4566 = vadd.f32 0.0, %v4565
      %v4567 = vpop.f32.mrb[0].mxu0
      %4568 = vmatprep.mubr.bf16.mxu0 0
      %4569 = vmatmul.mubr.bf16.gmra.mrb[0].mxu0 %v4411
      %v4570 = vpop.f32.mrb[0].mxu0
      %v4571 = vadd.f32 0.0, %v4570
      %v4572 = vpop.f32.mrb[0].mxu0
      %v4573 = vpop.f32.mrb[0].mxu0
      %v4574 = vadd.f32 0.0, %v4573
      %v4575 = vpop.f32.mrb[0].mxu0
      %4576 = vdwg.mxu0
      %v4577 = vadd.f32 %v3832, %v4451
      %v4578 = vadd.f32 %v3833, %v4454
      %v4579 = vadd.f32 %v3834, %v4459
      %v4580 = vadd.f32 %v3835, %v4462
      %v4581 = vadd.f32 %v3836, %v4467
      %v4582 = vadd.f32 %v3837, %v4470
      %v4583 = vadd.f32 %v3838, %v4475
      %v4584 = vadd.f32 %v3839, %v4478
      %v4585 = vadd.f32 %v3840, %v4483
      %v4586 = vadd.f32 %v3841, %v4486
      %v4587 = vadd.f32 %v3842, %v4491
      %v4588 = vadd.f32 %v3843, %v4494
      %v4589 = vadd.f32 %v3844, %v4499
      %v4590 = vadd.f32 %v3845, %v4502
      %v4591 = vadd.f32 %v3846, %v4507
      %v4592 = vadd.f32 %v3847, %v4510
      %v4593 = vadd.f32 %v3848, %v4515
      %v4594 = vadd.f32 %v3849, %v4518
      %v4595 = vadd.f32 %v3850, %v4523
      %v4596 = vadd.f32 %v3851, %v4526
      %v4597 = vadd.f32 %v3852, %v4531
      %v4598 = vadd.f32 %v3853, %v4534
      %v4599 = vadd.f32 %v3854, %v4539
      %v4600 = vadd.f32 %v3855, %v4542
      %v4601 = vadd.f32 %v3856, %v4547
      %v4602 = vadd.f32 %v3857, %v4550
      %v4603 = vadd.f32 %v3858, %v4555
      %v4604 = vadd.f32 %v3859, %v4558
      %v4605 = vadd.f32 %v3860, %v4563
      %v4606 = vadd.f32 %v3861, %v4566
      %v4607 = vadd.f32 %v3862, %v4571
      %v4608 = vadd.f32 %v3863, %v4574
      %v4609 = vld [vmem:[%s3486] sm:$0xe]
      %v4610 = vld [vmem:[%s3486 + $0xc] sm:$0xe]
      %v4611 = vld [vmem:[%s3486 + $0x18] sm:$0xe]
      %v4612 = vld [vmem:[%s3486 + $0x24] sm:$0xe]
      %v4613 = vld [vmem:[%s3486 + $0x30] sm:$0xe]
      %v4614 = vld [vmem:[%s3486 + $0x3c] sm:$0xe]
      %v4615 = vld [vmem:[%s3486 + $0x48] sm:$0xe]
      %v4616 = vld [vmem:[%s3486 + $0x54] sm:$0xe]
      %v4617 = vld [vmem:[%s3486 + $0x60] sm:$0xe]
      %v4618 = vld [vmem:[%s3486 + $0x6c] sm:$0xe]
      %v4619 = vld [vmem:[%s3486 + $0x78] sm:$0xe]
      %v4620 = vld [vmem:[%s3486 + $0x84] sm:$0xe]
      %v4621 = vld [vmem:[%s3486 + $0x90] sm:$0xe]
      %v4622 = vld [vmem:[%s3486 + $0x9c] sm:$0xe]
      %v4623 = vld [vmem:[%s3486 + $0xa8] sm:$0xe]
      %v4624 = vld [vmem:[%s3486 + $0xb4] sm:$0xe]
      %v4673 = vrot.slane %v4609, 5
      %v4674 = vrot.slane %v4673, 4
      %v4675 = vrot.slane %v3865, 5
      %v4676 = vsel %vm1442, %v4674, %v4675
      %v4677 = vrot.slane %v4675, 4
      %v4678 = vrot.slane %v3866, 5
      %v4679 = vsel %vm1442, %v4677, %v4678
      %v4680 = vrot.slane %v4610, 5
      %v4681 = vrot.slane %v4680, 4
      %v4682 = vrot.slane %v3868, 5
      %v4683 = vsel %vm1442, %v4681, %v4682
      %v4684 = vrot.slane %v4682, 4
      %v4685 = vrot.slane %v3869, 5
      %v4686 = vsel %vm1442, %v4684, %v4685
      %v4687 = vrot.slane %v4611, 5
      %v4688 = vrot.slane %v4687, 4
      %v4689 = vrot.slane %v3871, 5
      %v4690 = vsel %vm1442, %v4688, %v4689
      %v4691 = vrot.slane %v4689, 4
      %v4692 = vrot.slane %v3872, 5
      %v4693 = vsel %vm1442, %v4691, %v4692
      %v4694 = vrot.slane %v4612, 5
      %v4695 = vrot.slane %v4694, 4
      %v4696 = vrot.slane %v3874, 5
      %v4697 = vsel %vm1442, %v4695, %v4696
      %v4698 = vrot.slane %v4696, 4
      %v4699 = vrot.slane %v3875, 5
      %v4700 = vsel %vm1442, %v4698, %v4699
      %v4701 = vrot.slane %v4613, 5
      %v4702 = vrot.slane %v4701, 4
      %v4703 = vrot.slane %v3877, 5
      %v4704 = vsel %vm1442, %v4702, %v4703
      %v4705 = vrot.slane %v4703, 4
      %v4706 = vrot.slane %v3878, 5
      %v4707 = vsel %vm1442, %v4705, %v4706
      %v4708 = vrot.slane %v4614, 5
      %v4709 = vrot.slane %v4708, 4
      %v4710 = vrot.slane %v3880, 5
      %v4711 = vsel %vm1442, %v4709, %v4710
      %v4712 = vrot.slane %v4710, 4
      %v4713 = vrot.slane %v3881, 5
      %v4714 = vsel %vm1442, %v4712, %v4713
      %v4715 = vrot.slane %v4615, 5
      %v4716 = vrot.slane %v4715, 4
      %v4717 = vrot.slane %v3883, 5
      %v4718 = vsel %vm1442, %v4716, %v4717
      %v4719 = vrot.slane %v4717, 4
      %v4720 = vrot.slane %v3884, 5
      %v4721 = vsel %vm1442, %v4719, %v4720
      %v4722 = vrot.slane %v4616, 5
      %v4723 = vrot.slane %v4722, 4
      %v4724 = vrot.slane %v3886, 5
      %v4725 = vsel %vm1442, %v4723, %v4724
      %v4726 = vrot.slane %v4724, 4
      %v4727 = vrot.slane %v3887, 5
      %v4728 = vsel %vm1442, %v4726, %v4727
      %v4729 = vrot.slane %v4617, 5
      %v4730 = vrot.slane %v4729, 4
      %v4731 = vrot.slane %v3889, 5
      %v4732 = vsel %vm1442, %v4730, %v4731
      %v4733 = vrot.slane %v4731, 4
      %v4734 = vrot.slane %v3890, 5
      %v4735 = vsel %vm1442, %v4733, %v4734
      %v4736 = vrot.slane %v4618, 5
      %v4737 = vrot.slane %v4736, 4
      %v4738 = vrot.slane %v3892, 5
      %v4739 = vsel %vm1442, %v4737, %v4738
      %v4740 = vrot.slane %v4738, 4
      %v4741 = vrot.slane %v3893, 5
      %v4742 = vsel %vm1442, %v4740, %v4741
      %v4743 = vrot.slane %v4619, 5
      %v4744 = vrot.slane %v4743, 4
      %v4745 = vrot.slane %v3895, 5
      %v4746 = vsel %vm1442, %v4744, %v4745
      %v4747 = vrot.slane %v4745, 4
      %v4748 = vrot.slane %v3896, 5
      %v4749 = vsel %vm1442, %v4747, %v4748
      %v4750 = vrot.slane %v4620, 5
      %v4751 = vrot.slane %v4750, 4
      %v4752 = vrot.slane %v3898, 5
      %v4753 = vsel %vm1442, %v4751, %v4752
      %v4754 = vrot.slane %v4752, 4
      %v4755 = vrot.slane %v3899, 5
      %v4756 = vsel %vm1442, %v4754, %v4755
      %v4757 = vrot.slane %v4621, 5
      %v4758 = vrot.slane %v4757, 4
      %v4759 = vrot.slane %v3901, 5
      %v4760 = vsel %vm1442, %v4758, %v4759
      %v4761 = vrot.slane %v4759, 4
      %v4762 = vrot.slane %v3902, 5
      %v4763 = vsel %vm1442, %v4761, %v4762
      %v4764 = vrot.slane %v4622, 5
      %v4765 = vrot.slane %v4764, 4
      %v4766 = vrot.slane %v3904, 5
      %v4767 = vsel %vm1442, %v4765, %v4766
      %v4768 = vrot.slane %v4766, 4
      %v4769 = vrot.slane %v3905, 5
      %v4770 = vsel %vm1442, %v4768, %v4769
      %v4771 = vrot.slane %v4623, 5
      %v4772 = vrot.slane %v4771, 4
      %v4773 = vrot.slane %v3907, 5
      %v4774 = vsel %vm1442, %v4772, %v4773
      %v4775 = vrot.slane %v4773, 4
      %v4776 = vrot.slane %v3908, 5
      %v4777 = vsel %vm1442, %v4775, %v4776
      %v4778 = vrot.slane %v4624, 5
      %v4779 = vrot.slane %v4778, 4
      %v4780 = vrot.slane %v3910, 5
      %v4781 = vsel %vm1442, %v4779, %v4780
      %v4782 = vrot.slane %v4780, 4
      %v4783 = vrot.slane %v3911, 5
      %v4784 = vsel %vm1442, %v4782, %v4783
      %s4785 = scalar_lea.vmem %s1, 160
      %v4786 = vld [vmem:[%s4785] sm:$0xf]
      %v4787 = vld [vmem:[%s4785 + $0x4] sm:$0xf]
      %v4788 = vld [vmem:[%s4785 + $0x8] sm:$0xf]
      %v4789 = vld [vmem:[%s4785 + $0xc] sm:$0xf]
      %v4790 = vld [vmem:[%s4785 + $0x10] sm:$0xf]
      %v4791 = vunpack.c.l.b16 %v4676
      %v4792 = vunpack.c.l.b16 %v4679
      %v4793 = vunpack.c.l.b16 %v4683
      %v4794 = vunpack.c.l.b16 %v4686
      %v4795 = vunpack.c.l.b16 %v4690
      %v4796 = vunpack.c.l.b16 %v4693
      %v4797 = vunpack.c.l.b16 %v4697
      %v4798 = vunpack.c.l.b16 %v4700
      %v4799 = vunpack.c.l.b16 %v4704
      %v4800 = vunpack.c.l.b16 %v4707
      %v4801 = vunpack.c.l.b16 %v4711
      %v4802 = vunpack.c.l.b16 %v4714
      %v4803 = vunpack.c.l.b16 %v4718
      %v4804 = vunpack.c.l.b16 %v4721
      %v4805 = vunpack.c.l.b16 %v4725
      %v4806 = vunpack.c.l.b16 %v4728
      %v4807 = vunpack.c.l.b16 %v4732
      %v4808 = vunpack.c.l.b16 %v4735
      %v4809 = vunpack.c.l.b16 %v4739
      %v4810 = vunpack.c.l.b16 %v4742
      %v4811 = vunpack.c.l.b16 %v4746
      %v4812 = vunpack.c.l.b16 %v4749
      %v4813 = vunpack.c.l.b16 %v4753
      %v4814 = vunpack.c.l.b16 %v4756
      %v4815 = vunpack.c.l.b16 %v4760
      %v4816 = vunpack.c.l.b16 %v4763
      %v4817 = vunpack.c.l.b16 %v4767
      %v4818 = vunpack.c.l.b16 %v4770
      %v4819 = vunpack.c.l.b16 %v4774
      %v4820 = vunpack.c.l.b16 %v4777
      %v4821 = vunpack.c.l.b16 %v4781
      %v4822 = vunpack.c.l.b16 %v4784
      %v4823 = vpack.c.b16 %v4792, %v4791
      %v4824 = vpack.c.b16 %v4794, %v4793
      %v4825 = vpack.c.b16 %v4796, %v4795
      %v4826 = vpack.c.b16 %v4798, %v4797
      %v4827 = vpack.c.b16 %v4800, %v4799
      %v4828 = vpack.c.b16 %v4802, %v4801
      %v4829 = vpack.c.b16 %v4804, %v4803
      %v4830 = vpack.c.b16 %v4806, %v4805
      %v4831 = vpack.c.b16 %v4808, %v4807
      %v4832 = vpack.c.b16 %v4810, %v4809
      %v4833 = vpack.c.b16 %v4812, %v4811
      %v4834 = vpack.c.b16 %v4814, %v4813
      %v4835 = vpack.c.b16 %v4816, %v4815
      %v4836 = vpack.c.b16 %v4818, %v4817
      %v4837 = vpack.c.b16 %v4820, %v4819
      %v4838 = vpack.c.b16 %v4822, %v4821
      %v4844 = vunpack.c.l.b16 %v4786
      %v4845 = vunpack.c.l.b16 %v4787
      %v4846 = vunpack.c.l.b16 %v4788
      %v4847 = vunpack.c.l.b16 %v4789
      %v4848 = vunpack.c.l.b16 %v4790
      %v4849 = vpack.c.b16 %v4845, %v4844
      %v4850 = vpack.c.b16 %v4847, %v4846
      %v4851 = vpack.c.b16 %v4848, %v4848
      %v4855 = vsel %vm871, %v4823, 0
      %v4858 = vsel %vm871, %v4824, 0
      %v4861 = vsel %vm871, %v4825, 0
      %v4864 = vsel %vm871, %v4826, 0
      %v4867 = vsel %vm871, %v4827, 0
      %v4870 = vsel %vm871, %v4828, 0
      %v4873 = vsel %vm871, %v4829, 0
      %v4876 = vsel %vm871, %v4830, 0
      %v4879 = vsel %vm871, %v4831, 0
      %v4882 = vsel %vm871, %v4832, 0
      %v4885 = vsel %vm871, %v4833, 0
      %v4888 = vsel %vm871, %v4834, 0
      %v4891 = vsel %vm871, %v4835, 0
      %v4894 = vsel %vm871, %v4836, 0
      %v4897 = vsel %vm871, %v4837, 0
      %v4900 = vsel %vm871, %v4838, 0
      %v4903 = vsel %vm920, %v4851, 0
      %4905 = vmatprep.subr.bf16.mxu0 0
      %4906 = vmatpush1.bf16.msra.mxu0 %v4849
      %4907 = vmatprep.subr.bf16.mxu0 0
      %4908 = vmatpush1.bf16.msra.mxu0 %v4850
      %4909 = vmatprep.subr.bf16.mxu0 0
      %4910 = vmatpush1.bf16.msra.mxu0 %v4903
      %4911 = vmatprep.subr.bf16.mxu0 0
      %4912 = vmatpush1.bf16.msra.mxu0 0
      %4913 = vmatprep.subr.bf16.mxu0 0
      %4914 = vmatpush1.bf16.msra.mxu0 0
      %4915 = vmatprep.subr.bf16.mxu0 0
      %4916 = vmatpush1.bf16.msra.mxu0 0
      %4917 = vmatprep.subr.bf16.mxu0 0
      %4918 = vmatpush1.bf16.msra.mxu0 0
      %4919 = vmatprep.subr.bf16.mxu0 0
      %4920 = vmatpush1.bf16.msra.mxu0 0
      %4921 = vmatprep.subr.bf16.mxu0 0
      %4922 = vmatpush1.bf16.msra.mxu0 0
      %4923 = vmatprep.subr.bf16.mxu0 0
      %4924 = vmatpush1.bf16.msra.mxu0 0
      %4925 = vmatprep.subr.bf16.mxu0 0
      %4926 = vmatpush1.bf16.msra.mxu0 0
      %4927 = vmatprep.subr.bf16.mxu0 0
      %4928 = vmatpush1.bf16.msra.mxu0 0
      %4929 = vmatprep.subr.bf16.mxu0 0
      %4930 = vmatpush1.bf16.msra.mxu0 0
      %4931 = vmatprep.subr.bf16.mxu0 0
      %4932 = vmatpush1.bf16.msra.mxu0 0
      %4933 = vmatprep.subr.bf16.mxu0 0
      %4934 = vmatpush1.bf16.msra.mxu0 0
      %4935 = vmatprep.subr.bf16.mxu0 0
      %4936 = vmatpush1.bf16.msra.mxu0 0
      %4937 = vmatprep.mubr.bf16.mxu0 0
      %4938 = vmatmul.mubr.bf16.gmra.mrb[0].mxu0 %v4855
      %v4939 = vpop.f32.mrb[0].mxu0
      %v4940 = vadd.f32 0.0, %v4939
      %v4941 = vpop.f32.mrb[0].mxu0
      %v4942 = vpop.f32.mrb[0].mxu0
      %v4943 = vadd.f32 0.0, %v4942
      %v4944 = vpop.f32.mrb[0].mxu0
      %4945 = vmatprep.mubr.bf16.mxu0 0
      %4946 = vmatmul.mubr.bf16.gmra.mrb[0].mxu0 %v4858
      %v4947 = vpop.f32.mrb[0].mxu0
      %v4948 = vadd.f32 0.0, %v4947
      %v4949 = vpop.f32.mrb[0].mxu0
      %v4950 = vpop.f32.mrb[0].mxu0
      %v4951 = vadd.f32 0.0, %v4950
      %v4952 = vpop.f32.mrb[0].mxu0
      %4953 = vmatprep.mubr.bf16.mxu0 0
      %4954 = vmatmul.mubr.bf16.gmra.mrb[0].mxu0 %v4861
      %v4955 = vpop.f32.mrb[0].mxu0
      %v4956 = vadd.f32 0.0, %v4955
      %v4957 = vpop.f32.mrb[0].mxu0
      %v4958 = vpop.f32.mrb[0].mxu0
      %v4959 = vadd.f32 0.0, %v4958
      %v4960 = vpop.f32.mrb[0].mxu0
      %4961 = vmatprep.mubr.bf16.mxu0 0
      %4962 = vmatmul.mubr.bf16.gmra.mrb[0].mxu0 %v4864
      %v4963 = vpop.f32.mrb[0].mxu0
      %v4964 = vadd.f32 0.0, %v4963
      %v4965 = vpop.f32.mrb[0].mxu0
      %v4966 = vpop.f32.mrb[0].mxu0
      %v4967 = vadd.f32 0.0, %v4966
      %v4968 = vpop.f32.mrb[0].mxu0
      %4969 = vmatprep.mubr.bf16.mxu0 0
      %4970 = vmatmul.mubr.bf16.gmra.mrb[0].mxu0 %v4867
      %v4971 = vpop.f32.mrb[0].mxu0
      %v4972 = vadd.f32 0.0, %v4971
      %v4973 = vpop.f32.mrb[0].mxu0
      %v4974 = vpop.f32.mrb[0].mxu0
      %v4975 = vadd.f32 0.0, %v4974
      %v4976 = vpop.f32.mrb[0].mxu0
      %4977 = vmatprep.mubr.bf16.mxu0 0
      %4978 = vmatmul.mubr.bf16.gmra.mrb[0].mxu0 %v4870
      %v4979 = vpop.f32.mrb[0].mxu0
      %v4980 = vadd.f32 0.0, %v4979
      %v4981 = vpop.f32.mrb[0].mxu0
      %v4982 = vpop.f32.mrb[0].mxu0
      %v4983 = vadd.f32 0.0, %v4982
      %v4984 = vpop.f32.mrb[0].mxu0
      %4985 = vmatprep.mubr.bf16.mxu0 0
      %4986 = vmatmul.mubr.bf16.gmra.mrb[0].mxu0 %v4873
      %v4987 = vpop.f32.mrb[0].mxu0
      %v4988 = vadd.f32 0.0, %v4987
      %v4989 = vpop.f32.mrb[0].mxu0
      %v4990 = vpop.f32.mrb[0].mxu0
      %v4991 = vadd.f32 0.0, %v4990
      %v4992 = vpop.f32.mrb[0].mxu0
      %4993 = vmatprep.mubr.bf16.mxu0 0
      %4994 = vmatmul.mubr.bf16.gmra.mrb[0].mxu0 %v4876
      %v4995 = vpop.f32.mrb[0].mxu0
      %v4996 = vadd.f32 0.0, %v4995
      %v4997 = vpop.f32.mrb[0].mxu0
      %v4998 = vpop.f32.mrb[0].mxu0
      %v4999 = vadd.f32 0.0, %v4998
      %v5000 = vpop.f32.mrb[0].mxu0
      %5001 = vmatprep.mubr.bf16.mxu0 0
      %5002 = vmatmul.mubr.bf16.gmra.mrb[0].mxu0 %v4879
      %v5003 = vpop.f32.mrb[0].mxu0
      %v5004 = vadd.f32 0.0, %v5003
      %v5005 = vpop.f32.mrb[0].mxu0
      %v5006 = vpop.f32.mrb[0].mxu0
      %v5007 = vadd.f32 0.0, %v5006
      %v5008 = vpop.f32.mrb[0].mxu0
      %5009 = vmatprep.mubr.bf16.mxu0 0
      %5010 = vmatmul.mubr.bf16.gmra.mrb[0].mxu0 %v4882
      %v5011 = vpop.f32.mrb[0].mxu0
      %v5012 = vadd.f32 0.0, %v5011
      %v5013 = vpop.f32.mrb[0].mxu0
      %v5014 = vpop.f32.mrb[0].mxu0
      %v5015 = vadd.f32 0.0, %v5014
      %v5016 = vpop.f32.mrb[0].mxu0
      %5017 = vmatprep.mubr.bf16.mxu0 0
      %5018 = vmatmul.mubr.bf16.gmra.mrb[0].mxu0 %v4885
      %v5019 = vpop.f32.mrb[0].mxu0
      %v5020 = vadd.f32 0.0, %v5019
      %v5021 = vpop.f32.mrb[0].mxu0
      %v5022 = vpop.f32.mrb[0].mxu0
      %v5023 = vadd.f32 0.0, %v5022
      %v5024 = vpop.f32.mrb[0].mxu0
      %5025 = vmatprep.mubr.bf16.mxu0 0
      %5026 = vmatmul.mubr.bf16.gmra.mrb[0].mxu0 %v4888
      %v5027 = vpop.f32.mrb[0].mxu0
      %v5028 = vadd.f32 0.0, %v5027
      %v5029 = vpop.f32.mrb[0].mxu0
      %v5030 = vpop.f32.mrb[0].mxu0
      %v5031 = vadd.f32 0.0, %v5030
      %v5032 = vpop.f32.mrb[0].mxu0
      %5033 = vmatprep.mubr.bf16.mxu0 0
      %5034 = vmatmul.mubr.bf16.gmra.mrb[0].mxu0 %v4891
      %v5035 = vpop.f32.mrb[0].mxu0
      %v5036 = vadd.f32 0.0, %v5035
      %v5037 = vpop.f32.mrb[0].mxu0
      %v5038 = vpop.f32.mrb[0].mxu0
      %v5039 = vadd.f32 0.0, %v5038
      %v5040 = vpop.f32.mrb[0].mxu0
      %5041 = vmatprep.mubr.bf16.mxu0 0
      %5042 = vmatmul.mubr.bf16.gmra.mrb[0].mxu0 %v4894
      %v5043 = vpop.f32.mrb[0].mxu0
      %v5044 = vadd.f32 0.0, %v5043
      %v5045 = vpop.f32.mrb[0].mxu0
      %v5046 = vpop.f32.mrb[0].mxu0
      %v5047 = vadd.f32 0.0, %v5046
      %v5048 = vpop.f32.mrb[0].mxu0
      %5049 = vmatprep.mubr.bf16.mxu0 0
      %5050 = vmatmul.mubr.bf16.gmra.mrb[0].mxu0 %v4897
      %v5051 = vpop.f32.mrb[0].mxu0
      %v5052 = vadd.f32 0.0, %v5051
      %v5053 = vpop.f32.mrb[0].mxu0
      %v5054 = vpop.f32.mrb[0].mxu0
      %v5055 = vadd.f32 0.0, %v5054
      %v5056 = vpop.f32.mrb[0].mxu0
      %5057 = vmatprep.mubr.bf16.mxu0 0
      %5058 = vmatmul.mubr.bf16.gmra.mrb[0].mxu0 %v4900
      %v5059 = vpop.f32.mrb[0].mxu0
      %v5060 = vadd.f32 0.0, %v5059
      %v5061 = vpop.f32.mrb[0].mxu0
      %v5062 = vpop.f32.mrb[0].mxu0
      %v5063 = vadd.f32 0.0, %v5062
      %v5064 = vpop.f32.mrb[0].mxu0
      %5065 = vdwg.mxu0
      %v5066 = vadd.f32 %v4577, %v4940
      %v5067 = vadd.f32 %v4578, %v4943
      %v5068 = vadd.f32 %v4579, %v4948
      %v5069 = vadd.f32 %v4580, %v4951
      %v5070 = vadd.f32 %v4581, %v4956
      %v5071 = vadd.f32 %v4582, %v4959
      %v5072 = vadd.f32 %v4583, %v4964
      %v5073 = vadd.f32 %v4584, %v4967
      %v5074 = vadd.f32 %v4585, %v4972
      %v5075 = vadd.f32 %v4586, %v4975
      %v5076 = vadd.f32 %v4587, %v4980
      %v5077 = vadd.f32 %v4588, %v4983
      %v5078 = vadd.f32 %v4589, %v4988
      %v5079 = vadd.f32 %v4590, %v4991
      %v5080 = vadd.f32 %v4591, %v4996
      %v5081 = vadd.f32 %v4592, %v4999
      %v5082 = vadd.f32 %v4593, %v5004
      %v5083 = vadd.f32 %v4594, %v5007
      %v5084 = vadd.f32 %v4595, %v5012
      %v5085 = vadd.f32 %v4596, %v5015
      %v5086 = vadd.f32 %v4597, %v5020
      %v5087 = vadd.f32 %v4598, %v5023
      %v5088 = vadd.f32 %v4599, %v5028
      %v5089 = vadd.f32 %v4600, %v5031
      %v5090 = vadd.f32 %v4601, %v5036
      %v5091 = vadd.f32 %v4602, %v5039
      %v5092 = vadd.f32 %v4603, %v5044
      %v5093 = vadd.f32 %v4604, %v5047
      %v5094 = vadd.f32 %v4605, %v5052
      %v5095 = vadd.f32 %v4606, %v5055
      %v5096 = vadd.f32 %v4607, %v5060
      %v5097 = vadd.f32 %v4608, %v5063
      %v5098 = vld [vmem:[%s2] sm:$0x1]
      %v5100 = vlaneseq
      %v5101 = vshrl.u32 %v5100, 7
      %v5102 = vsub.s32 0, %v5101
      %v5103 = vrot.slane %v5098, %v5102
      %v5105 = vadd.f32 %v5066, %v5103
      %v5106 = vadd.f32 %v5067, %v5103
      %v5107 = vadd.f32 %v5068, %v5103
      %v5108 = vadd.f32 %v5069, %v5103
      %v5109 = vadd.f32 %v5070, %v5103
      %v5110 = vadd.f32 %v5071, %v5103
      %v5111 = vadd.f32 %v5072, %v5103
      %v5112 = vadd.f32 %v5073, %v5103
      %v5113 = vadd.f32 %v5074, %v5103
      %v5114 = vadd.f32 %v5075, %v5103
      %v5115 = vadd.f32 %v5076, %v5103
      %v5116 = vadd.f32 %v5077, %v5103
      %v5117 = vadd.f32 %v5078, %v5103
      %v5118 = vadd.f32 %v5079, %v5103
      %v5119 = vadd.f32 %v5080, %v5103
      %v5120 = vadd.f32 %v5081, %v5103
      %v5121 = vadd.f32 %v5082, %v5103
      %v5122 = vadd.f32 %v5083, %v5103
      %v5123 = vadd.f32 %v5084, %v5103
      %v5124 = vadd.f32 %v5085, %v5103
      %v5125 = vadd.f32 %v5086, %v5103
      %v5126 = vadd.f32 %v5087, %v5103
      %v5127 = vadd.f32 %v5088, %v5103
      %v5128 = vadd.f32 %v5089, %v5103
      %v5129 = vadd.f32 %v5090, %v5103
      %v5130 = vadd.f32 %v5091, %v5103
      %v5131 = vadd.f32 %v5092, %v5103
      %v5132 = vadd.f32 %v5093, %v5103
      %v5133 = vadd.f32 %v5094, %v5103
      %v5134 = vadd.f32 %v5095, %v5103
      %v5135 = vadd.f32 %v5096, %v5103
      %v5136 = vadd.f32 %v5097, %v5103
      %v5137 = vld [vmem:[%s329] sm:$0xff]
      %v5138 = vld [vmem:[%s329 + $0x8] sm:$0xff]
      %v5139 = vld [vmem:[%s329 + $0x10] sm:$0xff]
      %v5140 = vld [vmem:[%s329 + $0x18] sm:$0xff]
      %v5141 = vld [vmem:[%s329 + $0x20] sm:$0xff]
      %v5142 = vld [vmem:[%s329 + $0x28] sm:$0xff]
      %v5143 = vld [vmem:[%s329 + $0x30] sm:$0xff]
      %v5144 = vld [vmem:[%s329 + $0x38] sm:$0xff]
      %v5145 = vld [vmem:[%s329 + $0x40] sm:$0xff]
      %v5146 = vld [vmem:[%s329 + $0x48] sm:$0xff]
      %v5147 = vld [vmem:[%s329 + $0x50] sm:$0xff]
      %v5148 = vld [vmem:[%s329 + $0x58] sm:$0xff]
      %v5149 = vld [vmem:[%s329 + $0x60] sm:$0xff]
      %v5150 = vld [vmem:[%s329 + $0x68] sm:$0xff]
      %v5151 = vld [vmem:[%s329 + $0x70] sm:$0xff]
      %v5152 = vld [vmem:[%s329 + $0x78] sm:$0xff]
      %v5153 = vld [vmem:[%s329 + $0x80] sm:$0xff]
      %v5154 = vld [vmem:[%s329 + $0x88] sm:$0xff]
      %v5155 = vld [vmem:[%s329 + $0x90] sm:$0xff]
      %v5156 = vld [vmem:[%s329 + $0x98] sm:$0xff]
      %v5157 = vld [vmem:[%s329 + $0xa0] sm:$0xff]
      %v5158 = vld [vmem:[%s329 + $0xa8] sm:$0xff]
      %v5159 = vld [vmem:[%s329 + $0xb0] sm:$0xff]
      %v5160 = vld [vmem:[%s329 + $0xb8] sm:$0xff]
      %v5161 = vld [vmem:[%s329 + $0xc0] sm:$0xff]
      %v5162 = vld [vmem:[%s329 + $0xc8] sm:$0xff]
      %v5163 = vld [vmem:[%s329 + $0xd0] sm:$0xff]
      %v5164 = vld [vmem:[%s329 + $0xd8] sm:$0xff]
      %v5165 = vld [vmem:[%s329 + $0xe0] sm:$0xff]
      %v5166 = vld [vmem:[%s329 + $0xe8] sm:$0xff]
      %v5167 = vld [vmem:[%s329 + $0xf0] sm:$0xff]
      %v5168 = vld [vmem:[%s329 + $0xf8] sm:$0xff]
      %v5169 = vld [vmem:[%s335] sm:$0xf]
      %v5170 = vld [vmem:[%s335 + $0x4] sm:$0xf]
      %v5171 = vld [vmem:[%s335 + $0x8] sm:$0xf]
      %v5172 = vld [vmem:[%s335 + $0xc] sm:$0xf]
      %v5173 = vld [vmem:[%s335 + $0x10] sm:$0xf]
      %v5174 = vld [vmem:[%s335 + $0x14] sm:$0xf]
      %v5175 = vld [vmem:[%s335 + $0x18] sm:$0xf]
      %v5176 = vld [vmem:[%s335 + $0x1c] sm:$0xf]
      %v5177 = vld [vmem:[%s335 + $0x20] sm:$0xf]
      %v5178 = vld [vmem:[%s335 + $0x24] sm:$0xf]
      %v5179 = vld [vmem:[%s335 + $0x28] sm:$0xf]
      %v5180 = vld [vmem:[%s335 + $0x2c] sm:$0xf]
      %v5181 = vld [vmem:[%s335 + $0x30] sm:$0xf]
      %v5182 = vld [vmem:[%s335 + $0x34] sm:$0xf]
      %v5183 = vld [vmem:[%s335 + $0x38] sm:$0xf]
      %v5184 = vld [vmem:[%s335 + $0x3c] sm:$0xf]
      %v5185 = vld [vmem:[%s335 + $0x40] sm:$0xf]
      %v5186 = vld [vmem:[%s335 + $0x44] sm:$0xf]
      %v5187 = vld [vmem:[%s335 + $0x48] sm:$0xf]
      %v5188 = vld [vmem:[%s335 + $0x4c] sm:$0xf]
      %v5189 = vld [vmem:[%s335 + $0x50] sm:$0xf]
      %v5190 = vld [vmem:[%s335 + $0x54] sm:$0xf]
      %v5191 = vld [vmem:[%s335 + $0x58] sm:$0xf]
      %v5192 = vld [vmem:[%s335 + $0x5c] sm:$0xf]
      %v5193 = vld [vmem:[%s335 + $0x60] sm:$0xf]
      %v5194 = vld [vmem:[%s335 + $0x64] sm:$0xf]
      %v5195 = vld [vmem:[%s335 + $0x68] sm:$0xf]
      %v5196 = vld [vmem:[%s335 + $0x6c] sm:$0xf]
      %v5197 = vld [vmem:[%s335 + $0x70] sm:$0xf]
      %v5198 = vld [vmem:[%s335 + $0x74] sm:$0xf]
      %v5199 = vld [vmem:[%s335 + $0x78] sm:$0xf]
      %v5200 = vld [vmem:[%s335 + $0x7c] sm:$0xf]
      %v5201 = vunpack.c.l.bf16 %v5169
      %v5202 = vunpack.c.l.bf16 %v5170
      %v5203 = vunpack.c.l.bf16 %v5171
      %v5204 = vunpack.c.l.bf16 %v5172
      %v5205 = vunpack.c.l.bf16 %v5173
      %v5206 = vunpack.c.l.bf16 %v5174
      %v5207 = vunpack.c.l.bf16 %v5175
      %v5208 = vunpack.c.l.bf16 %v5176
      %v5209 = vunpack.c.l.bf16 %v5177
      %v5210 = vunpack.c.l.bf16 %v5178
      %v5211 = vunpack.c.l.bf16 %v5179
      %v5212 = vunpack.c.l.bf16 %v5180
      %v5213 = vunpack.c.l.bf16 %v5181
      %v5214 = vunpack.c.l.bf16 %v5182
      %v5215 = vunpack.c.l.bf16 %v5183
      %v5216 = vunpack.c.l.bf16 %v5184
      %v5217 = vunpack.c.l.bf16 %v5185
      %v5218 = vunpack.c.l.bf16 %v5186
      %v5219 = vunpack.c.l.bf16 %v5187
      %v5220 = vunpack.c.l.bf16 %v5188
      %v5221 = vunpack.c.l.bf16 %v5189
      %v5222 = vunpack.c.l.bf16 %v5190
      %v5223 = vunpack.c.l.bf16 %v5191
      %v5224 = vunpack.c.l.bf16 %v5192
      %v5225 = vunpack.c.l.bf16 %v5193
      %v5226 = vunpack.c.l.bf16 %v5194
      %v5227 = vunpack.c.l.bf16 %v5195
      %v5228 = vunpack.c.l.bf16 %v5196
      %v5229 = vunpack.c.l.bf16 %v5197
      %v5230 = vunpack.c.l.bf16 %v5198
      %v5231 = vunpack.c.l.bf16 %v5199
      %v5232 = vunpack.c.l.bf16 %v5200
      %5265 = vrot.lane.b32.xlu0 %v5137, 32
      %v5266 = vpop.permute.xlu0 %5265
      %5267 = vrot.lane.b32.xlu0 %v5138, 32
      %v5268 = vpop.permute.xlu0 %5267
      %5269 = vrot.lane.b32.xlu0 %v5139, 32
      %v5270 = vpop.permute.xlu0 %5269
      %5271 = vrot.lane.b32.xlu0 %v5140, 32
      %v5272 = vpop.permute.xlu0 %5271
      %5273 = vrot.lane.b32.xlu0 %v5141, 32
      %v5274 = vpop.permute.xlu0 %5273
      %5275 = vrot.lane.b32.xlu0 %v5142, 32
      %v5276 = vpop.permute.xlu0 %5275
      %5277 = vrot.lane.b32.xlu0 %v5143, 32
      %v5278 = vpop.permute.xlu0 %5277
      %5279 = vrot.lane.b32.xlu0 %v5144, 32
      %v5280 = vpop.permute.xlu0 %5279
      %5281 = vrot.lane.b32.xlu0 %v5145, 32
      %v5282 = vpop.permute.xlu0 %5281
      %5283 = vrot.lane.b32.xlu0 %v5146, 32
      %v5284 = vpop.permute.xlu0 %5283
      %5285 = vrot.lane.b32.xlu0 %v5147, 32
      %v5286 = vpop.permute.xlu0 %5285
      %5287 = vrot.lane.b32.xlu0 %v5148, 32
      %v5288 = vpop.permute.xlu0 %5287
      %5289 = vrot.lane.b32.xlu0 %v5149, 32
      %v5290 = vpop.permute.xlu0 %5289
      %5291 = vrot.lane.b32.xlu0 %v5150, 32
      %v5292 = vpop.permute.xlu0 %5291
      %5293 = vrot.lane.b32.xlu0 %v5151, 32
      %v5294 = vpop.permute.xlu0 %5293
      %5295 = vrot.lane.b32.xlu0 %v5152, 32
      %v5296 = vpop.permute.xlu0 %5295
      %5297 = vrot.lane.b32.xlu0 %v5153, 32
      %v5298 = vpop.permute.xlu0 %5297
      %5299 = vrot.lane.b32.xlu0 %v5154, 32
      %v5300 = vpop.permute.xlu0 %5299
      %5301 = vrot.lane.b32.xlu0 %v5155, 32
      %v5302 = vpop.permute.xlu0 %5301
      %5303 = vrot.lane.b32.xlu0 %v5156, 32
      %v5304 = vpop.permute.xlu0 %5303
      %5305 = vrot.lane.b32.xlu0 %v5157, 32
      %v5306 = vpop.permute.xlu0 %5305
      %5307 = vrot.lane.b32.xlu0 %v5158, 32
      %v5308 = vpop.permute.xlu0 %5307
      %5309 = vrot.lane.b32.xlu0 %v5159, 32
      %v5310 = vpop.permute.xlu0 %5309
      %5311 = vrot.lane.b32.xlu0 %v5160, 32
      %v5312 = vpop.permute.xlu0 %5311
      %5313 = vrot.lane.b32.xlu0 %v5161, 32
      %v5314 = vpop.permute.xlu0 %5313
      %5315 = vrot.lane.b32.xlu0 %v5162, 32
      %v5316 = vpop.permute.xlu0 %5315
      %5317 = vrot.lane.b32.xlu0 %v5163, 32
      %v5318 = vpop.permute.xlu0 %5317
      %5319 = vrot.lane.b32.xlu0 %v5164, 32
      %v5320 = vpop.permute.xlu0 %5319
      %5321 = vrot.lane.b32.xlu0 %v5165, 32
      %v5322 = vpop.permute.xlu0 %5321
      %5323 = vrot.lane.b32.xlu0 %v5166, 32
      %v5324 = vpop.permute.xlu0 %5323
      %5325 = vrot.lane.b32.xlu0 %v5167, 32
      %v5326 = vpop.permute.xlu0 %5325
      %5327 = vrot.lane.b32.xlu0 %v5168, 32
      %v5328 = vpop.permute.xlu0 %5327
      %vm5361 = vcmask 261120
      %v5362 = vsel %vm5361, %v5137, %v5266
      %v5363 = vsel %vm5361, %v5138, %v5268
      %v5364 = vsel %vm5361, %v5139, %v5270
      %v5365 = vsel %vm5361, %v5140, %v5272
      %v5366 = vsel %vm5361, %v5141, %v5274
      %v5367 = vsel %vm5361, %v5142, %v5276
      %v5368 = vsel %vm5361, %v5143, %v5278
      %v5369 = vsel %vm5361, %v5144, %v5280
      %v5370 = vsel %vm5361, %v5145, %v5282
      %v5371 = vsel %vm5361, %v5146, %v5284
      %v5372 = vsel %vm5361, %v5147, %v5286
      %v5373 = vsel %vm5361, %v5148, %v5288
      %v5374 = vsel %vm5361, %v5149, %v5290
      %v5375 = vsel %vm5361, %v5150, %v5292
      %v5376 = vsel %vm5361, %v5151, %v5294
      %v5377 = vsel %vm5361, %v5152, %v5296
      %v5378 = vsel %vm5361, %v5153, %v5298
      %v5379 = vsel %vm5361, %v5154, %v5300
      %v5380 = vsel %vm5361, %v5155, %v5302
      %v5381 = vsel %vm5361, %v5156, %v5304
      %v5382 = vsel %vm5361, %v5157, %v5306
      %v5383 = vsel %vm5361, %v5158, %v5308
      %v5384 = vsel %vm5361, %v5159, %v5310
      %v5385 = vsel %vm5361, %v5160, %v5312
      %v5386 = vsel %vm5361, %v5161, %v5314
      %v5387 = vsel %vm5361, %v5162, %v5316
      %v5388 = vsel %vm5361, %v5163, %v5318
      %v5389 = vsel %vm5361, %v5164, %v5320
      %v5390 = vsel %vm5361, %v5165, %v5322
      %v5391 = vsel %vm5361, %v5166, %v5324
      %v5392 = vsel %vm5361, %v5167, %v5326
      %v5393 = vsel %vm5361, %v5168, %v5328
      %v5394 = vmul.f32 %v5362, %v5201
      %v5395 = vmul.f32 %v5363, %v5202
      %v5396 = vmul.f32 %v5364, %v5203
      %v5397 = vmul.f32 %v5365, %v5204
      %v5398 = vmul.f32 %v5366, %v5205
      %v5399 = vmul.f32 %v5367, %v5206
      %v5400 = vmul.f32 %v5368, %v5207
      %v5401 = vmul.f32 %v5369, %v5208
      %v5402 = vmul.f32 %v5370, %v5209
      %v5403 = vmul.f32 %v5371, %v5210
      %v5404 = vmul.f32 %v5372, %v5211
      %v5405 = vmul.f32 %v5373, %v5212
      %v5406 = vmul.f32 %v5374, %v5213
      %v5407 = vmul.f32 %v5375, %v5214
      %v5408 = vmul.f32 %v5376, %v5215
      %v5409 = vmul.f32 %v5377, %v5216
      %v5410 = vmul.f32 %v5378, %v5217
      %v5411 = vmul.f32 %v5379, %v5218
      %v5412 = vmul.f32 %v5380, %v5219
      %v5413 = vmul.f32 %v5381, %v5220
      %v5414 = vmul.f32 %v5382, %v5221
      %v5415 = vmul.f32 %v5383, %v5222
      %v5416 = vmul.f32 %v5384, %v5223
      %v5417 = vmul.f32 %v5385, %v5224
      %v5418 = vmul.f32 %v5386, %v5225
      %v5419 = vmul.f32 %v5387, %v5226
      %v5420 = vmul.f32 %v5388, %v5227
      %v5421 = vmul.f32 %v5389, %v5228
      %v5422 = vmul.f32 %v5390, %v5229
      %v5423 = vmul.f32 %v5391, %v5230
      %v5424 = vmul.f32 %v5392, %v5231
      %v5425 = vmul.f32 %v5393, %v5232
      %v5426 = vadd.f32 %v5105, %v5394
      %v5427 = vadd.f32 %v5106, %v5395
      %v5428 = vadd.f32 %v5107, %v5396
      %v5429 = vadd.f32 %v5108, %v5397
      %v5430 = vadd.f32 %v5109, %v5398
      %v5431 = vadd.f32 %v5110, %v5399
      %v5432 = vadd.f32 %v5111, %v5400
      %v5433 = vadd.f32 %v5112, %v5401
      %v5434 = vadd.f32 %v5113, %v5402
      %v5435 = vadd.f32 %v5114, %v5403
      %v5436 = vadd.f32 %v5115, %v5404
      %v5437 = vadd.f32 %v5116, %v5405
      %v5438 = vadd.f32 %v5117, %v5406
      %v5439 = vadd.f32 %v5118, %v5407
      %v5440 = vadd.f32 %v5119, %v5408
      %v5441 = vadd.f32 %v5120, %v5409
      %v5442 = vadd.f32 %v5121, %v5410
      %v5443 = vadd.f32 %v5122, %v5411
      %v5444 = vadd.f32 %v5123, %v5412
      %v5445 = vadd.f32 %v5124, %v5413
      %v5446 = vadd.f32 %v5125, %v5414
      %v5447 = vadd.f32 %v5126, %v5415
      %v5448 = vadd.f32 %v5127, %v5416
      %v5449 = vadd.f32 %v5128, %v5417
      %v5450 = vadd.f32 %v5129, %v5418
      %v5451 = vadd.f32 %v5130, %v5419
      %v5452 = vadd.f32 %v5131, %v5420
      %v5453 = vadd.f32 %v5132, %v5421
      %v5454 = vadd.f32 %v5133, %v5422
      %v5455 = vadd.f32 %v5134, %v5423
      %v5456 = vadd.f32 %v5135, %v5424
      %v5457 = vadd.f32 %v5136, %v5425
      %vm5458 = vcmask 523264
      %v5459 = vsel %vm5458, %v5426, %v5105
      %v5460 = vsel %vm5458, %v5427, %v5106
      %v5461 = vsel %vm5458, %v5428, %v5107
      %v5462 = vsel %vm5458, %v5429, %v5108
      %v5463 = vsel %vm5458, %v5430, %v5109
      %v5464 = vsel %vm5458, %v5431, %v5110
      %v5465 = vsel %vm5458, %v5432, %v5111
      %v5466 = vsel %vm5458, %v5433, %v5112
      %v5467 = vsel %vm5458, %v5434, %v5113
      %v5468 = vsel %vm5458, %v5435, %v5114
      %v5469 = vsel %vm5458, %v5436, %v5115
      %v5470 = vsel %vm5458, %v5437, %v5116
      %v5471 = vsel %vm5458, %v5438, %v5117
      %v5472 = vsel %vm5458, %v5439, %v5118
      %v5473 = vsel %vm5458, %v5440, %v5119
      %v5474 = vsel %vm5458, %v5441, %v5120
      %v5475 = vsel %vm5458, %v5442, %v5121
      %v5476 = vsel %vm5458, %v5443, %v5122
      %v5477 = vsel %vm5458, %v5444, %v5123
      %v5478 = vsel %vm5458, %v5445, %v5124
      %v5479 = vsel %vm5458, %v5446, %v5125
      %v5480 = vsel %vm5458, %v5447, %v5126
      %v5481 = vsel %vm5458, %v5448, %v5127
      %v5482 = vsel %vm5458, %v5449, %v5128
      %v5483 = vsel %vm5458, %v5450, %v5129
      %v5484 = vsel %vm5458, %v5451, %v5130
      %v5485 = vsel %vm5458, %v5452, %v5131
      %v5486 = vsel %vm5458, %v5453, %v5132
      %v5487 = vsel %vm5458, %v5454, %v5133
      %v5488 = vsel %vm5458, %v5455, %v5134
      %v5489 = vsel %vm5458, %v5456, %v5135
      %v5490 = vsel %vm5458, %v5457, %v5136
      %v5491 = vmul.f32 %v5459, 0.5
      %v5492 = vmul.f32 %v5460, 0.5
      %v5493 = vmul.f32 %v5461, 0.5
      %v5494 = vmul.f32 %v5462, 0.5
      %v5495 = vmul.f32 %v5463, 0.5
      %v5496 = vmul.f32 %v5464, 0.5
      %v5497 = vmul.f32 %v5465, 0.5
      %v5498 = vmul.f32 %v5466, 0.5
      %v5499 = vmul.f32 %v5467, 0.5
      %v5500 = vmul.f32 %v5468, 0.5
      %v5501 = vmul.f32 %v5469, 0.5
      %v5502 = vmul.f32 %v5470, 0.5
      %v5503 = vmul.f32 %v5471, 0.5
      %v5504 = vmul.f32 %v5472, 0.5
      %v5505 = vmul.f32 %v5473, 0.5
      %v5506 = vmul.f32 %v5474, 0.5
      %v5507 = vmul.f32 %v5475, 0.5
      %v5508 = vmul.f32 %v5476, 0.5
      %v5509 = vmul.f32 %v5477, 0.5
      %v5510 = vmul.f32 %v5478, 0.5
      %v5511 = vmul.f32 %v5479, 0.5
      %v5512 = vmul.f32 %v5480, 0.5
      %v5513 = vmul.f32 %v5481, 0.5
      %v5514 = vmul.f32 %v5482, 0.5
      %v5515 = vmul.f32 %v5483, 0.5
      %v5516 = vmul.f32 %v5484, 0.5
      %v5517 = vmul.f32 %v5485, 0.5
      %v5518 = vmul.f32 %v5486, 0.5
      %v5519 = vmul.f32 %v5487, 0.5
      %v5520 = vmul.f32 %v5488, 0.5
      %v5521 = vmul.f32 %v5489, 0.5
      %v5522 = vmul.f32 %v5490, 0.5
      %v5523 = vtanh.pop %v5491
      %v5524 = vtanh.pop %v5492
      %v5525 = vtanh.pop %v5493
      %v5526 = vtanh.pop %v5494
      %v5527 = vtanh.pop %v5495
      %v5528 = vtanh.pop %v5496
      %v5529 = vtanh.pop %v5497
      %v5530 = vtanh.pop %v5498
      %v5531 = vtanh.pop %v5499
      %v5532 = vtanh.pop %v5500
      %v5533 = vtanh.pop %v5501
      %v5534 = vtanh.pop %v5502
      %v5535 = vtanh.pop %v5503
      %v5536 = vtanh.pop %v5504
      %v5537 = vtanh.pop %v5505
      %v5538 = vtanh.pop %v5506
      %v5539 = vtanh.pop %v5507
      %v5540 = vtanh.pop %v5508
      %v5541 = vtanh.pop %v5509
      %v5542 = vtanh.pop %v5510
      %v5543 = vtanh.pop %v5511
      %v5544 = vtanh.pop %v5512
      %v5545 = vtanh.pop %v5513
      %v5546 = vtanh.pop %v5514
      %v5547 = vtanh.pop %v5515
      %v5548 = vtanh.pop %v5516
      %v5549 = vtanh.pop %v5517
      %v5550 = vtanh.pop %v5518
      %v5551 = vtanh.pop %v5519
      %v5552 = vtanh.pop %v5520
      %v5553 = vtanh.pop %v5521
      %v5554 = vtanh.pop %v5522
      %v5555 = vmul.f32 %v5523, 0.5
      %v5556 = vmul.f32 %v5524, 0.5
      %v5557 = vmul.f32 %v5525, 0.5
      %v5558 = vmul.f32 %v5526, 0.5
      %v5559 = vmul.f32 %v5527, 0.5
      %v5560 = vmul.f32 %v5528, 0.5
      %v5561 = vmul.f32 %v5529, 0.5
      %v5562 = vmul.f32 %v5530, 0.5
      %v5563 = vmul.f32 %v5531, 0.5
      %v5564 = vmul.f32 %v5532, 0.5
      %v5565 = vmul.f32 %v5533, 0.5
      %v5566 = vmul.f32 %v5534, 0.5
      %v5567 = vmul.f32 %v5535, 0.5
      %v5568 = vmul.f32 %v5536, 0.5
      %v5569 = vmul.f32 %v5537, 0.5
      %v5570 = vmul.f32 %v5538, 0.5
      %v5571 = vmul.f32 %v5539, 0.5
      %v5572 = vmul.f32 %v5540, 0.5
      %v5573 = vmul.f32 %v5541, 0.5
      %v5574 = vmul.f32 %v5542, 0.5
      %v5575 = vmul.f32 %v5543, 0.5
      %v5576 = vmul.f32 %v5544, 0.5
      %v5577 = vmul.f32 %v5545, 0.5
      %v5578 = vmul.f32 %v5546, 0.5
      %v5579 = vmul.f32 %v5547, 0.5
      %v5580 = vmul.f32 %v5548, 0.5
      %v5581 = vmul.f32 %v5549, 0.5
      %v5582 = vmul.f32 %v5550, 0.5
      %v5583 = vmul.f32 %v5551, 0.5
      %v5584 = vmul.f32 %v5552, 0.5
      %v5585 = vmul.f32 %v5553, 0.5
      %v5586 = vmul.f32 %v5554, 0.5
      %v5587 = vadd.f32 %v5555, 0.5
      %v5588 = vadd.f32 %v5556, 0.5
      %v5589 = vadd.f32 %v5557, 0.5
      %v5590 = vadd.f32 %v5558, 0.5
      %v5591 = vadd.f32 %v5559, 0.5
      %v5592 = vadd.f32 %v5560, 0.5
      %v5593 = vadd.f32 %v5561, 0.5
      %v5594 = vadd.f32 %v5562, 0.5
      %v5595 = vadd.f32 %v5563, 0.5
      %v5596 = vadd.f32 %v5564, 0.5
      %v5597 = vadd.f32 %v5565, 0.5
      %v5598 = vadd.f32 %v5566, 0.5
      %v5599 = vadd.f32 %v5567, 0.5
      %v5600 = vadd.f32 %v5568, 0.5
      %v5601 = vadd.f32 %v5569, 0.5
      %v5602 = vadd.f32 %v5570, 0.5
      %v5603 = vadd.f32 %v5571, 0.5
      %v5604 = vadd.f32 %v5572, 0.5
      %v5605 = vadd.f32 %v5573, 0.5
      %v5606 = vadd.f32 %v5574, 0.5
      %v5607 = vadd.f32 %v5575, 0.5
      %v5608 = vadd.f32 %v5576, 0.5
      %v5609 = vadd.f32 %v5577, 0.5
      %v5610 = vadd.f32 %v5578, 0.5
      %v5611 = vadd.f32 %v5579, 0.5
      %v5612 = vadd.f32 %v5580, 0.5
      %v5613 = vadd.f32 %v5581, 0.5
      %v5614 = vadd.f32 %v5582, 0.5
      %v5615 = vadd.f32 %v5583, 0.5
      %v5616 = vadd.f32 %v5584, 0.5
      %v5617 = vadd.f32 %v5585, 0.5
      %v5618 = vadd.f32 %v5586, 0.5
      %v5619 = vmul.f32 %v5587, %v5266
      %v5620 = vmul.f32 %v5588, %v5268
      %v5621 = vmul.f32 %v5589, %v5270
      %v5622 = vmul.f32 %v5590, %v5272
      %v5623 = vmul.f32 %v5591, %v5274
      %v5624 = vmul.f32 %v5592, %v5276
      %v5625 = vmul.f32 %v5593, %v5278
      %v5626 = vmul.f32 %v5594, %v5280
      %v5627 = vmul.f32 %v5595, %v5282
      %v5628 = vmul.f32 %v5596, %v5284
      %v5629 = vmul.f32 %v5597, %v5286
      %v5630 = vmul.f32 %v5598, %v5288
      %v5631 = vmul.f32 %v5599, %v5290
      %v5632 = vmul.f32 %v5600, %v5292
      %v5633 = vmul.f32 %v5601, %v5294
      %v5634 = vmul.f32 %v5602, %v5296
      %v5635 = vmul.f32 %v5603, %v5298
      %v5636 = vmul.f32 %v5604, %v5300
      %v5637 = vmul.f32 %v5605, %v5302
      %v5638 = vmul.f32 %v5606, %v5304
      %v5639 = vmul.f32 %v5607, %v5306
      %v5640 = vmul.f32 %v5608, %v5308
      %v5641 = vmul.f32 %v5609, %v5310
      %v5642 = vmul.f32 %v5610, %v5312
      %v5643 = vmul.f32 %v5611, %v5314
      %v5644 = vmul.f32 %v5612, %v5316
      %v5645 = vmul.f32 %v5613, %v5318
      %v5646 = vmul.f32 %v5614, %v5320
      %v5647 = vmul.f32 %v5615, %v5322
      %v5648 = vmul.f32 %v5616, %v5324
      %v5649 = vmul.f32 %v5617, %v5326
      %v5650 = vmul.f32 %v5618, %v5328
      %5683 = vrot.lane.b32.xlu0 %v5523, 64
      %v5684 = vpop.permute.xlu0 %5683
      %5685 = vrot.lane.b32.xlu0 %v5524, 64
      %v5686 = vpop.permute.xlu0 %5685
      %5687 = vrot.lane.b32.xlu0 %v5525, 64
      %v5688 = vpop.permute.xlu0 %5687
      %5689 = vrot.lane.b32.xlu0 %v5526, 64
      %v5690 = vpop.permute.xlu0 %5689
      %5691 = vrot.lane.b32.xlu0 %v5527, 64
      %v5692 = vpop.permute.xlu0 %5691
      %5693 = vrot.lane.b32.xlu0 %v5528, 64
      %v5694 = vpop.permute.xlu0 %5693
      %5695 = vrot.lane.b32.xlu0 %v5529, 64
      %v5696 = vpop.permute.xlu0 %5695
      %5697 = vrot.lane.b32.xlu0 %v5530, 64
      %v5698 = vpop.permute.xlu0 %5697
      %5699 = vrot.lane.b32.xlu0 %v5531, 64
      %v5700 = vpop.permute.xlu0 %5699
      %5701 = vrot.lane.b32.xlu0 %v5532, 64
      %v5702 = vpop.permute.xlu0 %5701
      %5703 = vrot.lane.b32.xlu0 %v5533, 64
      %v5704 = vpop.permute.xlu0 %5703
      %5705 = vrot.lane.b32.xlu0 %v5534, 64
      %v5706 = vpop.permute.xlu0 %5705
      %5707 = vrot.lane.b32.xlu0 %v5535, 64
      %v5708 = vpop.permute.xlu0 %5707
      %5709 = vrot.lane.b32.xlu0 %v5536, 64
      %v5710 = vpop.permute.xlu0 %5709
      %5711 = vrot.lane.b32.xlu0 %v5537, 64
      %v5712 = vpop.permute.xlu0 %5711
      %5713 = vrot.lane.b32.xlu0 %v5538, 64
      %v5714 = vpop.permute.xlu0 %5713
      %5715 = vrot.lane.b32.xlu0 %v5539, 64
      %v5716 = vpop.permute.xlu0 %5715
      %5717 = vrot.lane.b32.xlu0 %v5540, 64
      %v5718 = vpop.permute.xlu0 %5717
      %5719 = vrot.lane.b32.xlu0 %v5541, 64
      %v5720 = vpop.permute.xlu0 %5719
      %5721 = vrot.lane.b32.xlu0 %v5542, 64
      %v5722 = vpop.permute.xlu0 %5721
      %5723 = vrot.lane.b32.xlu0 %v5543, 64
      %v5724 = vpop.permute.xlu0 %5723
      %5725 = vrot.lane.b32.xlu0 %v5544, 64
      %v5726 = vpop.permute.xlu0 %5725
      %5727 = vrot.lane.b32.xlu0 %v5545, 64
      %v5728 = vpop.permute.xlu0 %5727
      %5729 = vrot.lane.b32.xlu0 %v5546, 64
      %v5730 = vpop.permute.xlu0 %5729
      %5731 = vrot.lane.b32.xlu0 %v5547, 64
      %v5732 = vpop.permute.xlu0 %5731
      %5733 = vrot.lane.b32.xlu0 %v5548, 64
      %v5734 = vpop.permute.xlu0 %5733
      %5735 = vrot.lane.b32.xlu0 %v5549, 64
      %v5736 = vpop.permute.xlu0 %5735
      %5737 = vrot.lane.b32.xlu0 %v5550, 64
      %v5738 = vpop.permute.xlu0 %5737
      %5739 = vrot.lane.b32.xlu0 %v5551, 64
      %v5740 = vpop.permute.xlu0 %5739
      %5741 = vrot.lane.b32.xlu0 %v5552, 64
      %v5742 = vpop.permute.xlu0 %5741
      %5743 = vrot.lane.b32.xlu0 %v5553, 64
      %v5744 = vpop.permute.xlu0 %5743
      %5745 = vrot.lane.b32.xlu0 %v5554, 64
      %v5746 = vpop.permute.xlu0 %5745
      %v5779 = vmul.f32 %v5587, %v5684
      %v5780 = vmul.f32 %v5588, %v5686
      %v5781 = vmul.f32 %v5589, %v5688
      %v5782 = vmul.f32 %v5590, %v5690
      %v5783 = vmul.f32 %v5591, %v5692
      %v5784 = vmul.f32 %v5592, %v5694
      %v5785 = vmul.f32 %v5593, %v5696
      %v5786 = vmul.f32 %v5594, %v5698
      %v5787 = vmul.f32 %v5595, %v5700
      %v5788 = vmul.f32 %v5596, %v5702
      %v5789 = vmul.f32 %v5597, %v5704
      %v5790 = vmul.f32 %v5598, %v5706
      %v5791 = vmul.f32 %v5599, %v5708
      %v5792 = vmul.f32 %v5600, %v5710
      %v5793 = vmul.f32 %v5601, %v5712
      %v5794 = vmul.f32 %v5602, %v5714
      %v5795 = vmul.f32 %v5603, %v5716
      %v5796 = vmul.f32 %v5604, %v5718
      %v5797 = vmul.f32 %v5605, %v5720
      %v5798 = vmul.f32 %v5606, %v5722
      %v5799 = vmul.f32 %v5607, %v5724
      %v5800 = vmul.f32 %v5608, %v5726
      %v5801 = vmul.f32 %v5609, %v5728
      %v5802 = vmul.f32 %v5610, %v5730
      %v5803 = vmul.f32 %v5611, %v5732
      %v5804 = vmul.f32 %v5612, %v5734
      %v5805 = vmul.f32 %v5613, %v5736
      %v5806 = vmul.f32 %v5614, %v5738
      %v5807 = vmul.f32 %v5615, %v5740
      %v5808 = vmul.f32 %v5616, %v5742
      %v5809 = vmul.f32 %v5617, %v5744
      %v5810 = vmul.f32 %v5618, %v5746
      %5843 = vrot.lane.b32.xlu0 %v5779, 32
      %v5844 = vpop.permute.xlu0 %5843
      %5845 = vrot.lane.b32.xlu0 %v5780, 32
      %v5846 = vpop.permute.xlu0 %5845
      %5847 = vrot.lane.b32.xlu0 %v5781, 32
      %v5848 = vpop.permute.xlu0 %5847
      %5849 = vrot.lane.b32.xlu0 %v5782, 32
      %v5850 = vpop.permute.xlu0 %5849
      %5851 = vrot.lane.b32.xlu0 %v5783, 32
      %v5852 = vpop.permute.xlu0 %5851
      %5853 = vrot.lane.b32.xlu0 %v5784, 32
      %v5854 = vpop.permute.xlu0 %5853
      %5855 = vrot.lane.b32.xlu0 %v5785, 32
      %v5856 = vpop.permute.xlu0 %5855
      %5857 = vrot.lane.b32.xlu0 %v5786, 32
      %v5858 = vpop.permute.xlu0 %5857
      %5859 = vrot.lane.b32.xlu0 %v5787, 32
      %v5860 = vpop.permute.xlu0 %5859
      %5861 = vrot.lane.b32.xlu0 %v5788, 32
      %v5862 = vpop.permute.xlu0 %5861
      %5863 = vrot.lane.b32.xlu0 %v5789, 32
      %v5864 = vpop.permute.xlu0 %5863
      %5865 = vrot.lane.b32.xlu0 %v5790, 32
      %v5866 = vpop.permute.xlu0 %5865
      %5867 = vrot.lane.b32.xlu0 %v5791, 32
      %v5868 = vpop.permute.xlu0 %5867
      %5869 = vrot.lane.b32.xlu0 %v5792, 32
      %v5870 = vpop.permute.xlu0 %5869
      %5871 = vrot.lane.b32.xlu0 %v5793, 32
      %v5872 = vpop.permute.xlu0 %5871
      %5873 = vrot.lane.b32.xlu0 %v5794, 32
      %v5874 = vpop.permute.xlu0 %5873
      %5875 = vrot.lane.b32.xlu0 %v5795, 32
      %v5876 = vpop.permute.xlu0 %5875
      %5877 = vrot.lane.b32.xlu0 %v5796, 32
      %v5878 = vpop.permute.xlu0 %5877
      %5879 = vrot.lane.b32.xlu0 %v5797, 32
      %v5880 = vpop.permute.xlu0 %5879
      %5881 = vrot.lane.b32.xlu0 %v5798, 32
      %v5882 = vpop.permute.xlu0 %5881
      %5883 = vrot.lane.b32.xlu0 %v5799, 32
      %v5884 = vpop.permute.xlu0 %5883
      %5885 = vrot.lane.b32.xlu0 %v5800, 32
      %v5886 = vpop.permute.xlu0 %5885
      %5887 = vrot.lane.b32.xlu0 %v5801, 32
      %v5888 = vpop.permute.xlu0 %5887
      %5889 = vrot.lane.b32.xlu0 %v5802, 32
      %v5890 = vpop.permute.xlu0 %5889
      %5891 = vrot.lane.b32.xlu0 %v5803, 32
      %v5892 = vpop.permute.xlu0 %5891
      %5893 = vrot.lane.b32.xlu0 %v5804, 32
      %v5894 = vpop.permute.xlu0 %5893
      %5895 = vrot.lane.b32.xlu0 %v5805, 32
      %v5896 = vpop.permute.xlu0 %5895
      %5897 = vrot.lane.b32.xlu0 %v5806, 32
      %v5898 = vpop.permute.xlu0 %5897
      %5899 = vrot.lane.b32.xlu0 %v5807, 32
      %v5900 = vpop.permute.xlu0 %5899
      %5901 = vrot.lane.b32.xlu0 %v5808, 32
      %v5902 = vpop.permute.xlu0 %5901
      %5903 = vrot.lane.b32.xlu0 %v5809, 32
      %v5904 = vpop.permute.xlu0 %5903
      %5905 = vrot.lane.b32.xlu0 %v5810, 32
      %v5906 = vpop.permute.xlu0 %5905
      %v5939 = vadd.f32 %v5619, %v5844
      %v5940 = vadd.f32 %v5620, %v5846
      %v5941 = vadd.f32 %v5621, %v5848
      %v5942 = vadd.f32 %v5622, %v5850
      %v5943 = vadd.f32 %v5623, %v5852
      %v5944 = vadd.f32 %v5624, %v5854
      %v5945 = vadd.f32 %v5625, %v5856
      %v5946 = vadd.f32 %v5626, %v5858
      %v5947 = vadd.f32 %v5627, %v5860
      %v5948 = vadd.f32 %v5628, %v5862
      %v5949 = vadd.f32 %v5629, %v5864
      %v5950 = vadd.f32 %v5630, %v5866
      %v5951 = vadd.f32 %v5631, %v5868
      %v5952 = vadd.f32 %v5632, %v5870
      %v5953 = vadd.f32 %v5633, %v5872
      %v5954 = vadd.f32 %v5634, %v5874
      %v5955 = vadd.f32 %v5635, %v5876
      %v5956 = vadd.f32 %v5636, %v5878
      %v5957 = vadd.f32 %v5637, %v5880
      %v5958 = vadd.f32 %v5638, %v5882
      %v5959 = vadd.f32 %v5639, %v5884
      %v5960 = vadd.f32 %v5640, %v5886
      %v5961 = vadd.f32 %v5641, %v5888
      %v5962 = vadd.f32 %v5642, %v5890
      %v5963 = vadd.f32 %v5643, %v5892
      %v5964 = vadd.f32 %v5644, %v5894
      %v5965 = vadd.f32 %v5645, %v5896
      %v5966 = vadd.f32 %v5646, %v5898
      %v5967 = vadd.f32 %v5647, %v5900
      %v5968 = vadd.f32 %v5648, %v5902
      %v5969 = vadd.f32 %v5649, %v5904
      %v5970 = vadd.f32 %v5650, %v5906
      %6003 = vrot.lane.b32.xlu0 %v5201, 96
      %v6004 = vpop.permute.xlu0 %6003
      %6005 = vrot.lane.b32.xlu0 %v5202, 96
      %v6006 = vpop.permute.xlu0 %6005
      %6007 = vrot.lane.b32.xlu0 %v5203, 96
      %v6008 = vpop.permute.xlu0 %6007
      %6009 = vrot.lane.b32.xlu0 %v5204, 96
      %v6010 = vpop.permute.xlu0 %6009
      %6011 = vrot.lane.b32.xlu0 %v5205, 96
      %v6012 = vpop.permute.xlu0 %6011
      %6013 = vrot.lane.b32.xlu0 %v5206, 96
      %v6014 = vpop.permute.xlu0 %6013
      %6015 = vrot.lane.b32.xlu0 %v5207, 96
      %v6016 = vpop.permute.xlu0 %6015
      %6017 = vrot.lane.b32.xlu0 %v5208, 96
      %v6018 = vpop.permute.xlu0 %6017
      %6019 = vrot.lane.b32.xlu0 %v5209, 96
      %v6020 = vpop.permute.xlu0 %6019
      %6021 = vrot.lane.b32.xlu0 %v5210, 96
      %v6022 = vpop.permute.xlu0 %6021
      %6023 = vrot.lane.b32.xlu0 %v5211, 96
      %v6024 = vpop.permute.xlu0 %6023
      %6025 = vrot.lane.b32.xlu0 %v5212, 96
      %v6026 = vpop.permute.xlu0 %6025
      %6027 = vrot.lane.b32.xlu0 %v5213, 96
      %v6028 = vpop.permute.xlu0 %6027
      %6029 = vrot.lane.b32.xlu0 %v5214, 96
      %v6030 = vpop.permute.xlu0 %6029
      %6031 = vrot.lane.b32.xlu0 %v5215, 96
      %v6032 = vpop.permute.xlu0 %6031
      %6033 = vrot.lane.b32.xlu0 %v5216, 96
      %v6034 = vpop.permute.xlu0 %6033
      %6035 = vrot.lane.b32.xlu0 %v5217, 96
      %v6036 = vpop.permute.xlu0 %6035
      %6037 = vrot.lane.b32.xlu0 %v5218, 96
      %v6038 = vpop.permute.xlu0 %6037
      %6039 = vrot.lane.b32.xlu0 %v5219, 96
      %v6040 = vpop.permute.xlu0 %6039
      %6041 = vrot.lane.b32.xlu0 %v5220, 96
      %v6042 = vpop.permute.xlu0 %6041
      %6043 = vrot.lane.b32.xlu0 %v5221, 96
      %v6044 = vpop.permute.xlu0 %6043
      %6045 = vrot.lane.b32.xlu0 %v5222, 96
      %v6046 = vpop.permute.xlu0 %6045
      %6047 = vrot.lane.b32.xlu0 %v5223, 96
      %v6048 = vpop.permute.xlu0 %6047
      %6049 = vrot.lane.b32.xlu0 %v5224, 96
      %v6050 = vpop.permute.xlu0 %6049
      %6051 = vrot.lane.b32.xlu0 %v5225, 96
      %v6052 = vpop.permute.xlu0 %6051
      %6053 = vrot.lane.b32.xlu0 %v5226, 96
      %v6054 = vpop.permute.xlu0 %6053
      %6055 = vrot.lane.b32.xlu0 %v5227, 96
      %v6056 = vpop.permute.xlu0 %6055
      %6057 = vrot.lane.b32.xlu0 %v5228, 96
      %v6058 = vpop.permute.xlu0 %6057
      %6059 = vrot.lane.b32.xlu0 %v5229, 96
      %v6060 = vpop.permute.xlu0 %6059
      %6061 = vrot.lane.b32.xlu0 %v5230, 96
      %v6062 = vpop.permute.xlu0 %6061
      %6063 = vrot.lane.b32.xlu0 %v5231, 96
      %v6064 = vpop.permute.xlu0 %6063
      %6065 = vrot.lane.b32.xlu0 %v5232, 96
      %v6066 = vpop.permute.xlu0 %6065
      %v6099 = vmul.f32 %v5939, %v6004
      %v6100 = vmul.f32 %v5940, %v6006
      %v6101 = vmul.f32 %v5941, %v6008
      %v6102 = vmul.f32 %v5942, %v6010
      %v6103 = vmul.f32 %v5943, %v6012
      %v6104 = vmul.f32 %v5944, %v6014
      %v6105 = vmul.f32 %v5945, %v6016
      %v6106 = vmul.f32 %v5946, %v6018
      %v6107 = vmul.f32 %v5947, %v6020
      %v6108 = vmul.f32 %v5948, %v6022
      %v6109 = vmul.f32 %v5949, %v6024
      %v6110 = vmul.f32 %v5950, %v6026
      %v6111 = vmul.f32 %v5951, %v6028
      %v6112 = vmul.f32 %v5952, %v6030
      %v6113 = vmul.f32 %v5953, %v6032
      %v6114 = vmul.f32 %v5954, %v6034
      %v6115 = vmul.f32 %v5955, %v6036
      %v6116 = vmul.f32 %v5956, %v6038
      %v6117 = vmul.f32 %v5957, %v6040
      %v6118 = vmul.f32 %v5958, %v6042
      %v6119 = vmul.f32 %v5959, %v6044
      %v6120 = vmul.f32 %v5960, %v6046
      %v6121 = vmul.f32 %v5961, %v6048
      %v6122 = vmul.f32 %v5962, %v6050
      %v6123 = vmul.f32 %v5963, %v6052
      %v6124 = vmul.f32 %v5964, %v6054
      %v6125 = vmul.f32 %v5965, %v6056
      %v6126 = vmul.f32 %v5966, %v6058
      %v6127 = vmul.f32 %v5967, %v6060
      %v6128 = vmul.f32 %v5968, %v6062
      %v6129 = vmul.f32 %v5969, %v6064
      %v6130 = vmul.f32 %v5970, %v6066
      %6163 = vrot.lane.b32.xlu0 %v6099, 64
      %v6164 = vpop.permute.xlu0 %6163
      %6165 = vrot.lane.b32.xlu0 %v6100, 64
      %v6166 = vpop.permute.xlu0 %6165
      %6167 = vrot.lane.b32.xlu0 %v6101, 64
      %v6168 = vpop.permute.xlu0 %6167
      %6169 = vrot.lane.b32.xlu0 %v6102, 64
      %v6170 = vpop.permute.xlu0 %6169
      %6171 = vrot.lane.b32.xlu0 %v6103, 64
      %v6172 = vpop.permute.xlu0 %6171
      %6173 = vrot.lane.b32.xlu0 %v6104, 64
      %v6174 = vpop.permute.xlu0 %6173
      %6175 = vrot.lane.b32.xlu0 %v6105, 64
      %v6176 = vpop.permute.xlu0 %6175
      %6177 = vrot.lane.b32.xlu0 %v6106, 64
      %v6178 = vpop.permute.xlu0 %6177
      %6179 = vrot.lane.b32.xlu0 %v6107, 64
      %v6180 = vpop.permute.xlu0 %6179
      %6181 = vrot.lane.b32.xlu0 %v6108, 64
      %v6182 = vpop.permute.xlu0 %6181
      %6183 = vrot.lane.b32.xlu0 %v6109, 64
      %v6184 = vpop.permute.xlu0 %6183
      %6185 = vrot.lane.b32.xlu0 %v6110, 64
      %v6186 = vpop.permute.xlu0 %6185
      %6187 = vrot.lane.b32.xlu0 %v6111, 64
      %v6188 = vpop.permute.xlu0 %6187
      %6189 = vrot.lane.b32.xlu0 %v6112, 64
      %v6190 = vpop.permute.xlu0 %6189
      %6191 = vrot.lane.b32.xlu0 %v6113, 64
      %v6192 = vpop.permute.xlu0 %6191
      %6193 = vrot.lane.b32.xlu0 %v6114, 64
      %v6194 = vpop.permute.xlu0 %6193
      %6195 = vrot.lane.b32.xlu0 %v6115, 64
      %v6196 = vpop.permute.xlu0 %6195
      %6197 = vrot.lane.b32.xlu0 %v6116, 64
      %v6198 = vpop.permute.xlu0 %6197
      %6199 = vrot.lane.b32.xlu0 %v6117, 64
      %v6200 = vpop.permute.xlu0 %6199
      %6201 = vrot.lane.b32.xlu0 %v6118, 64
      %v6202 = vpop.permute.xlu0 %6201
      %6203 = vrot.lane.b32.xlu0 %v6119, 64
      %v6204 = vpop.permute.xlu0 %6203
      %6205 = vrot.lane.b32.xlu0 %v6120, 64
      %v6206 = vpop.permute.xlu0 %6205
      %6207 = vrot.lane.b32.xlu0 %v6121, 64
      %v6208 = vpop.permute.xlu0 %6207
      %6209 = vrot.lane.b32.xlu0 %v6122, 64
      %v6210 = vpop.permute.xlu0 %6209
      %6211 = vrot.lane.b32.xlu0 %v6123, 64
      %v6212 = vpop.permute.xlu0 %6211
      %6213 = vrot.lane.b32.xlu0 %v6124, 64
      %v6214 = vpop.permute.xlu0 %6213
      %6215 = vrot.lane.b32.xlu0 %v6125, 64
      %v6216 = vpop.permute.xlu0 %6215
      %6217 = vrot.lane.b32.xlu0 %v6126, 64
      %v6218 = vpop.permute.xlu0 %6217
      %6219 = vrot.lane.b32.xlu0 %v6127, 64
      %v6220 = vpop.permute.xlu0 %6219
      %6221 = vrot.lane.b32.xlu0 %v6128, 64
      %v6222 = vpop.permute.xlu0 %6221
      %6223 = vrot.lane.b32.xlu0 %v6129, 64
      %v6224 = vpop.permute.xlu0 %6223
      %6225 = vrot.lane.b32.xlu0 %v6130, 64
      %v6226 = vpop.permute.xlu0 %6225
      %v6259 = vadd.f32 %v5105, %v6164
      %v6260 = vadd.f32 %v5106, %v6166
      %v6261 = vadd.f32 %v5107, %v6168
      %v6262 = vadd.f32 %v5108, %v6170
      %v6263 = vadd.f32 %v5109, %v6172
      %v6264 = vadd.f32 %v5110, %v6174
      %v6265 = vadd.f32 %v5111, %v6176
      %v6266 = vadd.f32 %v5112, %v6178
      %v6267 = vadd.f32 %v5113, %v6180
      %v6268 = vadd.f32 %v5114, %v6182
      %v6269 = vadd.f32 %v5115, %v6184
      %v6270 = vadd.f32 %v5116, %v6186
      %v6271 = vadd.f32 %v5117, %v6188
      %v6272 = vadd.f32 %v5118, %v6190
      %v6273 = vadd.f32 %v5119, %v6192
      %v6274 = vadd.f32 %v5120, %v6194
      %v6275 = vadd.f32 %v5121, %v6196
      %v6276 = vadd.f32 %v5122, %v6198
      %v6277 = vadd.f32 %v5123, %v6200
      %v6278 = vadd.f32 %v5124, %v6202
      %v6279 = vadd.f32 %v5125, %v6204
      %v6280 = vadd.f32 %v5126, %v6206
      %v6281 = vadd.f32 %v5127, %v6208
      %v6282 = vadd.f32 %v5128, %v6210
      %v6283 = vadd.f32 %v5129, %v6212
      %v6284 = vadd.f32 %v5130, %v6214
      %v6285 = vadd.f32 %v5131, %v6216
      %v6286 = vadd.f32 %v5132, %v6218
      %v6287 = vadd.f32 %v5133, %v6220
      %v6288 = vadd.f32 %v5134, %v6222
      %v6289 = vadd.f32 %v5135, %v6224
      %v6290 = vadd.f32 %v5136, %v6226
      %v6291 = vmul.f32 %v6259, 0.5
      %v6292 = vmul.f32 %v6260, 0.5
      %v6293 = vmul.f32 %v6261, 0.5
      %v6294 = vmul.f32 %v6262, 0.5
      %v6295 = vmul.f32 %v6263, 0.5
      %v6296 = vmul.f32 %v6264, 0.5
      %v6297 = vmul.f32 %v6265, 0.5
      %v6298 = vmul.f32 %v6266, 0.5
      %v6299 = vmul.f32 %v6267, 0.5
      %v6300 = vmul.f32 %v6268, 0.5
      %v6301 = vmul.f32 %v6269, 0.5
      %v6302 = vmul.f32 %v6270, 0.5
      %v6303 = vmul.f32 %v6271, 0.5
      %v6304 = vmul.f32 %v6272, 0.5
      %v6305 = vmul.f32 %v6273, 0.5
      %v6306 = vmul.f32 %v6274, 0.5
      %v6307 = vmul.f32 %v6275, 0.5
      %v6308 = vmul.f32 %v6276, 0.5
      %v6309 = vmul.f32 %v6277, 0.5
      %v6310 = vmul.f32 %v6278, 0.5
      %v6311 = vmul.f32 %v6279, 0.5
      %v6312 = vmul.f32 %v6280, 0.5
      %v6313 = vmul.f32 %v6281, 0.5
      %v6314 = vmul.f32 %v6282, 0.5
      %v6315 = vmul.f32 %v6283, 0.5
      %v6316 = vmul.f32 %v6284, 0.5
      %v6317 = vmul.f32 %v6285, 0.5
      %v6318 = vmul.f32 %v6286, 0.5
      %v6319 = vmul.f32 %v6287, 0.5
      %v6320 = vmul.f32 %v6288, 0.5
      %v6321 = vmul.f32 %v6289, 0.5
      %v6322 = vmul.f32 %v6290, 0.5
      %v6323 = vtanh.pop %v6291
      %v6324 = vtanh.pop %v6292
      %v6325 = vtanh.pop %v6293
      %v6326 = vtanh.pop %v6294
      %v6327 = vtanh.pop %v6295
      %v6328 = vtanh.pop %v6296
      %v6329 = vtanh.pop %v6297
      %v6330 = vtanh.pop %v6298
      %v6331 = vtanh.pop %v6299
      %v6332 = vtanh.pop %v6300
      %v6333 = vtanh.pop %v6301
      %v6334 = vtanh.pop %v6302
      %v6335 = vtanh.pop %v6303
      %v6336 = vtanh.pop %v6304
      %v6337 = vtanh.pop %v6305
      %v6338 = vtanh.pop %v6306
      %v6339 = vtanh.pop %v6307
      %v6340 = vtanh.pop %v6308
      %v6341 = vtanh.pop %v6309
      %v6342 = vtanh.pop %v6310
      %v6343 = vtanh.pop %v6311
      %v6344 = vtanh.pop %v6312
      %v6345 = vtanh.pop %v6313
      %v6346 = vtanh.pop %v6314
      %v6347 = vtanh.pop %v6315
      %v6348 = vtanh.pop %v6316
      %v6349 = vtanh.pop %v6317
      %v6350 = vtanh.pop %v6318
      %v6351 = vtanh.pop %v6319
      %v6352 = vtanh.pop %v6320
      %v6353 = vtanh.pop %v6321
      %v6354 = vtanh.pop %v6322
      %v6355 = vmul.f32 %v6323, 0.5
      %v6356 = vmul.f32 %v6324, 0.5
      %v6357 = vmul.f32 %v6325, 0.5
      %v6358 = vmul.f32 %v6326, 0.5
      %v6359 = vmul.f32 %v6327, 0.5
      %v6360 = vmul.f32 %v6328, 0.5
      %v6361 = vmul.f32 %v6329, 0.5
      %v6362 = vmul.f32 %v6330, 0.5
      %v6363 = vmul.f32 %v6331, 0.5
      %v6364 = vmul.f32 %v6332, 0.5
      %v6365 = vmul.f32 %v6333, 0.5
      %v6366 = vmul.f32 %v6334, 0.5
      %v6367 = vmul.f32 %v6335, 0.5
      %v6368 = vmul.f32 %v6336, 0.5
      %v6369 = vmul.f32 %v6337, 0.5
      %v6370 = vmul.f32 %v6338, 0.5
      %v6371 = vmul.f32 %v6339, 0.5
      %v6372 = vmul.f32 %v6340, 0.5
      %v6373 = vmul.f32 %v6341, 0.5
      %v6374 = vmul.f32 %v6342, 0.5
      %v6375 = vmul.f32 %v6343, 0.5
      %v6376 = vmul.f32 %v6344, 0.5
      %v6377 = vmul.f32 %v6345, 0.5
      %v6378 = vmul.f32 %v6346, 0.5
      %v6379 = vmul.f32 %v6347, 0.5
      %v6380 = vmul.f32 %v6348, 0.5
      %v6381 = vmul.f32 %v6349, 0.5
      %v6382 = vmul.f32 %v6350, 0.5
      %v6383 = vmul.f32 %v6351, 0.5
      %v6384 = vmul.f32 %v6352, 0.5
      %v6385 = vmul.f32 %v6353, 0.5
      %v6386 = vmul.f32 %v6354, 0.5
      %v6387 = vadd.f32 %v6355, 0.5
      %v6388 = vadd.f32 %v6356, 0.5
      %v6389 = vadd.f32 %v6357, 0.5
      %v6390 = vadd.f32 %v6358, 0.5
      %v6391 = vadd.f32 %v6359, 0.5
      %v6392 = vadd.f32 %v6360, 0.5
      %v6393 = vadd.f32 %v6361, 0.5
      %v6394 = vadd.f32 %v6362, 0.5
      %v6395 = vadd.f32 %v6363, 0.5
      %v6396 = vadd.f32 %v6364, 0.5
      %v6397 = vadd.f32 %v6365, 0.5
      %v6398 = vadd.f32 %v6366, 0.5
      %v6399 = vadd.f32 %v6367, 0.5
      %v6400 = vadd.f32 %v6368, 0.5
      %v6401 = vadd.f32 %v6369, 0.5
      %v6402 = vadd.f32 %v6370, 0.5
      %v6403 = vadd.f32 %v6371, 0.5
      %v6404 = vadd.f32 %v6372, 0.5
      %v6405 = vadd.f32 %v6373, 0.5
      %v6406 = vadd.f32 %v6374, 0.5
      %v6407 = vadd.f32 %v6375, 0.5
      %v6408 = vadd.f32 %v6376, 0.5
      %v6409 = vadd.f32 %v6377, 0.5
      %v6410 = vadd.f32 %v6378, 0.5
      %v6411 = vadd.f32 %v6379, 0.5
      %v6412 = vadd.f32 %v6380, 0.5
      %v6413 = vadd.f32 %v6381, 0.5
      %v6414 = vadd.f32 %v6382, 0.5
      %v6415 = vadd.f32 %v6383, 0.5
      %v6416 = vadd.f32 %v6384, 0.5
      %v6417 = vadd.f32 %v6385, 0.5
      %v6418 = vadd.f32 %v6386, 0.5
      %v6419 = vtanh.pop %v5939
      %v6420 = vtanh.pop %v5940
      %v6421 = vtanh.pop %v5941
      %v6422 = vtanh.pop %v5942
      %v6423 = vtanh.pop %v5943
      %v6424 = vtanh.pop %v5944
      %v6425 = vtanh.pop %v5945
      %v6426 = vtanh.pop %v5946
      %v6427 = vtanh.pop %v5947
      %v6428 = vtanh.pop %v5948
      %v6429 = vtanh.pop %v5949
      %v6430 = vtanh.pop %v5950
      %v6431 = vtanh.pop %v5951
      %v6432 = vtanh.pop %v5952
      %v6433 = vtanh.pop %v5953
      %v6434 = vtanh.pop %v5954
      %v6435 = vtanh.pop %v5955
      %v6436 = vtanh.pop %v5956
      %v6437 = vtanh.pop %v5957
      %v6438 = vtanh.pop %v5958
      %v6439 = vtanh.pop %v5959
      %v6440 = vtanh.pop %v5960
      %v6441 = vtanh.pop %v5961
      %v6442 = vtanh.pop %v5962
      %v6443 = vtanh.pop %v5963
      %v6444 = vtanh.pop %v5964
      %v6445 = vtanh.pop %v5965
      %v6446 = vtanh.pop %v5966
      %v6447 = vtanh.pop %v5967
      %v6448 = vtanh.pop %v5968
      %v6449 = vtanh.pop %v5969
      %v6450 = vtanh.pop %v5970
      %6483 = vrot.lane.b32.xlu0 %v6419, 64
      %v6484 = vpop.permute.xlu0 %6483
      %6485 = vrot.lane.b32.xlu0 %v6420, 64
      %v6486 = vpop.permute.xlu0 %6485
      %6487 = vrot.lane.b32.xlu0 %v6421, 64
      %v6488 = vpop.permute.xlu0 %6487
      %6489 = vrot.lane.b32.xlu0 %v6422, 64
      %v6490 = vpop.permute.xlu0 %6489
      %6491 = vrot.lane.b32.xlu0 %v6423, 64
      %v6492 = vpop.permute.xlu0 %6491
      %6493 = vrot.lane.b32.xlu0 %v6424, 64
      %v6494 = vpop.permute.xlu0 %6493
      %6495 = vrot.lane.b32.xlu0 %v6425, 64
      %v6496 = vpop.permute.xlu0 %6495
      %6497 = vrot.lane.b32.xlu0 %v6426, 64
      %v6498 = vpop.permute.xlu0 %6497
      %6499 = vrot.lane.b32.xlu0 %v6427, 64
      %v6500 = vpop.permute.xlu0 %6499
      %6501 = vrot.lane.b32.xlu0 %v6428, 64
      %v6502 = vpop.permute.xlu0 %6501
      %6503 = vrot.lane.b32.xlu0 %v6429, 64
      %v6504 = vpop.permute.xlu0 %6503
      %6505 = vrot.lane.b32.xlu0 %v6430, 64
      %v6506 = vpop.permute.xlu0 %6505
      %6507 = vrot.lane.b32.xlu0 %v6431, 64
      %v6508 = vpop.permute.xlu0 %6507
      %6509 = vrot.lane.b32.xlu0 %v6432, 64
      %v6510 = vpop.permute.xlu0 %6509
      %6511 = vrot.lane.b32.xlu0 %v6433, 64
      %v6512 = vpop.permute.xlu0 %6511
      %6513 = vrot.lane.b32.xlu0 %v6434, 64
      %v6514 = vpop.permute.xlu0 %6513
      %6515 = vrot.lane.b32.xlu0 %v6435, 64
      %v6516 = vpop.permute.xlu0 %6515
      %6517 = vrot.lane.b32.xlu0 %v6436, 64
      %v6518 = vpop.permute.xlu0 %6517
      %6519 = vrot.lane.b32.xlu0 %v6437, 64
      %v6520 = vpop.permute.xlu0 %6519
      %6521 = vrot.lane.b32.xlu0 %v6438, 64
      %v6522 = vpop.permute.xlu0 %6521
      %6523 = vrot.lane.b32.xlu0 %v6439, 64
      %v6524 = vpop.permute.xlu0 %6523
      %6525 = vrot.lane.b32.xlu0 %v6440, 64
      %v6526 = vpop.permute.xlu0 %6525
      %6527 = vrot.lane.b32.xlu0 %v6441, 64
      %v6528 = vpop.permute.xlu0 %6527
      %6529 = vrot.lane.b32.xlu0 %v6442, 64
      %v6530 = vpop.permute.xlu0 %6529
      %6531 = vrot.lane.b32.xlu0 %v6443, 64
      %v6532 = vpop.permute.xlu0 %6531
      %6533 = vrot.lane.b32.xlu0 %v6444, 64
      %v6534 = vpop.permute.xlu0 %6533
      %6535 = vrot.lane.b32.xlu0 %v6445, 64
      %v6536 = vpop.permute.xlu0 %6535
      %6537 = vrot.lane.b32.xlu0 %v6446, 64
      %v6538 = vpop.permute.xlu0 %6537
      %6539 = vrot.lane.b32.xlu0 %v6447, 64
      %v6540 = vpop.permute.xlu0 %6539
      %6541 = vrot.lane.b32.xlu0 %v6448, 64
      %v6542 = vpop.permute.xlu0 %6541
      %6543 = vrot.lane.b32.xlu0 %v6449, 64
      %v6544 = vpop.permute.xlu0 %6543
      %6545 = vrot.lane.b32.xlu0 %v6450, 64
      %v6546 = vpop.permute.xlu0 %6545
      %v6579 = vmul.f32 %v6387, %v6484
      %v6580 = vmul.f32 %v6388, %v6486
      %v6581 = vmul.f32 %v6389, %v6488
      %v6582 = vmul.f32 %v6390, %v6490
      %v6583 = vmul.f32 %v6391, %v6492
      %v6584 = vmul.f32 %v6392, %v6494
      %v6585 = vmul.f32 %v6393, %v6496
      %v6586 = vmul.f32 %v6394, %v6498
      %v6587 = vmul.f32 %v6395, %v6500
      %v6588 = vmul.f32 %v6396, %v6502
      %v6589 = vmul.f32 %v6397, %v6504
      %v6590 = vmul.f32 %v6398, %v6506
      %v6591 = vmul.f32 %v6399, %v6508
      %v6592 = vmul.f32 %v6400, %v6510
      %v6593 = vmul.f32 %v6401, %v6512
      %v6594 = vmul.f32 %v6402, %v6514
      %v6595 = vmul.f32 %v6403, %v6516
      %v6596 = vmul.f32 %v6404, %v6518
      %v6597 = vmul.f32 %v6405, %v6520
      %v6598 = vmul.f32 %v6406, %v6522
      %v6599 = vmul.f32 %v6407, %v6524
      %v6600 = vmul.f32 %v6408, %v6526
      %v6601 = vmul.f32 %v6409, %v6528
      %v6602 = vmul.f32 %v6410, %v6530
      %v6603 = vmul.f32 %v6411, %v6532
      %v6604 = vmul.f32 %v6412, %v6534
      %v6605 = vmul.f32 %v6413, %v6536
      %v6606 = vmul.f32 %v6414, %v6538
      %v6607 = vmul.f32 %v6415, %v6540
      %v6608 = vmul.f32 %v6416, %v6542
      %v6609 = vmul.f32 %v6417, %v6544
      %v6610 = vmul.f32 %v6418, %v6546
      %6643 = vrot.lane.b32.xlu0 %v6579, 32
      %v6644 = vpop.permute.xlu0 %6643
      %6645 = vrot.lane.b32.xlu0 %v6580, 32
      %v6646 = vpop.permute.xlu0 %6645
      %6647 = vrot.lane.b32.xlu0 %v6581, 32
      %v6648 = vpop.permute.xlu0 %6647
      %6649 = vrot.lane.b32.xlu0 %v6582, 32
      %v6650 = vpop.permute.xlu0 %6649
      %6651 = vrot.lane.b32.xlu0 %v6583, 32
      %v6652 = vpop.permute.xlu0 %6651
      %6653 = vrot.lane.b32.xlu0 %v6584, 32
      %v6654 = vpop.permute.xlu0 %6653
      %6655 = vrot.lane.b32.xlu0 %v6585, 32
      %v6656 = vpop.permute.xlu0 %6655
      %6657 = vrot.lane.b32.xlu0 %v6586, 32
      %v6658 = vpop.permute.xlu0 %6657
      %6659 = vrot.lane.b32.xlu0 %v6587, 32
      %v6660 = vpop.permute.xlu0 %6659
      %6661 = vrot.lane.b32.xlu0 %v6588, 32
      %v6662 = vpop.permute.xlu0 %6661
      %6663 = vrot.lane.b32.xlu0 %v6589, 32
      %v6664 = vpop.permute.xlu0 %6663
      %6665 = vrot.lane.b32.xlu0 %v6590, 32
      %v6666 = vpop.permute.xlu0 %6665
      %6667 = vrot.lane.b32.xlu0 %v6591, 32
      %v6668 = vpop.permute.xlu0 %6667
      %6669 = vrot.lane.b32.xlu0 %v6592, 32
      %v6670 = vpop.permute.xlu0 %6669
      %6671 = vrot.lane.b32.xlu0 %v6593, 32
      %v6672 = vpop.permute.xlu0 %6671
      %6673 = vrot.lane.b32.xlu0 %v6594, 32
      %v6674 = vpop.permute.xlu0 %6673
      %6675 = vrot.lane.b32.xlu0 %v6595, 32
      %v6676 = vpop.permute.xlu0 %6675
      %6677 = vrot.lane.b32.xlu0 %v6596, 32
      %v6678 = vpop.permute.xlu0 %6677
      %6679 = vrot.lane.b32.xlu0 %v6597, 32
      %v6680 = vpop.permute.xlu0 %6679
      %6681 = vrot.lane.b32.xlu0 %v6598, 32
      %v6682 = vpop.permute.xlu0 %6681
      %6683 = vrot.lane.b32.xlu0 %v6599, 32
      %v6684 = vpop.permute.xlu0 %6683
      %6685 = vrot.lane.b32.xlu0 %v6600, 32
      %v6686 = vpop.permute.xlu0 %6685
      %6687 = vrot.lane.b32.xlu0 %v6601, 32
      %v6688 = vpop.permute.xlu0 %6687
      %6689 = vrot.lane.b32.xlu0 %v6602, 32
      %v6690 = vpop.permute.xlu0 %6689
      %6691 = vrot.lane.b32.xlu0 %v6603, 32
      %v6692 = vpop.permute.xlu0 %6691
      %6693 = vrot.lane.b32.xlu0 %v6604, 32
      %v6694 = vpop.permute.xlu0 %6693
      %6695 = vrot.lane.b32.xlu0 %v6605, 32
      %v6696 = vpop.permute.xlu0 %6695
      %6697 = vrot.lane.b32.xlu0 %v6606, 32
      %v6698 = vpop.permute.xlu0 %6697
      %6699 = vrot.lane.b32.xlu0 %v6607, 32
      %v6700 = vpop.permute.xlu0 %6699
      %6701 = vrot.lane.b32.xlu0 %v6608, 32
      %v6702 = vpop.permute.xlu0 %6701
      %6703 = vrot.lane.b32.xlu0 %v6609, 32
      %v6704 = vpop.permute.xlu0 %6703
      %6705 = vrot.lane.b32.xlu0 %v6610, 32
      %v6706 = vpop.permute.xlu0 %6705
      %6739 = vst.msk [vmem:[%s345] sm:$0xff] %vm5361, %v6644
      %6740 = vst.msk [vmem:[%s345 + $0x8] sm:$0xff] %vm5361, %v6646
      %6741 = vst.msk [vmem:[%s345 + $0x10] sm:$0xff] %vm5361, %v6648
      %6742 = vst.msk [vmem:[%s345 + $0x18] sm:$0xff] %vm5361, %v6650
      %6743 = vst.msk [vmem:[%s345 + $0x20] sm:$0xff] %vm5361, %v6652
      %6744 = vst.msk [vmem:[%s345 + $0x28] sm:$0xff] %vm5361, %v6654
      %6745 = vst.msk [vmem:[%s345 + $0x30] sm:$0xff] %vm5361, %v6656
      %6746 = vst.msk [vmem:[%s345 + $0x38] sm:$0xff] %vm5361, %v6658
      %6747 = vst.msk [vmem:[%s345 + $0x40] sm:$0xff] %vm5361, %v6660
      %6748 = vst.msk [vmem:[%s345 + $0x48] sm:$0xff] %vm5361, %v6662
      %6749 = vst.msk [vmem:[%s345 + $0x50] sm:$0xff] %vm5361, %v6664
      %6750 = vst.msk [vmem:[%s345 + $0x58] sm:$0xff] %vm5361, %v6666
      %6751 = vst.msk [vmem:[%s345 + $0x60] sm:$0xff] %vm5361, %v6668
      %6752 = vst.msk [vmem:[%s345 + $0x68] sm:$0xff] %vm5361, %v6670
      %6753 = vst.msk [vmem:[%s345 + $0x70] sm:$0xff] %vm5361, %v6672
      %6754 = vst.msk [vmem:[%s345 + $0x78] sm:$0xff] %vm5361, %v6674
      %6755 = vst.msk [vmem:[%s345 + $0x80] sm:$0xff] %vm5361, %v6676
      %6756 = vst.msk [vmem:[%s345 + $0x88] sm:$0xff] %vm5361, %v6678
      %6757 = vst.msk [vmem:[%s345 + $0x90] sm:$0xff] %vm5361, %v6680
      %6758 = vst.msk [vmem:[%s345 + $0x98] sm:$0xff] %vm5361, %v6682
      %6759 = vst.msk [vmem:[%s345 + $0xa0] sm:$0xff] %vm5361, %v6684
      %6760 = vst.msk [vmem:[%s345 + $0xa8] sm:$0xff] %vm5361, %v6686
      %6761 = vst.msk [vmem:[%s345 + $0xb0] sm:$0xff] %vm5361, %v6688
      %6762 = vst.msk [vmem:[%s345 + $0xb8] sm:$0xff] %vm5361, %v6690
      %6763 = vst.msk [vmem:[%s345 + $0xc0] sm:$0xff] %vm5361, %v6692
      %6764 = vst.msk [vmem:[%s345 + $0xc8] sm:$0xff] %vm5361, %v6694
      %6765 = vst.msk [vmem:[%s345 + $0xd0] sm:$0xff] %vm5361, %v6696
      %6766 = vst.msk [vmem:[%s345 + $0xd8] sm:$0xff] %vm5361, %v6698
      %6767 = vst.msk [vmem:[%s345 + $0xe0] sm:$0xff] %vm5361, %v6700
      %6768 = vst.msk [vmem:[%s345 + $0xe8] sm:$0xff] %vm5361, %v6702
      %6769 = vst.msk [vmem:[%s345 + $0xf0] sm:$0xff] %vm5361, %v6704
      %6770 = vst.msk [vmem:[%s345 + $0xf8] sm:$0xff] %vm5361, %v6706
      %6803 = vrot.lane.b32.xlu0 %v5939, 96
      %v6804 = vpop.permute.xlu0 %6803
      %6805 = vrot.lane.b32.xlu0 %v5940, 96
      %v6806 = vpop.permute.xlu0 %6805
      %6807 = vrot.lane.b32.xlu0 %v5941, 96
      %v6808 = vpop.permute.xlu0 %6807
      %6809 = vrot.lane.b32.xlu0 %v5942, 96
      %v6810 = vpop.permute.xlu0 %6809
      %6811 = vrot.lane.b32.xlu0 %v5943, 96
      %v6812 = vpop.permute.xlu0 %6811
      %6813 = vrot.lane.b32.xlu0 %v5944, 96
      %v6814 = vpop.permute.xlu0 %6813
      %6815 = vrot.lane.b32.xlu0 %v5945, 96
      %v6816 = vpop.permute.xlu0 %6815
      %6817 = vrot.lane.b32.xlu0 %v5946, 96
      %v6818 = vpop.permute.xlu0 %6817
      %6819 = vrot.lane.b32.xlu0 %v5947, 96
      %v6820 = vpop.permute.xlu0 %6819
      %6821 = vrot.lane.b32.xlu0 %v5948, 96
      %v6822 = vpop.permute.xlu0 %6821
      %6823 = vrot.lane.b32.xlu0 %v5949, 96
      %v6824 = vpop.permute.xlu0 %6823
      %6825 = vrot.lane.b32.xlu0 %v5950, 96
      %v6826 = vpop.permute.xlu0 %6825
      %6827 = vrot.lane.b32.xlu0 %v5951, 96
      %v6828 = vpop.permute.xlu0 %6827
      %6829 = vrot.lane.b32.xlu0 %v5952, 96
      %v6830 = vpop.permute.xlu0 %6829
      %6831 = vrot.lane.b32.xlu0 %v5953, 96
      %v6832 = vpop.permute.xlu0 %6831
      %6833 = vrot.lane.b32.xlu0 %v5954, 96
      %v6834 = vpop.permute.xlu0 %6833
      %6835 = vrot.lane.b32.xlu0 %v5955, 96
      %v6836 = vpop.permute.xlu0 %6835
      %6837 = vrot.lane.b32.xlu0 %v5956, 96
      %v6838 = vpop.permute.xlu0 %6837
      %6839 = vrot.lane.b32.xlu0 %v5957, 96
      %v6840 = vpop.permute.xlu0 %6839
      %6841 = vrot.lane.b32.xlu0 %v5958, 96
      %v6842 = vpop.permute.xlu0 %6841
      %6843 = vrot.lane.b32.xlu0 %v5959, 96
      %v6844 = vpop.permute.xlu0 %6843
      %6845 = vrot.lane.b32.xlu0 %v5960, 96
      %v6846 = vpop.permute.xlu0 %6845
      %6847 = vrot.lane.b32.xlu0 %v5961, 96
      %v6848 = vpop.permute.xlu0 %6847
      %6849 = vrot.lane.b32.xlu0 %v5962, 96
      %v6850 = vpop.permute.xlu0 %6849
      %6851 = vrot.lane.b32.xlu0 %v5963, 96
      %v6852 = vpop.permute.xlu0 %6851
      %6853 = vrot.lane.b32.xlu0 %v5964, 96
      %v6854 = vpop.permute.xlu0 %6853
      %6855 = vrot.lane.b32.xlu0 %v5965, 96
      %v6856 = vpop.permute.xlu0 %6855
      %6857 = vrot.lane.b32.xlu0 %v5966, 96
      %v6858 = vpop.permute.xlu0 %6857
      %6859 = vrot.lane.b32.xlu0 %v5967, 96
      %v6860 = vpop.permute.xlu0 %6859
      %6861 = vrot.lane.b32.xlu0 %v5968, 96
      %v6862 = vpop.permute.xlu0 %6861
      %6863 = vrot.lane.b32.xlu0 %v5969, 96
      %v6864 = vpop.permute.xlu0 %6863
      %6865 = vrot.lane.b32.xlu0 %v5970, 96
      %v6866 = vpop.permute.xlu0 %6865
      %6899 = vst.msk [vmem:[%s355] sm:$0xff] %vm5361, %v6804
      %6900 = vst.msk [vmem:[%s355 + $0x8] sm:$0xff] %vm5361, %v6806
      %6901 = vst.msk [vmem:[%s355 + $0x10] sm:$0xff] %vm5361, %v6808
      %6902 = vst.msk [vmem:[%s355 + $0x18] sm:$0xff] %vm5361, %v6810
      %6903 = vst.msk [vmem:[%s355 + $0x20] sm:$0xff] %vm5361, %v6812
      %6904 = vst.msk [vmem:[%s355 + $0x28] sm:$0xff] %vm5361, %v6814
      %6905 = vst.msk [vmem:[%s355 + $0x30] sm:$0xff] %vm5361, %v6816
      %6906 = vst.msk [vmem:[%s355 + $0x38] sm:$0xff] %vm5361, %v6818
      %6907 = vst.msk [vmem:[%s355 + $0x40] sm:$0xff] %vm5361, %v6820
      %6908 = vst.msk [vmem:[%s355 + $0x48] sm:$0xff] %vm5361, %v6822
      %6909 = vst.msk [vmem:[%s355 + $0x50] sm:$0xff] %vm5361, %v6824
      %6910 = vst.msk [vmem:[%s355 + $0x58] sm:$0xff] %vm5361, %v6826
      %6911 = vst.msk [vmem:[%s355 + $0x60] sm:$0xff] %vm5361, %v6828
      %6912 = vst.msk [vmem:[%s355 + $0x68] sm:$0xff] %vm5361, %v6830
      %6913 = vst.msk [vmem:[%s355 + $0x70] sm:$0xff] %vm5361, %v6832
      %6914 = vst.msk [vmem:[%s355 + $0x78] sm:$0xff] %vm5361, %v6834
      %6915 = vst.msk [vmem:[%s355 + $0x80] sm:$0xff] %vm5361, %v6836
      %6916 = vst.msk [vmem:[%s355 + $0x88] sm:$0xff] %vm5361, %v6838
      %6917 = vst.msk [vmem:[%s355 + $0x90] sm:$0xff] %vm5361, %v6840
      %6918 = vst.msk [vmem:[%s355 + $0x98] sm:$0xff] %vm5361, %v6842
      %6919 = vst.msk [vmem:[%s355 + $0xa0] sm:$0xff] %vm5361, %v6844
      %6920 = vst.msk [vmem:[%s355 + $0xa8] sm:$0xff] %vm5361, %v6846
      %6921 = vst.msk [vmem:[%s355 + $0xb0] sm:$0xff] %vm5361, %v6848
      %6922 = vst.msk [vmem:[%s355 + $0xb8] sm:$0xff] %vm5361, %v6850
      %6923 = vst.msk [vmem:[%s355 + $0xc0] sm:$0xff] %vm5361, %v6852
      %6924 = vst.msk [vmem:[%s355 + $0xc8] sm:$0xff] %vm5361, %v6854
      %6925 = vst.msk [vmem:[%s355 + $0xd0] sm:$0xff] %vm5361, %v6856
      %6926 = vst.msk [vmem:[%s355 + $0xd8] sm:$0xff] %vm5361, %v6858
      %6927 = vst.msk [vmem:[%s355 + $0xe0] sm:$0xff] %vm5361, %v6860
      %6928 = vst.msk [vmem:[%s355 + $0xe8] sm:$0xff] %vm5361, %v6862
      %6929 = vst.msk [vmem:[%s355 + $0xf0] sm:$0xff] %vm5361, %v6864
      %6930 = vst.msk [vmem:[%s355 + $0xf8] sm:$0xff] %vm5361, %v6866
      %s6931 = smul.u32 32, %s23
      %p6932 = scmp.lt.s32.totalorder %s22, 1
      %s6933 = scalar_select %p6932, %s22, 1
      %p6934 = scmp.lt.s32.totalorder %s6931, 31
      %s6935 = scalar_select %p6934, %s6931, 31
      %s6936 = smul.addr %s6933, 32
      %s6937 = sadd.s32 %s6935, %s6936
      %s6938 = smul.addr %s6937, 8
      %s6939 = scalar_lea.vmem %s5, %s6938
      %s6940 = smul.u32 32, %s23
      %p6941 = scmp.lt.s32.totalorder %s22, 1
      %s6942 = scalar_select %p6941, %s22, 1
      %p6943 = scmp.lt.s32.totalorder %s6940, 31
      %s6944 = scalar_select %p6943, %s6940, 31
      %s6945 = smul.addr %s6942, 32
      %s6946 = sadd.s32 %s6944, %s6945
      %s6947 = smul.addr %s6946, 8
      %s6948 = scalar_lea.vmem %s6, %s6947
      // Predicated region
      $region41: #{tpu_custom_call.1} parent=39 // pred_check
        %p6949 = pneg %p172
      $region42: #{tpu_custom_call.1} parent=39 // pred_check_branch
        %6951 = sbr.rel (%p6949) target = $region44
      $region43: #{tpu_custom_call.1} parent=39 // pred_region
        %s6952 = smul.u32 32, %s23
      $region44: #{tpu_custom_call.1} parent=39 // pred_fallthru
        _
      // Predicated region
      $region45: #{tpu_custom_call.1} parent=39 // pred_check
        %p6953 = pneg %p200
      $region46: #{tpu_custom_call.1} parent=39 // pred_check_branch
        %6955 = sbr.rel (%p6953) target = $region48
      $region47: #{tpu_custom_call.1} parent=39 // pred_region
        %s6956 = smul.u32 32, %s23
      $region48: #{tpu_custom_call.1} parent=39 // pred_fallthru
        _
    $region40: #{tpu_custom_call.1} parent=5 // pred_fallthru
      _
    %p6957 = scmp.le.s32.totalorder 2, %s13
    // Predicated region
    $region49: #{tpu_custom_call.1} parent=5 // pred_check
      %p6958 = pneg %p6957
    $region50: #{tpu_custom_call.1} parent=5 // pred_check_branch
      %6960 = sbr.rel (%p6958) target = $region52
    $region51: #{tpu_custom_call.1} parent=5 // pred_region
      %s6961 = ssub.s32 %s13, 2
      // Predicated region
      $region53: #{tpu_custom_call.1} parent=51 // pred_check
        %p6962 = pneg %p178
      $region54: #{tpu_custom_call.1} parent=51 // pred_check_branch
        %6964 = sbr.rel (%p6962) target = $region56
      $region55: #{tpu_custom_call.1} parent=51 // pred_region
        %s6965 = smul.u32 32, %s25
        %p6966 = scmp.lt.s32.totalorder %s24, 1
        %s6967 = scalar_select %p6966, %s24, 1
        %p6968 = scmp.lt.s32.totalorder %s6965, 31
        %s6969 = scalar_select %p6968, %s6965, 31
        %s6970 = smul.addr %s6967, 32
        %s6971 = sadd.s32 %s6969, %s6970
        %s6972 = smul.addr %s6971, 8
        %s6973 = scalar_lea.vmem %s5, %s6972
      $region56: #{tpu_custom_call.1} parent=51 // pred_fallthru
        _
      // Predicated region
      $region57: #{tpu_custom_call.1} parent=51 // pred_check
        %p6974 = pneg %p206
      $region58: #{tpu_custom_call.1} parent=51 // pred_check_branch
        %6976 = sbr.rel (%p6974) target = $region60
      $region59: #{tpu_custom_call.1} parent=51 // pred_region
        %s6977 = smul.u32 32, %s25
        %p6978 = scmp.lt.s32.totalorder %s24, 1
        %s6979 = scalar_select %p6978, %s24, 1
        %p6980 = scmp.lt.s32.totalorder %s6977, 31
        %s6981 = scalar_select %p6980, %s6977, 31
        %s6982 = smul.addr %s6979, 32
        %s6983 = sadd.s32 %s6981, %s6982
        %s6984 = smul.addr %s6983, 8
        %s6985 = scalar_lea.vmem %s6, %s6984
      $region60: #{tpu_custom_call.1} parent=51 // pred_fallthru
        _
    $region52: #{tpu_custom_call.1} parent=5 // pred_fallthru
      _
  $region6: #{tpu_custom_call.1} parent=0 // loop_footer
    %s17 = sadd.s32 1, %s13
  $region7: #{tpu_custom_call.1} parent=0 // loop_footer_branch
    %12 = sbr.rel target = $region3
  $region8: #{tpu_custom_call.1} parent=0 // loop_exit
    _

</llo_original>
